<compile_context>
chip_gen: v7x
topology: tpu7x:2x2x1
jax: 0.10.0
libtpu: 0.0.40
codegen_flags: <defaults>
</compile_context>

<pallas_src>
import math

import jax
import jax.numpy as jnp
from jax import lax
from jax.experimental import pallas as pl
from jax.experimental.pallas import tpu as pltpu

LANE = 128
BATCH_PAD = 16      # batch rows padded to a full bf16 sublane tile


def _round_up(x, m):
    return (x + m - 1) // m * m


# ----------------------------------------------------------------------------
# Generic row/col tiled GEMM + bias (used for the final Linear)
# ----------------------------------------------------------------------------
def _matmul_bias_kernel(x_ref, w_ref, b_ref, o_ref):
    o_ref[...] = (jnp.dot(x_ref[...], w_ref[...],
                          preferred_element_type=jnp.float32) + b_ref[...])


def matmul_bias(x, w, b, *, tm_cap=256, tn_cap=512):
    """(M, K) bf16 @ (K, N) bf16 + (1, N) f32 -> (M, N) f32. M padded, N tiled."""
    M, K = x.shape
    N = w.shape[1]
    tm = min(tm_cap, _round_up(M, 8))
    Mp = _round_up(M, tm)
    if Mp != M:
        x = jnp.pad(x, ((0, Mp - M), (0, 0)))
    tn = N
    if N > tn_cap:
        for cand in range(tn_cap, 0, -LANE):
            if N % cand == 0:
                tn = cand
                break
    # TODO(synk): K is kept untiled (fits VMEM for LSTM-sized K); add a K grid
    # axis with an f32 accumulator scratch for very large K.
    out = pl.pallas_call(
        _matmul_bias_kernel,
        out_shape=jax.ShapeDtypeStruct((Mp, N), jnp.float32),
        grid_spec=pltpu.PrefetchScalarGridSpec(
            num_scalar_prefetch=0,
            grid=(Mp // tm, N // tn),
            in_specs=[
                pl.BlockSpec((tm, K), lambda i, j: (i, 0)),
                pl.BlockSpec((K, tn), lambda i, j: (0, j)),
                pl.BlockSpec((1, tn), lambda i, j: (0, j)),
            ],
            out_specs=pl.BlockSpec((tm, tn), lambda i, j: (i, j)),
        ),
        compiler_params=pltpu.CompilerParams(
            dimension_semantics=("parallel", "parallel")),
    )(x, w, b)
    return out[:M]


# ----------------------------------------------------------------------------
# Fused LSTM layer kernel: per-chunk input projection + sequential recurrence
# ----------------------------------------------------------------------------
def lstm_layer_kernel(maxlen_ref, len_ref, x_ref, wih_ref, whh_ref, b_ref,
                      out_ref, pre_ref, h_ref, c_ref):
    """Grid = (Tpad // Tc,). Rows of x/out are (t, b)-ordered, lane-dense.

    maxlen_ref : (1,)            SMEM scalar prefetch, max(lengths)
    len_ref    : (Bp, 1)         int32 lengths (padded batch rows -> 0)
    x_ref      : (Tc*Bp, Dp)     bf16 layer input chunk, time-major rows
    wih_ref    : (Dp, 4*Hp)      bf16 input weights, gate-aligned (i|f|g|o)
    whh_ref    : (Hp, 4*Hp)      bf16 recurrent weights, gate-aligned
    b_ref      : (1, 4*Hp)       f32 combined bias
    out_ref    : (Tc*Bp, Hp)     bf16 hidden outputs for this chunk
    pre_ref    : (Tc*Bp, 4*Hp)   f32 scratch, per-chunk pre-gates
    h_ref/c_ref: (Bp, Hp)        f32 carried state (persists across chunks)
    """
    Bp, Hp = h_ref.shape
    Tc = x_ref.shape[0] // Bp
    t_base = pl.program_id(0) * Tc
    max_len = maxlen_ref[0]
    lengths = len_ref[...]                     # (Bp, 1) int32

    @pl.when(pl.program_id(0) == 0)
    def _():
        h_ref[...] = jnp.zeros_like(h_ref)
        c_ref[...] = jnp.zeros_like(c_ref)

    # Fully padded chunk: packed semantics -> zero output, state frozen, no work.
    @pl.when(t_base >= max_len)
    def _():
        out_ref[...] = jnp.zeros_like(out_ref)

    @pl.when(t_base < max_len)
    def _():
        # Hoisted input projection for the whole chunk: one bf16 MXU GEMM,
        # pre-gates live only in VMEM (no HBM round trip).
        pre_ref[...] = (jnp.dot(x_ref[...], wih_ref[...],
                                preferred_element_type=jnp.float32)
                        + b_ref[...])

        def step(i, carry):
            r0 = pl.multiple_of(i * Bp, Bp)
            h = h_ref[...]
            c = c_ref[...]
            # Only the recurrent matmul is serialized; W_hh is read straight
            # from VMEM (not pinned in vregs across the unrolled steps).
            gates = (pre_ref[pl.ds(r0, Bp), :]
                     + jnp.dot(h.astype(jnp.bfloat16), whh_ref[...],
                               preferred_element_type=jnp.float32))
            # lane-aligned 128-wide gate slabs (i|f|g|o)
            i_g = jax.nn.sigmoid(gates[:, 0 * Hp:1 * Hp])
            f_g = jax.nn.sigmoid(gates[:, 1 * Hp:2 * Hp])
            g_g = jnp.tanh(gates[:, 2 * Hp:3 * Hp])
            o_g = jax.nn.sigmoid(gates[:, 3 * Hp:4 * Hp])
            c_new = f_g * c + i_g * g_g
            h_new = o_g * jnp.tanh(c_new)
            mask = lengths > (t_base + i)                 # (Bp, 1) in-sequence?
            h_ref[...] = jnp.where(mask, h_new, h)        # freeze state at padding
            c_ref[...] = jnp.where(mask, c_new, c)
            out_ref[pl.ds(r0, Bp), :] = (
                jnp.where(mask, h_new, 0.0).astype(out_ref.dtype))
            return carry

        # Moderate unroll once chunks get large (vreg pressure / compile time).
        unroll = Tc if Tc <= 8 else 4
        lax.fori_loop(0, Tc, step, 0, unroll=unroll)


def lstm_layer(x2d, lengths_p, maxlen, w_ih_g, w_hh_g, b_g, Tc):
    """x2d: (Tpad*Bp, Dp) bf16 time-major rows. Returns (Tpad*Bp, Hp) bf16."""
    Bp = lengths_p.shape[0]
    Dp = x2d.shape[1]
    G = w_hh_g.shape[1]
    Hp = G // 4
    Tpad = x2d.shape[0] // Bp
    rows = Tc * Bp
    return pl.pallas_call(
        lstm_layer_kernel,
        out_shape=jax.ShapeDtypeStruct((Tpad * Bp, Hp), jnp.bfloat16),
        grid_spec=pltpu.PrefetchScalarGridSpec(
            num_scalar_prefetch=1,
            grid=(Tpad // Tc,),
            in_specs=[
                pl.BlockSpec((Bp, 1), lambda t, ml: (0, 0)),
                pl.BlockSpec((rows, Dp), lambda t, ml: (t, 0)),
                pl.BlockSpec((Dp, G), lambda t, ml: (0, 0)),
                pl.BlockSpec((Hp, G), lambda t, ml: (0, 0)),
                pl.BlockSpec((1, G), lambda t, ml: (0, 0)),
            ],
            out_specs=pl.BlockSpec((rows, Hp), lambda t, ml: (t, 0)),
            scratch_shapes=[
                pltpu.VMEM((rows, G), jnp.float32),   # per-chunk pre-gates
                pltpu.VMEM((Bp, Hp), jnp.float32),    # h state
                pltpu.VMEM((Bp, Hp), jnp.float32),    # c state
            ],
        ),
        compiler_params=pltpu.CompilerParams(
            dimension_semantics=("arbitrary",)),
    )(maxlen, lengths_p, x2d, w_ih_g, w_hh_g, b_g)


def choose_time_chunk(T, Bp, Dp, Hp):
    """Size the time chunk from the VMEM budget (v7x has half of v5e/v6e)."""
    G = 4 * Hp
    try:
        vmem_cap = pltpu.get_tpu_info().vmem_capacity_bytes
    except Exception:
        vmem_cap = 64 << 20
    # per-timestep chunk bytes: double-buffered bf16 x/out blocks + f32 pre scratch
    per_t = Bp * (2 * Dp * 2 + 2 * Hp * 2 + G * 4)
    budget = min(vmem_cap // 8, 6 << 20)   # stays inside default scoped VMEM
    return int(max(1, min(T, 64, budget // per_t)))


# ----------------------------------------------------------------------------
# Parameter packing (PyTorch layout -> gate-aligned, lane-padded, bf16 weights)
# ----------------------------------------------------------------------------
def pack_gate_cols(w_t, H, Hp):
    """w_t: (K, 4H) with gate blocks [i|f|g|o] of width H -> (K, 4*Hp)."""
    K = w_t.shape[0]
    out = jnp.zeros((K, 4 * Hp), jnp.float32)
    for g in range(4):
        out = out.at[:, g * Hp:g * Hp + H].set(w_t[:, g * H:(g + 1) * H])
    return out


def pack_lstm_layer(w_ih, w_hh, b_ih, b_hh, Hp, Dp):
    """(4H,Din)/(4H,H)/(4H,) -> bf16 (Dp,4Hp), bf16 (Hp,4Hp), f32 (1,4Hp)."""
    H = w_hh.shape[1]
    w_ih_g = pack_gate_cols(w_ih.T, H, Hp)
    w_ih_g = jnp.pad(w_ih_g, ((0, Dp - w_ih_g.shape[0]), (0, 0)))
    w_hh_g = pack_gate_cols(w_hh.T, H, Hp)
    w_hh_g = jnp.pad(w_hh_g, ((0, Hp - H), (0, 0)))
    b_g = pack_gate_cols((b_ih + b_hh).reshape(1, 4 * H), H, Hp)
    return w_ih_g.astype(jnp.bfloat16), w_hh_g.astype(jnp.bfloat16), b_g


# ----------------------------------------------------------------------------
# Forward pass
# ----------------------------------------------------------------------------
def rnn_forward(x_btd, lengths, lstm_params_g, fc_w_g, fc_b_g, out_size):
    """x_btd: (B, T, Din) batch-first, lengths: (B,)."""
    B, T, Din = x_btd.shape
    Bp = _round_up(B, BATCH_PAD)
    Dp0 = lstm_params_g[0][0].shape[0]
    Hp = lstm_params_g[0][1].shape[0]
    Op = fc_w_g.shape[1]

    Tc = choose_time_chunk(T, Bp, max(Dp0, Hp), Hp)
    Tpad = _round_up(T, Tc)

    len_p = jnp.pad(lengths.astype(jnp.int32), (0, Bp - B)).reshape(Bp, 1)
    maxlen = jnp.max(lengths).astype(jnp.int32).reshape(1)

    # pad batch/time/features, go time-major once, flatten to lane-dense 2D rows
    x_p = jnp.pad(x_btd.astype(jnp.float32),
                  ((0, Bp - B), (0, Tpad - T), (0, Dp0 - Din)))
    h2d = (jnp.transpose(x_p, (1, 0, 2))
           .reshape(Tpad * Bp, Dp0).astype(jnp.bfloat16))

    for (w_ih_g, w_hh_g, b_g) in lstm_params_g:
        h2d = lstm_layer(h2d, len_p, maxlen, w_ih_g, w_hh_g, b_g, Tc)

    # final Linear on the real timesteps (rows are (t, b)-ordered -> first T*Bp)
    y = matmul_bias(h2d[:T * Bp], fc_w_g, fc_b_g)          # (T*Bp, Op) f32
    y = y.reshape(T, Bp, Op)
    return jnp.transpose(y, (1, 0, 2))[:B, :, :out_size]


# ----------------------------------------------------------------------------
# Pure-JAX f32 reference (for in-script verification only)
# ----------------------------------------------------------------------------
def rnn_reference(x_btd, lengths, raw_params, fc_w, fc_b):
    B, T, _ = x_btd.shape
    h_seq = x_btd
    for (w_ih, w_hh, b_ih, b_hh) in raw_params:
        H = w_hh.shape[1]
        w_ih_t, w_hh_t = w_ih.T, w_hh.T
        b_row = (b_ih + b_hh).reshape(1, 4 * H)
        h = jnp.zeros((B, H), jnp.float32)
        c = jnp.zeros((B, H), jnp.float32)
        outs = []
        for t in range(T):
            x_t = h_seq[:, t, :]
            gates = x_t @ w_ih_t + h @ w_hh_t + b_row
            i_g = jax.nn.sigmoid(gates[:, 0 * H:1 * H])
            f_g = jax.nn.sigmoid(gates[:, 1 * H:2 * H])
            g_g = jnp.tanh(gates[:, 2 * H:3 * H])
            o_g = jax.nn.sigmoid(gates[:, 3 * H:4 * H])
            c_new = f_g * c + i_g * g_g
            h_new = o_g * jnp.tanh(c_new)
            m = lengths.reshape(B, 1) > t
            h = jnp.where(m, h_new, h)
            c = jnp.where(m, c_new, c)
            outs.append(jnp.where(m, h_new, 0.0))
        h_seq = jnp.stack(outs, axis=1)
    return h_seq @ fc_w.T + fc_b


# ----------------------------------------------------------------------------
# Main
# ----------------------------------------------------------------------------
if __name__ == "__main__":
    B, T = 4, 8
    input_size, hidden_size = 16, 32
    num_layers, output_size = 2, 8

    Hp = _round_up(hidden_size, LANE)     # lane-aligned gate slabs
    Dp0 = _round_up(input_size, LANE)     # lane-dense layer-0 input
    Op = _round_up(output_size, LANE)     # lane-dense FC output

    key = jax.random.PRNGKey(0)
    key, kx = jax.random.split(key)
    x = jax.random.normal(kx, (B, T, input_size), jnp.float32)
    # max(lengths) == T so pad_packed_sequence output length matches T
    lengths = jnp.array([8, 5, 3, 8], dtype=jnp.int32)

    # PyTorch-style uniform(-1/sqrt(H), 1/sqrt(H)) init, gate order i,f,g,o.
    k = 1.0 / math.sqrt(hidden_size)
    raw_params, packed_params = [], []
    for layer in range(num_layers):
        d_in = input_size if layer == 0 else hidden_size
        d_in_pad = Dp0 if layer == 0 else Hp
        key, k1, k2, k3, k4 = jax.random.split(key, 5)
        w_ih = jax.random.uniform(k1, (4 * hidden_size, d_in), jnp.float32, -k, k)
        w_hh = jax.random.uniform(k2, (4 * hidden_size, hidden_size), jnp.float32, -k, k)
        b_ih = jax.random.uniform(k3, (4 * hidden_size,), jnp.float32, -k, k)
        b_hh = jax.random.uniform(k4, (4 * hidden_size,), jnp.float32, -k, k)
        raw_params.append((w_ih, w_hh, b_ih, b_hh))
        packed_params.append(pack_lstm_layer(w_ih, w_hh, b_ih, b_hh, Hp, d_in_pad))

    key, k5, k6 = jax.random.split(key, 3)
    fc_w = jax.random.uniform(k5, (output_size, hidden_size), jnp.float32, -k, k)
    fc_b = jax.random.uniform(k6, (output_size,), jnp.float32, -k, k)
    fc_w_g = (jnp.zeros((Hp, Op), jnp.float32)
              .at[:hidden_size, :output_size].set(fc_w.T)).astype(jnp.bfloat16)
    fc_b_g = jnp.zeros((1, Op), jnp.float32).at[0, :output_size].set(fc_b)

    # TODO(synk): final (h_n, c_n) are not emitted (unused by the module's forward).
    # TODO(synk): optional v7x dual-TensorCore batch split (parallel batch grid
    # axis) is omitted; the test batch (Bp=16) is too small to shard per core.
    out = rnn_forward(x, lengths, packed_params, fc_w_g, fc_b_g, output_size)
    out = jax.block_until_ready(out)

    ref = rnn_reference(x, lengths, raw_params, fc_w, fc_b)
    assert out.shape == (B, T, output_size)
    err = float(jnp.max(jnp.abs(out - ref)))
    # bf16 MXU inputs -> f32 reference tolerance
    assert err < 3e-2, f"mismatch vs reference (max abs err {err})"

    print("KERNEL_OK")
</pallas_src>

<mosaic_0001>
module attributes {stable_mosaic.version = 11 : i64} {
  func.func @lstm_layer_kernel(%arg0: i32, %arg1: memref<1xi32, #tpu.memory_space<smem>>, %arg2: memref<16x1xi32, #tpu.memory_space<vmem>>, %arg3: memref<128x128xbf16, #tpu.memory_space<vmem>>, %arg4: memref<128x512xbf16, #tpu.memory_space<vmem>>, %arg5: memref<128x512xbf16, #tpu.memory_space<vmem>>, %arg6: memref<1x512xf32, #tpu.memory_space<vmem>>, %arg7: memref<128x128xbf16, #tpu.memory_space<vmem>>, %arg8: memref<128x512xf32, #tpu.memory_space<vmem>>, %arg9: memref<16x128xf32, #tpu.memory_space<vmem>>, %arg10: memref<16x128xf32, #tpu.memory_space<vmem>>) attributes {dimension_semantics = [#tpu.dimension_semantics<arbitrary>], iteration_bounds = array<i64: 1>, scalar_prefetch = 1 : i64, scratch_operands = 3 : i64, tpu.core_type = #tpu.core_type<tc>, window_params = [{pipeline_mode = #tpu.pipeline_mode<synchronous>, transform_indices = @transform_0, window_bounds = array<i64: 16, 1>}, {transform_indices = @transform_1, window_bounds = array<i64: 128, 128>}, {pipeline_mode = #tpu.pipeline_mode<synchronous>, transform_indices = @transform_2, window_bounds = array<i64: 128, 512>}, {pipeline_mode = #tpu.pipeline_mode<synchronous>, transform_indices = @transform_3, window_bounds = array<i64: 128, 512>}, {pipeline_mode = #tpu.pipeline_mode<synchronous>, transform_indices = @transform_4, window_bounds = array<i64: 1, 512>}, {transform_indices = @transform_5, window_bounds = array<i64: 128, 128>}]} {
    %c8_i32 = arith.constant 8 : i32
    %0 = arith.muli %arg0, %c8_i32 : i32
    %c0 = arith.constant 0 : index
    %1 = memref.load %arg1[%c0] : memref<1xi32, #tpu.memory_space<smem>>
    %c0_0 = arith.constant 0 : index
    %c0_1 = arith.constant 0 : index
    %2 = vector.load %arg2[%c0_0, %c0_1] : memref<16x1xi32, #tpu.memory_space<vmem>>, vector<16x1xi32>
    %c0_i32 = arith.constant 0 : i32
    %3 = arith.cmpi eq, %arg0, %c0_i32 : i32
    %4 = arith.extui %3 : i1 to i32
    %c0_i32_2 = arith.constant 0 : i32
    %5 = arith.cmpi ne, %4, %c0_i32_2 : i32
    scf.if %5 {
      %cst = arith.constant 0.000000e+00 : f32
      %12 = vector.broadcast %cst : f32 to vector<16x128xf32>
      %c0_5 = arith.constant 0 : index
      %c0_6 = arith.constant 0 : index
      %13 = vector.load %arg9[%c0_5, %c0_6] : memref<16x128xf32, #tpu.memory_space<vmem>>, vector<16x128xf32>
      tpu.vector_store %arg9[%c0_5, %c0_6], %12 {strides = array<i32>} : memref<16x128xf32, #tpu.memory_space<vmem>>, vector<16x128xf32>,
      %cst_7 = arith.constant 0.000000e+00 : f32
      %14 = vector.broadcast %cst_7 : f32 to vector<16x128xf32>
      %c0_8 = arith.constant 0 : index
      %c0_9 = arith.constant 0 : index
      %15 = vector.load %arg10[%c0_8, %c0_9] : memref<16x128xf32, #tpu.memory_space<vmem>>, vector<16x128xf32>
      tpu.vector_store %arg10[%c0_8, %c0_9], %14 {strides = array<i32>} : memref<16x128xf32, #tpu.memory_space<vmem>>, vector<16x128xf32>,
    } else {
    }
    %6 = arith.cmpi sge, %0, %1 : i32
    %7 = arith.extui %6 : i1 to i32
    %c0_i32_3 = arith.constant 0 : i32
    %8 = arith.cmpi ne, %7, %c0_i32_3 : i32
    scf.if %8 {
      %cst = arith.constant 0.000000e+00 : bf16
      %12 = vector.broadcast %cst : bf16 to vector<128x128xbf16>
      %c0_5 = arith.constant 0 : index
      %c0_6 = arith.constant 0 : index
      %13 = vector.load %arg7[%c0_5, %c0_6] : memref<128x128xbf16, #tpu.memory_space<vmem>>, vector<128x128xbf16>
      tpu.vector_store %arg7[%c0_5, %c0_6], %12 {strides = array<i32>} : memref<128x128xbf16, #tpu.memory_space<vmem>>, vector<128x128xbf16>,
    } else {
    }
    %9 = arith.cmpi slt, %0, %1 : i32
    %10 = arith.extui %9 : i1 to i32
    %c0_i32_4 = arith.constant 0 : i32
    %11 = arith.cmpi ne, %10, %c0_i32_4 : i32
    scf.if %11 {
      %c0_5 = arith.constant 0 : index
      %c0_6 = arith.constant 0 : index
      %12 = vector.load %arg3[%c0_5, %c0_6] : memref<128x128xbf16, #tpu.memory_space<vmem>>, vector<128x128xbf16>
      %c0_7 = arith.constant 0 : index
      %c0_8 = arith.constant 0 : index
      %13 = vector.load %arg4[%c0_7, %c0_8] : memref<128x512xbf16, #tpu.memory_space<vmem>>, vector<128x512xbf16>
      %cst = arith.constant dense<0.000000e+00> : vector<128x512xf32>
      %14 = tpu.matmul %12, %13, %cst {dimension_numbers = #tpu.dot_dimension_numbers<[1], [0], [0], [1], [0, 0, 1, 1], [], []>} : vector<128x128xbf16>, vector<128x512xbf16>, vector<128x512xf32> -> vector<128x512xf32>
      %c0_9 = arith.constant 0 : index
      %c0_10 = arith.constant 0 : index
      %15 = vector.load %arg6[%c0_9, %c0_10] : memref<1x512xf32, #tpu.memory_space<vmem>>, vector<1x512xf32>
      %16 = vector.broadcast %15 : vector<1x512xf32> to vector<128x512xf32>
      %17 = arith.addf %14, %16 : vector<128x512xf32>
      %c0_11 = arith.constant 0 : index
      %c0_12 = arith.constant 0 : index
      %18 = vector.load %arg8[%c0_11, %c0_12] : memref<128x512xf32, #tpu.memory_space<vmem>>, vector<128x512xf32>
      tpu.vector_store %arg8[%c0_11, %c0_12], %17 {strides = array<i32>} : memref<128x512xf32, #tpu.memory_space<vmem>>, vector<128x512xf32>,
      %c0_i32_13 = arith.constant 0 : i32
      %c16_i32 = arith.constant 16 : i32
      %19 = arith.muli %c0_i32_13, %c16_i32 : i32
      %20 = tpu.assume_multiple %19, 16 : i32
      %c0_14 = arith.constant 0 : index
      %c0_15 = arith.constant 0 : index
      %21 = vector.load %arg9[%c0_14, %c0_15] : memref<16x128xf32, #tpu.memory_space<vmem>>, vector<16x128xf32>
      %c0_16 = arith.constant 0 : index
      %c0_17 = arith.constant 0 : index
      %22 = vector.load %arg10[%c0_16, %c0_17] : memref<16x128xf32, #tpu.memory_space<vmem>>, vector<16x128xf32>
      %23 = arith.index_cast %20 : i32 to index
      %c0_18 = arith.constant 0 : index
      %24 = vector.load %arg8[%23, %c0_18] : memref<128x512xf32, #tpu.memory_space<vmem>>, vector<16x512xf32>
      %25 = arith.truncf %21 : vector<16x128xf32> to vector<16x128xbf16>
      %c0_19 = arith.constant 0 : index
      %c0_20 = arith.constant 0 : index
      %26 = vector.load %arg5[%c0_19, %c0_20] : memref<128x512xbf16, #tpu.memory_space<vmem>>, vector<128x512xbf16>
      %cst_21 = arith.constant dense<0.000000e+00> : vector<16x512xf32>
      %27 = tpu.matmul %25, %26, %cst_21 {dimension_numbers = #tpu.dot_dimension_numbers<[1], [0], [0], [1], [0, 0, 1, 1], [], []>} : vector<16x128xbf16>, vector<128x512xbf16>, vector<16x512xf32> -> vector<16x512xf32>
      %28 = arith.addf %24, %27 : vector<16x512xf32>
      %29 = vector.extract_strided_slice %28 {offsets = [0, 0], sizes = [16, 128], strides = [1, 1]} : vector<16x512xf32> to vector<16x128xf32>
      %30 = arith.negf %29 : vector<16x128xf32>
      %31 = math.exp %30 : vector<16x128xf32>
      %cst_22 = arith.constant 1.000000e+00 : f32
      %32 = vector.broadcast %cst_22 : f32 to vector<16x128xf32>
      %33 = arith.addf %32, %31 : vector<16x128xf32>
      %34 = arith.divf %32, %33 : vector<16x128xf32>
      %35 = vector.extract_strided_slice %28 {offsets = [0, 128], sizes = [16, 128], strides = [1, 1]} : vector<16x512xf32> to vector<16x128xf32>
      %36 = arith.negf %35 : vector<16x128xf32>
      %37 = math.exp %36 : vector<16x128xf32>
      %cst_23 = arith.constant 1.000000e+00 : f32
      %38 = vector.broadcast %cst_23 : f32 to vector<16x128xf32>
      %39 = arith.addf %38, %37 : vector<16x128xf32>
      %40 = arith.divf %38, %39 : vector<16x128xf32>
      %41 = vector.extract_strided_slice %28 {offsets = [0, 256], sizes = [16, 128], strides = [1, 1]} : vector<16x512xf32> to vector<16x128xf32>
      %42 = math.tanh %41 : vector<16x128xf32>
      %43 = vector.extract_strided_slice %28 {offsets = [0, 384], sizes = [16, 128], strides = [1, 1]} : vector<16x512xf32> to vector<16x128xf32>
      %44 = arith.negf %43 : vector<16x128xf32>
      %45 = math.exp %44 : vector<16x128xf32>
      %cst_24 = arith.constant 1.000000e+00 : f32
      %46 = vector.broadcast %cst_24 : f32 to vector<16x128xf32>
      %47 = arith.addf %46, %45 : vector<16x128xf32>
      %48 = arith.divf %46, %47 : vector<16x128xf32>
      %49 = arith.mulf %40, %22 : vector<16x128xf32>
      %50 = arith.mulf %34, %42 : vector<16x128xf32>
      %51 = arith.addf %49, %50 : vector<16x128xf32>
      %52 = math.tanh %51 : vector<16x128xf32>
      %53 = arith.mulf %48, %52 : vector<16x128xf32>
      %54 = arith.addi %0, %c0_i32_13 : i32
      %55 = vector.broadcast %54 : i32 to vector<16x1xi32>
      %56 = arith.cmpi sgt, %2, %55 : vector<16x1xi32>
      %57 = vector.shape_cast %56 : vector<16x1xi1> to vector<16x1xi1>
      %58 = vector.broadcast %57 : vector<16x1xi1> to vector<16x128xi1>
      %59 = arith.select %58, %53, %21 : vector<16x128xi1>, vector<16x128xf32>
      %c0_25 = arith.constant 0 : index
      %c0_26 = arith.constant 0 : index
      %60 = vector.load %arg9[%c0_25, %c0_26] : memref<16x128xf32, #tpu.memory_space<vmem>>, vector<16x128xf32>
      tpu.vector_store %arg9[%c0_25, %c0_26], %59 {strides = array<i32>} : memref<16x128xf32, #tpu.memory_space<vmem>>, vector<16x128xf32>,
      %61 = vector.shape_cast %56 : vector<16x1xi1> to vector<16x1xi1>
      %62 = vector.broadcast %61 : vector<16x1xi1> to vector<16x128xi1>
      %63 = arith.select %62, %51, %22 : vector<16x128xi1>, vector<16x128xf32>
      %c0_27 = arith.constant 0 : index
      %c0_28 = arith.constant 0 : index
      %64 = vector.load %arg10[%c0_27, %c0_28] : memref<16x128xf32, #tpu.memory_space<vmem>>, vector<16x128xf32>
      tpu.vector_store %arg10[%c0_27, %c0_28], %63 {strides = array<i32>} : memref<16x128xf32, #tpu.memory_space<vmem>>, vector<16x128xf32>,
      %cst_29 = arith.constant 0.000000e+00 : f32
      %65 = vector.shape_cast %56 : vector<16x1xi1> to vector<16x1xi1>
      %66 = vector.broadcast %65 : vector<16x1xi1> to vector<16x128xi1>
      %67 = vector.broadcast %cst_29 : f32 to vector<16x128xf32>
      %68 = arith.select %66, %53, %67 : vector<16x128xi1>, vector<16x128xf32>
      %69 = arith.truncf %68 : vector<16x128xf32> to vector<16x128xbf16>
      %70 = arith.index_cast %20 : i32 to index
      %c0_30 = arith.constant 0 : index
      %71 = vector.load %arg7[%70, %c0_30] : memref<128x128xbf16, #tpu.memory_space<vmem>>, vector<16x128xbf16>
      tpu.vector_store %arg7[%70, %c0_30], %69 {strides = array<i32>} : memref<128x128xbf16, #tpu.memory_space<vmem>>, vector<16x128xbf16>,
      %c1_i32 = arith.constant 1 : i32
      %c16_i32_31 = arith.constant 16 : i32
      %72 = arith.muli %c1_i32, %c16_i32_31 : i32
      %73 = tpu.assume_multiple %72, 16 : i32
      %c0_32 = arith.constant 0 : index
      %c0_33 = arith.constant 0 : index
      %74 = vector.load %arg9[%c0_32, %c0_33] : memref<16x128xf32, #tpu.memory_space<vmem>>, vector<16x128xf32>
      %c0_34 = arith.constant 0 : index
      %c0_35 = arith.constant 0 : index
      %75 = vector.load %arg10[%c0_34, %c0_35] : memref<16x128xf32, #tpu.memory_space<vmem>>, vector<16x128xf32>
      %76 = arith.index_cast %73 : i32 to index
      %c0_36 = arith.constant 0 : index
      %77 = vector.load %arg8[%76, %c0_36] : memref<128x512xf32, #tpu.memory_space<vmem>>, vector<16x512xf32>
      %78 = arith.truncf %74 : vector<16x128xf32> to vector<16x128xbf16>
      %c0_37 = arith.constant 0 : index
      %c0_38 = arith.constant 0 : index
      %79 = vector.load %arg5[%c0_37, %c0_38] : memref<128x512xbf16, #tpu.memory_space<vmem>>, vector<128x512xbf16>
      %cst_39 = arith.constant dense<0.000000e+00> : vector<16x512xf32>
      %80 = tpu.matmul %78, %79, %cst_39 {dimension_numbers = #tpu.dot_dimension_numbers<[1], [0], [0], [1], [0, 0, 1, 1], [], []>} : vector<16x128xbf16>, vector<128x512xbf16>, vector<16x512xf32> -> vector<16x512xf32>
      %81 = arith.addf %77, %80 : vector<16x512xf32>
      %82 = vector.extract_strided_slice %81 {offsets = [0, 0], sizes = [16, 128], strides = [1, 1]} : vector<16x512xf32> to vector<16x128xf32>
      %83 = arith.negf %82 : vector<16x128xf32>
      %84 = math.exp %83 : vector<16x128xf32>
      %cst_40 = arith.constant 1.000000e+00 : f32
      %85 = vector.broadcast %cst_40 : f32 to vector<16x128xf32>
      %86 = arith.addf %85, %84 : vector<16x128xf32>
      %87 = arith.divf %85, %86 : vector<16x128xf32>
      %88 = vector.extract_strided_slice %81 {offsets = [0, 128], sizes = [16, 128], strides = [1, 1]} : vector<16x512xf32> to vector<16x128xf32>
      %89 = arith.negf %88 : vector<16x128xf32>
      %90 = math.exp %89 : vector<16x128xf32>
      %cst_41 = arith.constant 1.000000e+00 : f32
      %91 = vector.broadcast %cst_41 : f32 to vector<16x128xf32>
      %92 = arith.addf %91, %90 : vector<16x128xf32>
      %93 = arith.divf %91, %92 : vector<16x128xf32>
      %94 = vector.extract_strided_slice %81 {offsets = [0, 256], sizes = [16, 128], strides = [1, 1]} : vector<16x512xf32> to vector<16x128xf32>
      %95 = math.tanh %94 : vector<16x128xf32>
      %96 = vector.extract_strided_slice %81 {offsets = [0, 384], sizes = [16, 128], strides = [1, 1]} : vector<16x512xf32> to vector<16x128xf32>
      %97 = arith.negf %96 : vector<16x128xf32>
      %98 = math.exp %97 : vector<16x128xf32>
      %cst_42 = arith.constant 1.000000e+00 : f32
      %99 = vector.broadcast %cst_42 : f32 to vector<16x128xf32>
      %100 = arith.addf %99, %98 : vector<16x128xf32>
      %101 = arith.divf %99, %100 : vector<16x128xf32>
      %102 = arith.mulf %93, %75 : vector<16x128xf32>
      %103 = arith.mulf %87, %95 : vector<16x128xf32>
      %104 = arith.addf %102, %103 : vector<16x128xf32>
      %105 = math.tanh %104 : vector<16x128xf32>
      %106 = arith.mulf %101, %105 : vector<16x128xf32>
      %107 = arith.addi %0, %c1_i32 : i32
      %108 = vector.broadcast %107 : i32 to vector<16x1xi32>
      %109 = arith.cmpi sgt, %2, %108 : vector<16x1xi32>
      %110 = vector.shape_cast %109 : vector<16x1xi1> to vector<16x1xi1>
      %111 = vector.broadcast %110 : vector<16x1xi1> to vector<16x128xi1>
      %112 = arith.select %111, %106, %74 : vector<16x128xi1>, vector<16x128xf32>
      %c0_43 = arith.constant 0 : index
      %c0_44 = arith.constant 0 : index
      %113 = vector.load %arg9[%c0_43, %c0_44] : memref<16x128xf32, #tpu.memory_space<vmem>>, vector<16x128xf32>
      tpu.vector_store %arg9[%c0_43, %c0_44], %112 {strides = array<i32>} : memref<16x128xf32, #tpu.memory_space<vmem>>, vector<16x128xf32>,
      %114 = vector.shape_cast %109 : vector<16x1xi1> to vector<16x1xi1>
      %115 = vector.broadcast %114 : vector<16x1xi1> to vector<16x128xi1>
      %116 = arith.select %115, %104, %75 : vector<16x128xi1>, vector<16x128xf32>
      %c0_45 = arith.constant 0 : index
      %c0_46 = arith.constant 0 : index
      %117 = vector.load %arg10[%c0_45, %c0_46] : memref<16x128xf32, #tpu.memory_space<vmem>>, vector<16x128xf32>
      tpu.vector_store %arg10[%c0_45, %c0_46], %116 {strides = array<i32>} : memref<16x128xf32, #tpu.memory_space<vmem>>, vector<16x128xf32>,
      %cst_47 = arith.constant 0.000000e+00 : f32
      %118 = vector.shape_cast %109 : vector<16x1xi1> to vector<16x1xi1>
      %119 = vector.broadcast %118 : vector<16x1xi1> to vector<16x128xi1>
      %120 = vector.broadcast %cst_47 : f32 to vector<16x128xf32>
      %121 = arith.select %119, %106, %120 : vector<16x128xi1>, vector<16x128xf32>
      %122 = arith.truncf %121 : vector<16x128xf32> to vector<16x128xbf16>
      %123 = arith.index_cast %73 : i32 to index
      %c0_48 = arith.constant 0 : index
      %124 = vector.load %arg7[%123, %c0_48] : memref<128x128xbf16, #tpu.memory_space<vmem>>, vector<16x128xbf16>
      tpu.vector_store %arg7[%123, %c0_48], %122 {strides = array<i32>} : memref<128x128xbf16, #tpu.memory_space<vmem>>, vector<16x128xbf16>,
      %c2_i32 = arith.constant 2 : i32
      %c16_i32_49 = arith.constant 16 : i32
      %125 = arith.muli %c2_i32, %c16_i32_49 : i32
      %126 = tpu.assume_multiple %125, 16 : i32
      %c0_50 = arith.constant 0 : index
      %c0_51 = arith.constant 0 : index
      %127 = vector.load %arg9[%c0_50, %c0_51] : memref<16x128xf32, #tpu.memory_space<vmem>>, vector<16x128xf32>
      %c0_52 = arith.constant 0 : index
      %c0_53 = arith.constant 0 : index
      %128 = vector.load %arg10[%c0_52, %c0_53] : memref<16x128xf32, #tpu.memory_space<vmem>>, vector<16x128xf32>
      %129 = arith.index_cast %126 : i32 to index
      %c0_54 = arith.constant 0 : index
      %130 = vector.load %arg8[%129, %c0_54] : memref<128x512xf32, #tpu.memory_space<vmem>>, vector<16x512xf32>
      %131 = arith.truncf %127 : vector<16x128xf32> to vector<16x128xbf16>
      %c0_55 = arith.constant 0 : index
      %c0_56 = arith.constant 0 : index
      %132 = vector.load %arg5[%c0_55, %c0_56] : memref<128x512xbf16, #tpu.memory_space<vmem>>, vector<128x512xbf16>
      %cst_57 = arith.constant dense<0.000000e+00> : vector<16x512xf32>
      %133 = tpu.matmul %131, %132, %cst_57 {dimension_numbers = #tpu.dot_dimension_numbers<[1], [0], [0], [1], [0, 0, 1, 1], [], []>} : vector<16x128xbf16>, vector<128x512xbf16>, vector<16x512xf32> -> vector<16x512xf32>
      %134 = arith.addf %130, %133 : vector<16x512xf32>
      %135 = vector.extract_strided_slice %134 {offsets = [0, 0], sizes = [16, 128], strides = [1, 1]} : vector<16x512xf32> to vector<16x128xf32>
      %136 = arith.negf %135 : vector<16x128xf32>
      %137 = math.exp %136 : vector<16x128xf32>
      %cst_58 = arith.constant 1.000000e+00 : f32
      %138 = vector.broadcast %cst_58 : f32 to vector<16x128xf32>
      %139 = arith.addf %138, %137 : vector<16x128xf32>
      %140 = arith.divf %138, %139 : vector<16x128xf32>
      %141 = vector.extract_strided_slice %134 {offsets = [0, 128], sizes = [16, 128], strides = [1, 1]} : vector<16x512xf32> to vector<16x128xf32>
      %142 = arith.negf %141 : vector<16x128xf32>
      %143 = math.exp %142 : vector<16x128xf32>
      %cst_59 = arith.constant 1.000000e+00 : f32
      %144 = vector.broadcast %cst_59 : f32 to vector<16x128xf32>
      %145 = arith.addf %144, %143 : vector<16x128xf32>
      %146 = arith.divf %144, %145 : vector<16x128xf32>
      %147 = vector.extract_strided_slice %134 {offsets = [0, 256], sizes = [16, 128], strides = [1, 1]} : vector<16x512xf32> to vector<16x128xf32>
      %148 = math.tanh %147 : vector<16x128xf32>
      %149 = vector.extract_strided_slice %134 {offsets = [0, 384], sizes = [16, 128], strides = [1, 1]} : vector<16x512xf32> to vector<16x128xf32>
      %150 = arith.negf %149 : vector<16x128xf32>
      %151 = math.exp %150 : vector<16x128xf32>
      %cst_60 = arith.constant 1.000000e+00 : f32
      %152 = vector.broadcast %cst_60 : f32 to vector<16x128xf32>
      %153 = arith.addf %152, %151 : vector<16x128xf32>
      %154 = arith.divf %152, %153 : vector<16x128xf32>
      %155 = arith.mulf %146, %128 : vector<16x128xf32>
      %156 = arith.mulf %140, %148 : vector<16x128xf32>
      %157 = arith.addf %155, %156 : vector<16x128xf32>
      %158 = math.tanh %157 : vector<16x128xf32>
      %159 = arith.mulf %154, %158 : vector<16x128xf32>
      %160 = arith.addi %0, %c2_i32 : i32
      %161 = vector.broadcast %160 : i32 to vector<16x1xi32>
      %162 = arith.cmpi sgt, %2, %161 : vector<16x1xi32>
      %163 = vector.shape_cast %162 : vector<16x1xi1> to vector<16x1xi1>
      %164 = vector.broadcast %163 : vector<16x1xi1> to vector<16x128xi1>
      %165 = arith.select %164, %159, %127 : vector<16x128xi1>, vector<16x128xf32>
      %c0_61 = arith.constant 0 : index
      %c0_62 = arith.constant 0 : index
      %166 = vector.load %arg9[%c0_61, %c0_62] : memref<16x128xf32, #tpu.memory_space<vmem>>, vector<16x128xf32>
      tpu.vector_store %arg9[%c0_61, %c0_62], %165 {strides = array<i32>} : memref<16x128xf32, #tpu.memory_space<vmem>>, vector<16x128xf32>,
      %167 = vector.shape_cast %162 : vector<16x1xi1> to vector<16x1xi1>
      %168 = vector.broadcast %167 : vector<16x1xi1> to vector<16x128xi1>
      %169 = arith.select %168, %157, %128 : vector<16x128xi1>, vector<16x128xf32>
      %c0_63 = arith.constant 0 : index
      %c0_64 = arith.constant 0 : index
      %170 = vector.load %arg10[%c0_63, %c0_64] : memref<16x128xf32, #tpu.memory_space<vmem>>, vector<16x128xf32>
      tpu.vector_store %arg10[%c0_63, %c0_64], %169 {strides = array<i32>} : memref<16x128xf32, #tpu.memory_space<vmem>>, vector<16x128xf32>,
      %cst_65 = arith.constant 0.000000e+00 : f32
      %171 = vector.shape_cast %162 : vector<16x1xi1> to vector<16x1xi1>
      %172 = vector.broadcast %171 : vector<16x1xi1> to vector<16x128xi1>
      %173 = vector.broadcast %cst_65 : f32 to vector<16x128xf32>
      %174 = arith.select %172, %159, %173 : vector<16x128xi1>, vector<16x128xf32>
      %175 = arith.truncf %174 : vector<16x128xf32> to vector<16x128xbf16>
      %176 = arith.index_cast %126 : i32 to index
      %c0_66 = arith.constant 0 : index
      %177 = vector.load %arg7[%176, %c0_66] : memref<128x128xbf16, #tpu.memory_space<vmem>>, vector<16x128xbf16>
      tpu.vector_store %arg7[%176, %c0_66], %175 {strides = array<i32>} : memref<128x128xbf16, #tpu.memory_space<vmem>>, vector<16x128xbf16>,
      %c3_i32 = arith.constant 3 : i32
      %c16_i32_67 = arith.constant 16 : i32
      %178 = arith.muli %c3_i32, %c16_i32_67 : i32
      %179 = tpu.assume_multiple %178, 16 : i32
      %c0_68 = arith.constant 0 : index
      %c0_69 = arith.constant 0 : index
      %180 = vector.load %arg9[%c0_68, %c0_69] : memref<16x128xf32, #tpu.memory_space<vmem>>, vector<16x128xf32>
      %c0_70 = arith.constant 0 : index
      %c0_71 = arith.constant 0 : index
      %181 = vector.load %arg10[%c0_70, %c0_71] : memref<16x128xf32, #tpu.memory_space<vmem>>, vector<16x128xf32>
      %182 = arith.index_cast %179 : i32 to index
      %c0_72 = arith.constant 0 : index
      %183 = vector.load %arg8[%182, %c0_72] : memref<128x512xf32, #tpu.memory_space<vmem>>, vector<16x512xf32>
      %184 = arith.truncf %180 : vector<16x128xf32> to vector<16x128xbf16>
      %c0_73 = arith.constant 0 : index
      %c0_74 = arith.constant 0 : index
      %185 = vector.load %arg5[%c0_73, %c0_74] : memref<128x512xbf16, #tpu.memory_space<vmem>>, vector<128x512xbf16>
      %cst_75 = arith.constant dense<0.000000e+00> : vector<16x512xf32>
      %186 = tpu.matmul %184, %185, %cst_75 {dimension_numbers = #tpu.dot_dimension_numbers<[1], [0], [0], [1], [0, 0, 1, 1], [], []>} : vector<16x128xbf16>, vector<128x512xbf16>, vector<16x512xf32> -> vector<16x512xf32>
      %187 = arith.addf %183, %186 : vector<16x512xf32>
      %188 = vector.extract_strided_slice %187 {offsets = [0, 0], sizes = [16, 128], strides = [1, 1]} : vector<16x512xf32> to vector<16x128xf32>
      %189 = arith.negf %188 : vector<16x128xf32>
      %190 = math.exp %189 : vector<16x128xf32>
      %cst_76 = arith.constant 1.000000e+00 : f32
      %191 = vector.broadcast %cst_76 : f32 to vector<16x128xf32>
      %192 = arith.addf %191, %190 : vector<16x128xf32>
      %193 = arith.divf %191, %192 : vector<16x128xf32>
      %194 = vector.extract_strided_slice %187 {offsets = [0, 128], sizes = [16, 128], strides = [1, 1]} : vector<16x512xf32> to vector<16x128xf32>
      %195 = arith.negf %194 : vector<16x128xf32>
      %196 = math.exp %195 : vector<16x128xf32>
      %cst_77 = arith.constant 1.000000e+00 : f32
      %197 = vector.broadcast %cst_77 : f32 to vector<16x128xf32>
      %198 = arith.addf %197, %196 : vector<16x128xf32>
      %199 = arith.divf %197, %198 : vector<16x128xf32>
      %200 = vector.extract_strided_slice %187 {offsets = [0, 256], sizes = [16, 128], strides = [1, 1]} : vector<16x512xf32> to vector<16x128xf32>
      %201 = math.tanh %200 : vector<16x128xf32>
      %202 = vector.extract_strided_slice %187 {offsets = [0, 384], sizes = [16, 128], strides = [1, 1]} : vector<16x512xf32> to vector<16x128xf32>
      %203 = arith.negf %202 : vector<16x128xf32>
      %204 = math.exp %203 : vector<16x128xf32>
      %cst_78 = arith.constant 1.000000e+00 : f32
      %205 = vector.broadcast %cst_78 : f32 to vector<16x128xf32>
      %206 = arith.addf %205, %204 : vector<16x128xf32>
      %207 = arith.divf %205, %206 : vector<16x128xf32>
      %208 = arith.mulf %199, %181 : vector<16x128xf32>
      %209 = arith.mulf %193, %201 : vector<16x128xf32>
      %210 = arith.addf %208, %209 : vector<16x128xf32>
      %211 = math.tanh %210 : vector<16x128xf32>
      %212 = arith.mulf %207, %211 : vector<16x128xf32>
      %213 = arith.addi %0, %c3_i32 : i32
      %214 = vector.broadcast %213 : i32 to vector<16x1xi32>
      %215 = arith.cmpi sgt, %2, %214 : vector<16x1xi32>
      %216 = vector.shape_cast %215 : vector<16x1xi1> to vector<16x1xi1>
      %217 = vector.broadcast %216 : vector<16x1xi1> to vector<16x128xi1>
      %218 = arith.select %217, %212, %180 : vector<16x128xi1>, vector<16x128xf32>
      %c0_79 = arith.constant 0 : index
      %c0_80 = arith.constant 0 : index
      %219 = vector.load %arg9[%c0_79, %c0_80] : memref<16x128xf32, #tpu.memory_space<vmem>>, vector<16x128xf32>
      tpu.vector_store %arg9[%c0_79, %c0_80], %218 {strides = array<i32>} : memref<16x128xf32, #tpu.memory_space<vmem>>, vector<16x128xf32>,
      %220 = vector.shape_cast %215 : vector<16x1xi1> to vector<16x1xi1>
      %221 = vector.broadcast %220 : vector<16x1xi1> to vector<16x128xi1>
      %222 = arith.select %221, %210, %181 : vector<16x128xi1>, vector<16x128xf32>
      %c0_81 = arith.constant 0 : index
      %c0_82 = arith.constant 0 : index
      %223 = vector.load %arg10[%c0_81, %c0_82] : memref<16x128xf32, #tpu.memory_space<vmem>>, vector<16x128xf32>
      tpu.vector_store %arg10[%c0_81, %c0_82], %222 {strides = array<i32>} : memref<16x128xf32, #tpu.memory_space<vmem>>, vector<16x128xf32>,
      %cst_83 = arith.constant 0.000000e+00 : f32
      %224 = vector.shape_cast %215 : vector<16x1xi1> to vector<16x1xi1>
      %225 = vector.broadcast %224 : vector<16x1xi1> to vector<16x128xi1>
      %226 = vector.broadcast %cst_83 : f32 to vector<16x128xf32>
      %227 = arith.select %225, %212, %226 : vector<16x128xi1>, vector<16x128xf32>
      %228 = arith.truncf %227 : vector<16x128xf32> to vector<16x128xbf16>
      %229 = arith.index_cast %179 : i32 to index
      %c0_84 = arith.constant 0 : index
      %230 = vector.load %arg7[%229, %c0_84] : memref<128x128xbf16, #tpu.memory_space<vmem>>, vector<16x128xbf16>
      tpu.vector_store %arg7[%229, %c0_84], %228 {strides = array<i32>} : memref<128x128xbf16, #tpu.memory_space<vmem>>, vector<16x128xbf16>,
      %c4_i32 = arith.constant 4 : i32
      %c16_i32_85 = arith.constant 16 : i32
      %231 = arith.muli %c4_i32, %c16_i32_85 : i32
      %232 = tpu.assume_multiple %231, 16 : i32
      %c0_86 = arith.constant 0 : index
      %c0_87 = arith.constant 0 : index
      %233 = vector.load %arg9[%c0_86, %c0_87] : memref<16x128xf32, #tpu.memory_space<vmem>>, vector<16x128xf32>
      %c0_88 = arith.constant 0 : index
      %c0_89 = arith.constant 0 : index
      %234 = vector.load %arg10[%c0_88, %c0_89] : memref<16x128xf32, #tpu.memory_space<vmem>>, vector<16x128xf32>
      %235 = arith.index_cast %232 : i32 to index
      %c0_90 = arith.constant 0 : index
      %236 = vector.load %arg8[%235, %c0_90] : memref<128x512xf32, #tpu.memory_space<vmem>>, vector<16x512xf32>
      %237 = arith.truncf %233 : vector<16x128xf32> to vector<16x128xbf16>
      %c0_91 = arith.constant 0 : index
      %c0_92 = arith.constant 0 : index
      %238 = vector.load %arg5[%c0_91, %c0_92] : memref<128x512xbf16, #tpu.memory_space<vmem>>, vector<128x512xbf16>
      %cst_93 = arith.constant dense<0.000000e+00> : vector<16x512xf32>
      %239 = tpu.matmul %237, %238, %cst_93 {dimension_numbers = #tpu.dot_dimension_numbers<[1], [0], [0], [1], [0, 0, 1, 1], [], []>} : vector<16x128xbf16>, vector<128x512xbf16>, vector<16x512xf32> -> vector<16x512xf32>
      %240 = arith.addf %236, %239 : vector<16x512xf32>
      %241 = vector.extract_strided_slice %240 {offsets = [0, 0], sizes = [16, 128], strides = [1, 1]} : vector<16x512xf32> to vector<16x128xf32>
      %242 = arith.negf %241 : vector<16x128xf32>
      %243 = math.exp %242 : vector<16x128xf32>
      %cst_94 = arith.constant 1.000000e+00 : f32
      %244 = vector.broadcast %cst_94 : f32 to vector<16x128xf32>
      %245 = arith.addf %244, %243 : vector<16x128xf32>
      %246 = arith.divf %244, %245 : vector<16x128xf32>
      %247 = vector.extract_strided_slice %240 {offsets = [0, 128], sizes = [16, 128], strides = [1, 1]} : vector<16x512xf32> to vector<16x128xf32>
      %248 = arith.negf %247 : vector<16x128xf32>
      %249 = math.exp %248 : vector<16x128xf32>
      %cst_95 = arith.constant 1.000000e+00 : f32
      %250 = vector.broadcast %cst_95 : f32 to vector<16x128xf32>
      %251 = arith.addf %250, %249 : vector<16x128xf32>
      %252 = arith.divf %250, %251 : vector<16x128xf32>
      %253 = vector.extract_strided_slice %240 {offsets = [0, 256], sizes = [16, 128], strides = [1, 1]} : vector<16x512xf32> to vector<16x128xf32>
      %254 = math.tanh %253 : vector<16x128xf32>
      %255 = vector.extract_strided_slice %240 {offsets = [0, 384], sizes = [16, 128], strides = [1, 1]} : vector<16x512xf32> to vector<16x128xf32>
      %256 = arith.negf %255 : vector<16x128xf32>
      %257 = math.exp %256 : vector<16x128xf32>
      %cst_96 = arith.constant 1.000000e+00 : f32
      %258 = vector.broadcast %cst_96 : f32 to vector<16x128xf32>
      %259 = arith.addf %258, %257 : vector<16x128xf32>
      %260 = arith.divf %258, %259 : vector<16x128xf32>
      %261 = arith.mulf %252, %234 : vector<16x128xf32>
      %262 = arith.mulf %246, %254 : vector<16x128xf32>
      %263 = arith.addf %261, %262 : vector<16x128xf32>
      %264 = math.tanh %263 : vector<16x128xf32>
      %265 = arith.mulf %260, %264 : vector<16x128xf32>
      %266 = arith.addi %0, %c4_i32 : i32
      %267 = vector.broadcast %266 : i32 to vector<16x1xi32>
      %268 = arith.cmpi sgt, %2, %267 : vector<16x1xi32>
      %269 = vector.shape_cast %268 : vector<16x1xi1> to vector<16x1xi1>
      %270 = vector.broadcast %269 : vector<16x1xi1> to vector<16x128xi1>
      %271 = arith.select %270, %265, %233 : vector<16x128xi1>, vector<16x128xf32>
      %c0_97 = arith.constant 0 : index
      %c0_98 = arith.constant 0 : index
      %272 = vector.load %arg9[%c0_97, %c0_98] : memref<16x128xf32, #tpu.memory_space<vmem>>, vector<16x128xf32>
      tpu.vector_store %arg9[%c0_97, %c0_98], %271 {strides = array<i32>} : memref<16x128xf32, #tpu.memory_space<vmem>>, vector<16x128xf32>,
      %273 = vector.shape_cast %268 : vector<16x1xi1> to vector<16x1xi1>
      %274 = vector.broadcast %273 : vector<16x1xi1> to vector<16x128xi1>
      %275 = arith.select %274, %263, %234 : vector<16x128xi1>, vector<16x128xf32>
      %c0_99 = arith.constant 0 : index
      %c0_100 = arith.constant 0 : index
      %276 = vector.load %arg10[%c0_99, %c0_100] : memref<16x128xf32, #tpu.memory_space<vmem>>, vector<16x128xf32>
      tpu.vector_store %arg10[%c0_99, %c0_100], %275 {strides = array<i32>} : memref<16x128xf32, #tpu.memory_space<vmem>>, vector<16x128xf32>,
      %cst_101 = arith.constant 0.000000e+00 : f32
      %277 = vector.shape_cast %268 : vector<16x1xi1> to vector<16x1xi1>
      %278 = vector.broadcast %277 : vector<16x1xi1> to vector<16x128xi1>
      %279 = vector.broadcast %cst_101 : f32 to vector<16x128xf32>
      %280 = arith.select %278, %265, %279 : vector<16x128xi1>, vector<16x128xf32>
      %281 = arith.truncf %280 : vector<16x128xf32> to vector<16x128xbf16>
      %282 = arith.index_cast %232 : i32 to index
      %c0_102 = arith.constant 0 : index
      %283 = vector.load %arg7[%282, %c0_102] : memref<128x128xbf16, #tpu.memory_space<vmem>>, vector<16x128xbf16>
      tpu.vector_store %arg7[%282, %c0_102], %281 {strides = array<i32>} : memref<128x128xbf16, #tpu.memory_space<vmem>>, vector<16x128xbf16>,
      %c5_i32 = arith.constant 5 : i32
      %c16_i32_103 = arith.constant 16 : i32
      %284 = arith.muli %c5_i32, %c16_i32_103 : i32
      %285 = tpu.assume_multiple %284, 16 : i32
      %c0_104 = arith.constant 0 : index
      %c0_105 = arith.constant 0 : index
      %286 = vector.load %arg9[%c0_104, %c0_105] : memref<16x128xf32, #tpu.memory_space<vmem>>, vector<16x128xf32>
      %c0_106 = arith.constant 0 : index
      %c0_107 = arith.constant 0 : index
      %287 = vector.load %arg10[%c0_106, %c0_107] : memref<16x128xf32, #tpu.memory_space<vmem>>, vector<16x128xf32>
      %288 = arith.index_cast %285 : i32 to index
      %c0_108 = arith.constant 0 : index
      %289 = vector.load %arg8[%288, %c0_108] : memref<128x512xf32, #tpu.memory_space<vmem>>, vector<16x512xf32>
      %290 = arith.truncf %286 : vector<16x128xf32> to vector<16x128xbf16>
      %c0_109 = arith.constant 0 : index
      %c0_110 = arith.constant 0 : index
      %291 = vector.load %arg5[%c0_109, %c0_110] : memref<128x512xbf16, #tpu.memory_space<vmem>>, vector<128x512xbf16>
      %cst_111 = arith.constant dense<0.000000e+00> : vector<16x512xf32>
      %292 = tpu.matmul %290, %291, %cst_111 {dimension_numbers = #tpu.dot_dimension_numbers<[1], [0], [0], [1], [0, 0, 1, 1], [], []>} : vector<16x128xbf16>, vector<128x512xbf16>, vector<16x512xf32> -> vector<16x512xf32>
      %293 = arith.addf %289, %292 : vector<16x512xf32>
      %294 = vector.extract_strided_slice %293 {offsets = [0, 0], sizes = [16, 128], strides = [1, 1]} : vector<16x512xf32> to vector<16x128xf32>
      %295 = arith.negf %294 : vector<16x128xf32>
      %296 = math.exp %295 : vector<16x128xf32>
      %cst_112 = arith.constant 1.000000e+00 : f32
      %297 = vector.broadcast %cst_112 : f32 to vector<16x128xf32>
      %298 = arith.addf %297, %296 : vector<16x128xf32>
      %299 = arith.divf %297, %298 : vector<16x128xf32>
      %300 = vector.extract_strided_slice %293 {offsets = [0, 128], sizes = [16, 128], strides = [1, 1]} : vector<16x512xf32> to vector<16x128xf32>
      %301 = arith.negf %300 : vector<16x128xf32>
      %302 = math.exp %301 : vector<16x128xf32>
      %cst_113 = arith.constant 1.000000e+00 : f32
      %303 = vector.broadcast %cst_113 : f32 to vector<16x128xf32>
      %304 = arith.addf %303, %302 : vector<16x128xf32>
      %305 = arith.divf %303, %304 : vector<16x128xf32>
      %306 = vector.extract_strided_slice %293 {offsets = [0, 256], sizes = [16, 128], strides = [1, 1]} : vector<16x512xf32> to vector<16x128xf32>
      %307 = math.tanh %306 : vector<16x128xf32>
      %308 = vector.extract_strided_slice %293 {offsets = [0, 384], sizes = [16, 128], strides = [1, 1]} : vector<16x512xf32> to vector<16x128xf32>
      %309 = arith.negf %308 : vector<16x128xf32>
      %310 = math.exp %309 : vector<16x128xf32>
      %cst_114 = arith.constant 1.000000e+00 : f32
      %311 = vector.broadcast %cst_114 : f32 to vector<16x128xf32>
      %312 = arith.addf %311, %310 : vector<16x128xf32>
      %313 = arith.divf %311, %312 : vector<16x128xf32>
      %314 = arith.mulf %305, %287 : vector<16x128xf32>
      %315 = arith.mulf %299, %307 : vector<16x128xf32>
      %316 = arith.addf %314, %315 : vector<16x128xf32>
      %317 = math.tanh %316 : vector<16x128xf32>
      %318 = arith.mulf %313, %317 : vector<16x128xf32>
      %319 = arith.addi %0, %c5_i32 : i32
      %320 = vector.broadcast %319 : i32 to vector<16x1xi32>
      %321 = arith.cmpi sgt, %2, %320 : vector<16x1xi32>
      %322 = vector.shape_cast %321 : vector<16x1xi1> to vector<16x1xi1>
      %323 = vector.broadcast %322 : vector<16x1xi1> to vector<16x128xi1>
      %324 = arith.select %323, %318, %286 : vector<16x128xi1>, vector<16x128xf32>
      %c0_115 = arith.constant 0 : index
      %c0_116 = arith.constant 0 : index
      %325 = vector.load %arg9[%c0_115, %c0_116] : memref<16x128xf32, #tpu.memory_space<vmem>>, vector<16x128xf32>
      tpu.vector_store %arg9[%c0_115, %c0_116], %324 {strides = array<i32>} : memref<16x128xf32, #tpu.memory_space<vmem>>, vector<16x128xf32>,
      %326 = vector.shape_cast %321 : vector<16x1xi1> to vector<16x1xi1>
      %327 = vector.broadcast %326 : vector<16x1xi1> to vector<16x128xi1>
      %328 = arith.select %327, %316, %287 : vector<16x128xi1>, vector<16x128xf32>
      %c0_117 = arith.constant 0 : index
      %c0_118 = arith.constant 0 : index
      %329 = vector.load %arg10[%c0_117, %c0_118] : memref<16x128xf32, #tpu.memory_space<vmem>>, vector<16x128xf32>
      tpu.vector_store %arg10[%c0_117, %c0_118], %328 {strides = array<i32>} : memref<16x128xf32, #tpu.memory_space<vmem>>, vector<16x128xf32>,
      %cst_119 = arith.constant 0.000000e+00 : f32
      %330 = vector.shape_cast %321 : vector<16x1xi1> to vector<16x1xi1>
      %331 = vector.broadcast %330 : vector<16x1xi1> to vector<16x128xi1>
      %332 = vector.broadcast %cst_119 : f32 to vector<16x128xf32>
      %333 = arith.select %331, %318, %332 : vector<16x128xi1>, vector<16x128xf32>
      %334 = arith.truncf %333 : vector<16x128xf32> to vector<16x128xbf16>
      %335 = arith.index_cast %285 : i32 to index
      %c0_120 = arith.constant 0 : index
      %336 = vector.load %arg7[%335, %c0_120] : memref<128x128xbf16, #tpu.memory_space<vmem>>, vector<16x128xbf16>
      tpu.vector_store %arg7[%335, %c0_120], %334 {strides = array<i32>} : memref<128x128xbf16, #tpu.memory_space<vmem>>, vector<16x128xbf16>,
      %c6_i32 = arith.constant 6 : i32
      %c16_i32_121 = arith.constant 16 : i32
      %337 = arith.muli %c6_i32, %c16_i32_121 : i32
      %338 = tpu.assume_multiple %337, 16 : i32
      %c0_122 = arith.constant 0 : index
      %c0_123 = arith.constant 0 : index
      %339 = vector.load %arg9[%c0_122, %c0_123] : memref<16x128xf32, #tpu.memory_space<vmem>>, vector<16x128xf32>
      %c0_124 = arith.constant 0 : index
      %c0_125 = arith.constant 0 : index
      %340 = vector.load %arg10[%c0_124, %c0_125] : memref<16x128xf32, #tpu.memory_space<vmem>>, vector<16x128xf32>
      %341 = arith.index_cast %338 : i32 to index
      %c0_126 = arith.constant 0 : index
      %342 = vector.load %arg8[%341, %c0_126] : memref<128x512xf32, #tpu.memory_space<vmem>>, vector<16x512xf32>
      %343 = arith.truncf %339 : vector<16x128xf32> to vector<16x128xbf16>
      %c0_127 = arith.constant 0 : index
      %c0_128 = arith.constant 0 : index
      %344 = vector.load %arg5[%c0_127, %c0_128] : memref<128x512xbf16, #tpu.memory_space<vmem>>, vector<128x512xbf16>
      %cst_129 = arith.constant dense<0.000000e+00> : vector<16x512xf32>
      %345 = tpu.matmul %343, %344, %cst_129 {dimension_numbers = #tpu.dot_dimension_numbers<[1], [0], [0], [1], [0, 0, 1, 1], [], []>} : vector<16x128xbf16>, vector<128x512xbf16>, vector<16x512xf32> -> vector<16x512xf32>
      %346 = arith.addf %342, %345 : vector<16x512xf32>
      %347 = vector.extract_strided_slice %346 {offsets = [0, 0], sizes = [16, 128], strides = [1, 1]} : vector<16x512xf32> to vector<16x128xf32>
      %348 = arith.negf %347 : vector<16x128xf32>
      %349 = math.exp %348 : vector<16x128xf32>
      %cst_130 = arith.constant 1.000000e+00 : f32
      %350 = vector.broadcast %cst_130 : f32 to vector<16x128xf32>
      %351 = arith.addf %350, %349 : vector<16x128xf32>
      %352 = arith.divf %350, %351 : vector<16x128xf32>
      %353 = vector.extract_strided_slice %346 {offsets = [0, 128], sizes = [16, 128], strides = [1, 1]} : vector<16x512xf32> to vector<16x128xf32>
      %354 = arith.negf %353 : vector<16x128xf32>
      %355 = math.exp %354 : vector<16x128xf32>
      %cst_131 = arith.constant 1.000000e+00 : f32
      %356 = vector.broadcast %cst_131 : f32 to vector<16x128xf32>
      %357 = arith.addf %356, %355 : vector<16x128xf32>
      %358 = arith.divf %356, %357 : vector<16x128xf32>
      %359 = vector.extract_strided_slice %346 {offsets = [0, 256], sizes = [16, 128], strides = [1, 1]} : vector<16x512xf32> to vector<16x128xf32>
      %360 = math.tanh %359 : vector<16x128xf32>
      %361 = vector.extract_strided_slice %346 {offsets = [0, 384], sizes = [16, 128], strides = [1, 1]} : vector<16x512xf32> to vector<16x128xf32>
      %362 = arith.negf %361 : vector<16x128xf32>
      %363 = math.exp %362 : vector<16x128xf32>
      %cst_132 = arith.constant 1.000000e+00 : f32
      %364 = vector.broadcast %cst_132 : f32 to vector<16x128xf32>
      %365 = arith.addf %364, %363 : vector<16x128xf32>
      %366 = arith.divf %364, %365 : vector<16x128xf32>
      %367 = arith.mulf %358, %340 : vector<16x128xf32>
      %368 = arith.mulf %352, %360 : vector<16x128xf32>
      %369 = arith.addf %367, %368 : vector<16x128xf32>
      %370 = math.tanh %369 : vector<16x128xf32>
      %371 = arith.mulf %366, %370 : vector<16x128xf32>
      %372 = arith.addi %0, %c6_i32 : i32
      %373 = vector.broadcast %372 : i32 to vector<16x1xi32>
      %374 = arith.cmpi sgt, %2, %373 : vector<16x1xi32>
      %375 = vector.shape_cast %374 : vector<16x1xi1> to vector<16x1xi1>
      %376 = vector.broadcast %375 : vector<16x1xi1> to vector<16x128xi1>
      %377 = arith.select %376, %371, %339 : vector<16x128xi1>, vector<16x128xf32>
      %c0_133 = arith.constant 0 : index
      %c0_134 = arith.constant 0 : index
      %378 = vector.load %arg9[%c0_133, %c0_134] : memref<16x128xf32, #tpu.memory_space<vmem>>, vector<16x128xf32>
      tpu.vector_store %arg9[%c0_133, %c0_134], %377 {strides = array<i32>} : memref<16x128xf32, #tpu.memory_space<vmem>>, vector<16x128xf32>,
      %379 = vector.shape_cast %374 : vector<16x1xi1> to vector<16x1xi1>
      %380 = vector.broadcast %379 : vector<16x1xi1> to vector<16x128xi1>
      %381 = arith.select %380, %369, %340 : vector<16x128xi1>, vector<16x128xf32>
      %c0_135 = arith.constant 0 : index
      %c0_136 = arith.constant 0 : index
      %382 = vector.load %arg10[%c0_135, %c0_136] : memref<16x128xf32, #tpu.memory_space<vmem>>, vector<16x128xf32>
      tpu.vector_store %arg10[%c0_135, %c0_136], %381 {strides = array<i32>} : memref<16x128xf32, #tpu.memory_space<vmem>>, vector<16x128xf32>,
      %cst_137 = arith.constant 0.000000e+00 : f32
      %383 = vector.shape_cast %374 : vector<16x1xi1> to vector<16x1xi1>
      %384 = vector.broadcast %383 : vector<16x1xi1> to vector<16x128xi1>
      %385 = vector.broadcast %cst_137 : f32 to vector<16x128xf32>
      %386 = arith.select %384, %371, %385 : vector<16x128xi1>, vector<16x128xf32>
      %387 = arith.truncf %386 : vector<16x128xf32> to vector<16x128xbf16>
      %388 = arith.index_cast %338 : i32 to index
      %c0_138 = arith.constant 0 : index
      %389 = vector.load %arg7[%388, %c0_138] : memref<128x128xbf16, #tpu.memory_space<vmem>>, vector<16x128xbf16>
      tpu.vector_store %arg7[%388, %c0_138], %387 {strides = array<i32>} : memref<128x128xbf16, #tpu.memory_space<vmem>>, vector<16x128xbf16>,
      %c7_i32 = arith.constant 7 : i32
      %c16_i32_139 = arith.constant 16 : i32
      %390 = arith.muli %c7_i32, %c16_i32_139 : i32
      %391 = tpu.assume_multiple %390, 16 : i32
      %c0_140 = arith.constant 0 : index
      %c0_141 = arith.constant 0 : index
      %392 = vector.load %arg9[%c0_140, %c0_141] : memref<16x128xf32, #tpu.memory_space<vmem>>, vector<16x128xf32>
      %c0_142 = arith.constant 0 : index
      %c0_143 = arith.constant 0 : index
      %393 = vector.load %arg10[%c0_142, %c0_143] : memref<16x128xf32, #tpu.memory_space<vmem>>, vector<16x128xf32>
      %394 = arith.index_cast %391 : i32 to index
      %c0_144 = arith.constant 0 : index
      %395 = vector.load %arg8[%394, %c0_144] : memref<128x512xf32, #tpu.memory_space<vmem>>, vector<16x512xf32>
      %396 = arith.truncf %392 : vector<16x128xf32> to vector<16x128xbf16>
      %c0_145 = arith.constant 0 : index
      %c0_146 = arith.constant 0 : index
      %397 = vector.load %arg5[%c0_145, %c0_146] : memref<128x512xbf16, #tpu.memory_space<vmem>>, vector<128x512xbf16>
      %cst_147 = arith.constant dense<0.000000e+00> : vector<16x512xf32>
      %398 = tpu.matmul %396, %397, %cst_147 {dimension_numbers = #tpu.dot_dimension_numbers<[1], [0], [0], [1], [0, 0, 1, 1], [], []>} : vector<16x128xbf16>, vector<128x512xbf16>, vector<16x512xf32> -> vector<16x512xf32>
      %399 = arith.addf %395, %398 : vector<16x512xf32>
      %400 = vector.extract_strided_slice %399 {offsets = [0, 0], sizes = [16, 128], strides = [1, 1]} : vector<16x512xf32> to vector<16x128xf32>
      %401 = arith.negf %400 : vector<16x128xf32>
      %402 = math.exp %401 : vector<16x128xf32>
      %cst_148 = arith.constant 1.000000e+00 : f32
      %403 = vector.broadcast %cst_148 : f32 to vector<16x128xf32>
      %404 = arith.addf %403, %402 : vector<16x128xf32>
      %405 = arith.divf %403, %404 : vector<16x128xf32>
      %406 = vector.extract_strided_slice %399 {offsets = [0, 128], sizes = [16, 128], strides = [1, 1]} : vector<16x512xf32> to vector<16x128xf32>
      %407 = arith.negf %406 : vector<16x128xf32>
      %408 = math.exp %407 : vector<16x128xf32>
      %cst_149 = arith.constant 1.000000e+00 : f32
      %409 = vector.broadcast %cst_149 : f32 to vector<16x128xf32>
      %410 = arith.addf %409, %408 : vector<16x128xf32>
      %411 = arith.divf %409, %410 : vector<16x128xf32>
      %412 = vector.extract_strided_slice %399 {offsets = [0, 256], sizes = [16, 128], strides = [1, 1]} : vector<16x512xf32> to vector<16x128xf32>
      %413 = math.tanh %412 : vector<16x128xf32>
      %414 = vector.extract_strided_slice %399 {offsets = [0, 384], sizes = [16, 128], strides = [1, 1]} : vector<16x512xf32> to vector<16x128xf32>
      %415 = arith.negf %414 : vector<16x128xf32>
      %416 = math.exp %415 : vector<16x128xf32>
      %cst_150 = arith.constant 1.000000e+00 : f32
      %417 = vector.broadcast %cst_150 : f32 to vector<16x128xf32>
      %418 = arith.addf %417, %416 : vector<16x128xf32>
      %419 = arith.divf %417, %418 : vector<16x128xf32>
      %420 = arith.mulf %411, %393 : vector<16x128xf32>
      %421 = arith.mulf %405, %413 : vector<16x128xf32>
      %422 = arith.addf %420, %421 : vector<16x128xf32>
      %423 = math.tanh %422 : vector<16x128xf32>
      %424 = arith.mulf %419, %423 : vector<16x128xf32>
      %425 = arith.addi %0, %c7_i32 : i32
      %426 = vector.broadcast %425 : i32 to vector<16x1xi32>
      %427 = arith.cmpi sgt, %2, %426 : vector<16x1xi32>
      %428 = vector.shape_cast %427 : vector<16x1xi1> to vector<16x1xi1>
      %429 = vector.broadcast %428 : vector<16x1xi1> to vector<16x128xi1>
      %430 = arith.select %429, %424, %392 : vector<16x128xi1>, vector<16x128xf32>
      %c0_151 = arith.constant 0 : index
      %c0_152 = arith.constant 0 : index
      %431 = vector.load %arg9[%c0_151, %c0_152] : memref<16x128xf32, #tpu.memory_space<vmem>>, vector<16x128xf32>
      tpu.vector_store %arg9[%c0_151, %c0_152], %430 {strides = array<i32>} : memref<16x128xf32, #tpu.memory_space<vmem>>, vector<16x128xf32>,
      %432 = vector.shape_cast %427 : vector<16x1xi1> to vector<16x1xi1>
      %433 = vector.broadcast %432 : vector<16x1xi1> to vector<16x128xi1>
      %434 = arith.select %433, %422, %393 : vector<16x128xi1>, vector<16x128xf32>
      %c0_153 = arith.constant 0 : index
      %c0_154 = arith.constant 0 : index
      %435 = vector.load %arg10[%c0_153, %c0_154] : memref<16x128xf32, #tpu.memory_space<vmem>>, vector<16x128xf32>
      tpu.vector_store %arg10[%c0_153, %c0_154], %434 {strides = array<i32>} : memref<16x128xf32, #tpu.memory_space<vmem>>, vector<16x128xf32>,
      %cst_155 = arith.constant 0.000000e+00 : f32
      %436 = vector.shape_cast %427 : vector<16x1xi1> to vector<16x1xi1>
      %437 = vector.broadcast %436 : vector<16x1xi1> to vector<16x128xi1>
      %438 = vector.broadcast %cst_155 : f32 to vector<16x128xf32>
      %439 = arith.select %437, %424, %438 : vector<16x128xi1>, vector<16x128xf32>
      %440 = arith.truncf %439 : vector<16x128xf32> to vector<16x128xbf16>
      %441 = arith.index_cast %391 : i32 to index
      %c0_156 = arith.constant 0 : index
      %442 = vector.load %arg7[%441, %c0_156] : memref<128x128xbf16, #tpu.memory_space<vmem>>, vector<16x128xbf16>
      tpu.vector_store %arg7[%441, %c0_156], %440 {strides = array<i32>} : memref<128x128xbf16, #tpu.memory_space<vmem>>, vector<16x128xbf16>,
      %c8_i32_157 = arith.constant 8 : i32
    } else {
    }
    return
  }
  func.func @transform_0(%arg0: i32, %arg1: memref<1xi32, #tpu.memory_space<smem>>) -> (i32, i32) {
    %c0_i32 = arith.constant 0 : i32
    %c0_i32_0 = arith.constant 0 : i32
    %c0_i32_1 = arith.constant 0 : i32
    return %c0_i32, %c0_i32_0 : i32, i32
  }
  func.func @transform_1(%arg0: i32, %arg1: memref<1xi32, #tpu.memory_space<smem>>) -> (i32, i32) {
    %c0_i32 = arith.constant 0 : i32
    %c0_i32_0 = arith.constant 0 : i32
    return %arg0, %c0_i32 : i32, i32
  }
  func.func @transform_2(%arg0: i32, %arg1: memref<1xi32, #tpu.memory_space<smem>>) -> (i32, i32) {
    %c0_i32 = arith.constant 0 : i32
    %c0_i32_0 = arith.constant 0 : i32
    %c0_i32_1 = arith.constant 0 : i32
    return %c0_i32, %c0_i32_0 : i32, i32
  }
  func.func @transform_3(%arg0: i32, %arg1: memref<1xi32, #tpu.memory_space<smem>>) -> (i32, i32) {
    %c0_i32 = arith.constant 0 : i32
    %c0_i32_0 = arith.constant 0 : i32
    %c0_i32_1 = arith.constant 0 : i32
    return %c0_i32, %c0_i32_0 : i32, i32
  }
  func.func @transform_4(%arg0: i32, %arg1: memref<1xi32, #tpu.memory_space<smem>>) -> (i32, i32) {
    %c0_i32 = arith.constant 0 : i32
    %c0_i32_0 = arith.constant 0 : i32
    %c0_i32_1 = arith.constant 0 : i32
    return %c0_i32, %c0_i32_0 : i32, i32
  }
  func.func @transform_5(%arg0: i32, %arg1: memref<1xi32, #tpu.memory_space<smem>>) -> (i32, i32) {
    %c0_i32 = arith.constant 0 : i32
    %c0_i32_0 = arith.constant 0 : i32
    return %arg0, %c0_i32 : i32, i32
  }
}

</mosaic_0001>

<llo_original>
// kernel: tpu_custom_call.1
$region0: #{tpu_custom_call.1}
  #allocation0 [shape = 'u32[]', space=smem, size = 0x4, offset = 0x4, fixed_abs, tag = 'smem constant byte address 0x4 - core index']
  #allocation1 [shape = 'u32[144,128]{1,0:T(1,128)}', space=vmem, size = 0x12000, scoped, tag = 'internal scratch']
  #allocation2 [shape = 'f32[128,512]{1,0:T(8,128)}', space=vmem, size = 0x40000, scoped, tag = 'scratch operand']
  #allocation3 [shape = 'f32[16,128]{1,0:T(8,128)}', space=vmem, size = 0x2000, scoped, tag = 'scratch operand']
  #allocation4 [shape = 'f32[16,128]{1,0:T(8,128)}', space=vmem, size = 0x2000, scoped, tag = 'scratch operand']
  #allocation5 [shape = 's32[1]{0}', space=sflag, size = 0x4, scoped, tag = 'scoped memory for tpu_custom_call.1']
  #allocation6 [shape = 's32[1]{0:T(128)S(6)}', space=smem, size = 0x200, scoped, tag = 'prefetched SMEM operand 0']
  %s0 = inlined_call_operand.<no memory space> [shape: s32[1], index: 0, kind: input, shape index: {}]
  %s1 = inlined_call_operand.vmem [shape: s32[16,1], index: 1, kind: input, shape index: {}]
  %s2 = inlined_call_operand.hbm [shape: bf16[128,128], index: 2, kind: input, shape index: {}]
  %s3 = inlined_call_operand.hbm [shape: bf16[128,512], index: 3, kind: input, shape index: {}]
  %s4 = inlined_call_operand.hbm [shape: bf16[128,512], index: 4, kind: input, shape index: {}]
  %s5 = inlined_call_operand.vmem [shape: f32[1,512], index: 5, kind: input, shape index: {}]
  %s6 = inlined_call_operand.hbm [shape: bf16[128,128], index: 6, kind: output, shape index: {}]
  %s7 = sld [smem:[#allocation0]]
  $region54: #{tpu_custom_call.1} parent=0
    _
  %s9 = ssub.s32 1, %s7
  %s10 = scalar_select 0, %s9, %s7
  %11 = sst [smem:[#allocation6]] %s0
  $region1: #{tpu_custom_call.1} parent=0
    #allocation7 [shape = 'u8[32768]{0}', space=vmem, size = 0x8000, scoped, tag = 'input window, operand 2, single buffered']
    #allocation8 [shape = 's32[1]{0}', space=sflag, size = 0x4, scoped, tag = 'scoped memory for tpu_custom_call.1']
    #allocation9 [shape = 's32[1]{0}', space=sflag, size = 0x4, scoped, tag = 'scoped memory for tpu_custom_call.1']
    #allocation10 [shape = 'u8[131072]{0}', space=vmem, size = 0x20000, scoped, tag = 'input window, operand 3, single buffered']
    #allocation11 [shape = 's32[1]{0}', space=sflag, size = 0x4, scoped, tag = 'scoped memory for tpu_custom_call.1']
    #allocation12 [shape = 'u8[131072]{0}', space=vmem, size = 0x20000, scoped, tag = 'input window, operand 4, single buffered']
    #allocation13 [shape = 'u8[32768]{0}', space=vmem, size = 0x8000, scoped, tag = 'output window, operand 0, single buffered']
    %12 = vsyncpa [#allocation8], 0
    %13 = vsyncpa [#allocation11], 0
    %14 = vsyncpa [#allocation9], 0
    // Predicated region
    $region2: #{tpu_custom_call.1} parent=1 // pred_check
      _
    $region3: #{tpu_custom_call.1} parent=1 // pred_check_branch
      %16 = sbr.rel (0) target = $region5
    $region4: #{tpu_custom_call.1} parent=1 // pred_region
      _
    $region5: #{tpu_custom_call.1} parent=1 // pred_fallthru
      _
    // Predicated region
    $region6: #{tpu_custom_call.1} parent=1 // pred_check
      _
    $region7: #{tpu_custom_call.1} parent=1 // pred_check_branch
      %18 = sbr.rel (0) target = $region9
    $region8: #{tpu_custom_call.1} parent=1 // pred_region
      %s20 = ssub.s32 1024, 1024
      %21 = vsyncadd [#allocation8], %s20
      %s22 = sshll.u32 [#allocation7], 4
      %s23 = int_to_ptr.vmem [resolvable:$true] %s22
      %28 = dma.hbm_to_vmem [thread:$0]  %s2, 1024, %s23, [#allocation8], 64, 64, 4
    $region9: #{tpu_custom_call.1} parent=1 // pred_fallthru
      _
    // Predicated region
    $region10: #{tpu_custom_call.1} parent=1 // pred_check
      _
    $region11: #{tpu_custom_call.1} parent=1 // pred_check_branch
      %30 = sbr.rel (0) target = $region13
    $region12: #{tpu_custom_call.1} parent=1 // pred_region
      %s32 = ssub.s32 4096, 4096
      %33 = vsyncadd [#allocation11], %s32
      %s34 = sshll.u32 [#allocation10], 4
      %s35 = int_to_ptr.vmem [resolvable:$true] %s34
      %40 = dma.hbm_to_vmem [thread:$0]  %s3, 4096, %s35, [#allocation11], 256, 256, 16
    $region13: #{tpu_custom_call.1} parent=1 // pred_fallthru
      _
    // Predicated region
    $region14: #{tpu_custom_call.1} parent=1 // pred_check
      _
    $region15: #{tpu_custom_call.1} parent=1 // pred_check_branch
      %42 = sbr.rel (0) target = $region17
    $region16: #{tpu_custom_call.1} parent=1 // pred_region
      %s44 = ssub.s32 4096, 4096
      %45 = vsyncadd [#allocation11], %s44
      %s46 = sshll.u32 [#allocation12], 4
      %s47 = int_to_ptr.vmem [resolvable:$true] %s46
      %52 = dma.hbm_to_vmem [thread:$0]  %s4, 4096, %s47, [#allocation11], 256, 256, 16
    $region17: #{tpu_custom_call.1} parent=1 // pred_fallthru
      _
    // Predicated region
    $region18: #{tpu_custom_call.1} parent=1 // pred_check
      _
    $region19: #{tpu_custom_call.1} parent=1 // pred_check_branch
      %54 = sbr.rel (0) target = $region21
    $region20: #{tpu_custom_call.1} parent=1 // pred_region
      _
    $region21: #{tpu_custom_call.1} parent=1 // pred_fallthru
      _
    // Predicated region
    $region22: #{tpu_custom_call.1} parent=1 // pred_check
      _
    $region23: #{tpu_custom_call.1} parent=1 // pred_check_branch
      %56 = sbr.rel (0) target = $region25
    $region24: #{tpu_custom_call.1} parent=1 // pred_region
      %57 = dma.done [#allocation8], 1024
    $region25: #{tpu_custom_call.1} parent=1 // pred_fallthru
      _
    // Predicated region
    $region26: #{tpu_custom_call.1} parent=1 // pred_check
      _
    $region27: #{tpu_custom_call.1} parent=1 // pred_check_branch
      %59 = sbr.rel (0) target = $region29
    $region28: #{tpu_custom_call.1} parent=1 // pred_region
      %60 = dma.done [#allocation11], 4096
    $region29: #{tpu_custom_call.1} parent=1 // pred_fallthru
      _
    // Predicated region
    $region30: #{tpu_custom_call.1} parent=1 // pred_check
      _
    $region31: #{tpu_custom_call.1} parent=1 // pred_check_branch
      %62 = sbr.rel (0) target = $region33
    $region32: #{tpu_custom_call.1} parent=1 // pred_region
      %63 = dma.done [#allocation11], 4096
    $region33: #{tpu_custom_call.1} parent=1 // pred_fallthru
      _
    %s65 = smul.u32 0, 8
    %s66 = sld [smem:[#allocation6]]
    %v67 = vld [vmem:[%s1] sm:$0xff]
    %v68 = vld [vmem:[%s1 + $0x8] sm:$0xff]
    %p69 = scmp.eq.s32.totalorder 0, 0
    // Predicated region
    $region34: #{tpu_custom_call.1} parent=1 // pred_check
      %p70 = pneg %p69
    $region35: #{tpu_custom_call.1} parent=1 // pred_check_branch
      %72 = sbr.rel (%p70) target = $region37
    $region36: #{tpu_custom_call.1} parent=1 // pred_region
      %73 = vst [vmem:[#allocation3] sm:$0xff] 0.0
      %74 = vst [vmem:[#allocation3 + $0x8] sm:$0xff] 0.0
      %75 = vst [vmem:[#allocation4] sm:$0xff] 0.0
      %76 = vst [vmem:[#allocation4 + $0x8] sm:$0xff] 0.0
    $region37: #{tpu_custom_call.1} parent=1 // pred_fallthru
      _
    %p77 = scmp.ge.s32.totalorder %s65, %s66
    // Predicated region
    $region38: #{tpu_custom_call.1} parent=1 // pred_check
      %p78 = pneg %p77
    $region39: #{tpu_custom_call.1} parent=1 // pred_check_branch
      %80 = sbr.rel (%p78) target = $region41
    $region40: #{tpu_custom_call.1} parent=1 // pred_region
      %81 = vst [vmem:[#allocation13] sm:$0xf] 0
      %82 = vst [vmem:[#allocation13 + $0x4] sm:$0xf] 0
      %83 = vst [vmem:[#allocation13 + $0x8] sm:$0xf] 0
      %84 = vst [vmem:[#allocation13 + $0xc] sm:$0xf] 0
      %85 = vst [vmem:[#allocation13 + $0x10] sm:$0xf] 0
      %86 = vst [vmem:[#allocation13 + $0x14] sm:$0xf] 0
      %87 = vst [vmem:[#allocation13 + $0x18] sm:$0xf] 0
      %88 = vst [vmem:[#allocation13 + $0x1c] sm:$0xf] 0
      %89 = vst [vmem:[#allocation13 + $0x20] sm:$0xf] 0
      %90 = vst [vmem:[#allocation13 + $0x24] sm:$0xf] 0
      %91 = vst [vmem:[#allocation13 + $0x28] sm:$0xf] 0
      %92 = vst [vmem:[#allocation13 + $0x2c] sm:$0xf] 0
      %93 = vst [vmem:[#allocation13 + $0x30] sm:$0xf] 0
      %94 = vst [vmem:[#allocation13 + $0x34] sm:$0xf] 0
      %95 = vst [vmem:[#allocation13 + $0x38] sm:$0xf] 0
      %96 = vst [vmem:[#allocation13 + $0x3c] sm:$0xf] 0
    $region41: #{tpu_custom_call.1} parent=1 // pred_fallthru
      _
    %p97 = scmp.lt.s32.totalorder %s65, %s66
    // Predicated region
    $region42: #{tpu_custom_call.1} parent=1 // pred_check
      %p98 = pneg %p97
    $region43: #{tpu_custom_call.1} parent=1 // pred_check_branch
      %100 = sbr.rel (%p98) target = $region45
    $region44: #{tpu_custom_call.1} parent=1 // pred_region
      %v101 = vld [vmem:[#allocation7] sm:$0xf]
      %v102 = vld [vmem:[#allocation7 + $0x4] sm:$0xf]
      %v103 = vld [vmem:[#allocation7 + $0x8] sm:$0xf]
      %v104 = vld [vmem:[#allocation7 + $0xc] sm:$0xf]
      %v105 = vld [vmem:[#allocation7 + $0x10] sm:$0xf]
      %v106 = vld [vmem:[#allocation7 + $0x14] sm:$0xf]
      %v107 = vld [vmem:[#allocation7 + $0x18] sm:$0xf]
      %v108 = vld [vmem:[#allocation7 + $0x1c] sm:$0xf]
      %v109 = vld [vmem:[#allocation7 + $0x20] sm:$0xf]
      %v110 = vld [vmem:[#allocation7 + $0x24] sm:$0xf]
      %v111 = vld [vmem:[#allocation7 + $0x28] sm:$0xf]
      %v112 = vld [vmem:[#allocation7 + $0x2c] sm:$0xf]
      %v113 = vld [vmem:[#allocation7 + $0x30] sm:$0xf]
      %v114 = vld [vmem:[#allocation7 + $0x34] sm:$0xf]
      %v115 = vld [vmem:[#allocation7 + $0x38] sm:$0xf]
      %v116 = vld [vmem:[#allocation7 + $0x3c] sm:$0xf]
      %v117 = vld [vmem:[#allocation10] sm:$0xff]
      %v118 = vld [vmem:[#allocation10 + $0x8] sm:$0xff]
      %v119 = vld [vmem:[#allocation10 + $0x10] sm:$0xff]
      %v120 = vld [vmem:[#allocation10 + $0x18] sm:$0xff]
      %v121 = vld [vmem:[#allocation10 + $0x20] sm:$0xff]
      %v122 = vld [vmem:[#allocation10 + $0x28] sm:$0xff]
      %v123 = vld [vmem:[#allocation10 + $0x30] sm:$0xff]
      %v124 = vld [vmem:[#allocation10 + $0x38] sm:$0xff]
      %v125 = vld [vmem:[#allocation10 + $0x40] sm:$0xff]
      %v126 = vld [vmem:[#allocation10 + $0x48] sm:$0xff]
      %v127 = vld [vmem:[#allocation10 + $0x50] sm:$0xff]
      %v128 = vld [vmem:[#allocation10 + $0x58] sm:$0xff]
      %v129 = vld [vmem:[#allocation10 + $0x60] sm:$0xff]
      %v130 = vld [vmem:[#allocation10 + $0x68] sm:$0xff]
      %v131 = vld [vmem:[#allocation10 + $0x70] sm:$0xff]
      %v132 = vld [vmem:[#allocation10 + $0x78] sm:$0xff]
      %v133 = vld [vmem:[#allocation10 + $0x80] sm:$0xff]
      %v134 = vld [vmem:[#allocation10 + $0x88] sm:$0xff]
      %v135 = vld [vmem:[#allocation10 + $0x90] sm:$0xff]
      %v136 = vld [vmem:[#allocation10 + $0x98] sm:$0xff]
      %v137 = vld [vmem:[#allocation10 + $0xa0] sm:$0xff]
      %v138 = vld [vmem:[#allocation10 + $0xa8] sm:$0xff]
      %v139 = vld [vmem:[#allocation10 + $0xb0] sm:$0xff]
      %v140 = vld [vmem:[#allocation10 + $0xb8] sm:$0xff]
      %v141 = vld [vmem:[#allocation10 + $0xc0] sm:$0xff]
      %v142 = vld [vmem:[#allocation10 + $0xc8] sm:$0xff]
      %v143 = vld [vmem:[#allocation10 + $0xd0] sm:$0xff]
      %v144 = vld [vmem:[#allocation10 + $0xd8] sm:$0xff]
      %v145 = vld [vmem:[#allocation10 + $0xe0] sm:$0xff]
      %v146 = vld [vmem:[#allocation10 + $0xe8] sm:$0xff]
      %v147 = vld [vmem:[#allocation10 + $0xf0] sm:$0xff]
      %v148 = vld [vmem:[#allocation10 + $0xf8] sm:$0xff]
      %v149 = vld [vmem:[%s5] sm:$0xf]
      %v151 = vlaneseq
      %v152 = vshrl.u32 %v151, 7
      %v153 = vsub.s32 0, %v152
      %v154 = vrot.slane %v149, %v153
      %v155 = vlaneseq
      %v156 = vshrl.u32 %v155, 7
      %v157 = vsub.s32 1, %v156
      %v158 = vrot.slane %v149, %v157
      %v159 = vlaneseq
      %v160 = vshrl.u32 %v159, 7
      %v161 = vsub.s32 2, %v160
      %v162 = vrot.slane %v149, %v161
      %v163 = vlaneseq
      %v164 = vshrl.u32 %v163, 7
      %v165 = vsub.s32 3, %v164
      %v166 = vrot.slane %v149, %v165
      %v187 = vunpack.c.l.b16 %v101
      %v188 = vunpack.c.l.b16 %v102
      %v189 = vunpack.c.l.b16 %v103
      %v190 = vunpack.c.l.b16 %v104
      %v191 = vunpack.c.l.b16 %v105
      %v192 = vunpack.c.l.b16 %v106
      %v193 = vunpack.c.l.b16 %v107
      %v194 = vunpack.c.l.b16 %v108
      %v195 = vunpack.c.l.b16 %v109
      %v196 = vunpack.c.l.b16 %v110
      %v197 = vunpack.c.l.b16 %v111
      %v198 = vunpack.c.l.b16 %v112
      %v199 = vunpack.c.l.b16 %v113
      %v200 = vunpack.c.l.b16 %v114
      %v201 = vunpack.c.l.b16 %v115
      %v202 = vunpack.c.l.b16 %v116
      %v203 = vpack.c.b16 %v188, %v187
      %v204 = vpack.c.b16 %v190, %v189
      %v205 = vpack.c.b16 %v192, %v191
      %v206 = vpack.c.b16 %v194, %v193
      %v207 = vpack.c.b16 %v196, %v195
      %v208 = vpack.c.b16 %v198, %v197
      %v209 = vpack.c.b16 %v200, %v199
      %v210 = vpack.c.b16 %v202, %v201
      %v251 = vunpack.c.l.b16 %v117
      %v252 = vunpack.c.h.b16 %v117
      %v253 = vunpack.c.l.b16 %v118
      %v254 = vunpack.c.h.b16 %v118
      %v255 = vunpack.c.l.b16 %v119
      %v256 = vunpack.c.h.b16 %v119
      %v257 = vunpack.c.l.b16 %v120
      %v258 = vunpack.c.h.b16 %v120
      %v259 = vunpack.c.l.b16 %v121
      %v260 = vunpack.c.h.b16 %v121
      %v261 = vunpack.c.l.b16 %v122
      %v262 = vunpack.c.h.b16 %v122
      %v263 = vunpack.c.l.b16 %v123
      %v264 = vunpack.c.h.b16 %v123
      %v265 = vunpack.c.l.b16 %v124
      %v266 = vunpack.c.h.b16 %v124
      %v267 = vunpack.c.l.b16 %v125
      %v268 = vunpack.c.h.b16 %v125
      %v269 = vunpack.c.l.b16 %v126
      %v270 = vunpack.c.h.b16 %v126
      %v271 = vunpack.c.l.b16 %v127
      %v272 = vunpack.c.h.b16 %v127
      %v273 = vunpack.c.l.b16 %v128
      %v274 = vunpack.c.h.b16 %v128
      %v275 = vunpack.c.l.b16 %v129
      %v276 = vunpack.c.h.b16 %v129
      %v277 = vunpack.c.l.b16 %v130
      %v278 = vunpack.c.h.b16 %v130
      %v279 = vunpack.c.l.b16 %v131
      %v280 = vunpack.c.h.b16 %v131
      %v281 = vunpack.c.l.b16 %v132
      %v282 = vunpack.c.h.b16 %v132
      %v283 = vunpack.c.l.b16 %v133
      %v284 = vunpack.c.h.b16 %v133
      %v285 = vunpack.c.l.b16 %v134
      %v286 = vunpack.c.h.b16 %v134
      %v287 = vunpack.c.l.b16 %v135
      %v288 = vunpack.c.h.b16 %v135
      %v289 = vunpack.c.l.b16 %v136
      %v290 = vunpack.c.h.b16 %v136
      %v291 = vunpack.c.l.b16 %v137
      %v292 = vunpack.c.h.b16 %v137
      %v293 = vunpack.c.l.b16 %v138
      %v294 = vunpack.c.h.b16 %v138
      %v295 = vunpack.c.l.b16 %v139
      %v296 = vunpack.c.h.b16 %v139
      %v297 = vunpack.c.l.b16 %v140
      %v298 = vunpack.c.h.b16 %v140
      %v299 = vunpack.c.l.b16 %v141
      %v300 = vunpack.c.h.b16 %v141
      %v301 = vunpack.c.l.b16 %v142
      %v302 = vunpack.c.h.b16 %v142
      %v303 = vunpack.c.l.b16 %v143
      %v304 = vunpack.c.h.b16 %v143
      %v305 = vunpack.c.l.b16 %v144
      %v306 = vunpack.c.h.b16 %v144
      %v307 = vunpack.c.l.b16 %v145
      %v308 = vunpack.c.h.b16 %v145
      %v309 = vunpack.c.l.b16 %v146
      %v310 = vunpack.c.h.b16 %v146
      %v311 = vunpack.c.l.b16 %v147
      %v312 = vunpack.c.h.b16 %v147
      %v313 = vunpack.c.l.b16 %v148
      %v314 = vunpack.c.h.b16 %v148
      %v315 = vpack.c.b16 %v255, %v251
      %v316 = vpack.c.b16 %v256, %v252
      %v317 = vpack.c.b16 %v257, %v253
      %v318 = vpack.c.b16 %v258, %v254
      %v319 = vpack.c.b16 %v263, %v259
      %v320 = vpack.c.b16 %v264, %v260
      %v321 = vpack.c.b16 %v265, %v261
      %v322 = vpack.c.b16 %v266, %v262
      %v323 = vpack.c.b16 %v271, %v267
      %v324 = vpack.c.b16 %v272, %v268
      %v325 = vpack.c.b16 %v273, %v269
      %v326 = vpack.c.b16 %v274, %v270
      %v327 = vpack.c.b16 %v279, %v275
      %v328 = vpack.c.b16 %v280, %v276
      %v329 = vpack.c.b16 %v281, %v277
      %v330 = vpack.c.b16 %v282, %v278
      %v331 = vpack.c.b16 %v287, %v283
      %v332 = vpack.c.b16 %v288, %v284
      %v333 = vpack.c.b16 %v289, %v285
      %v334 = vpack.c.b16 %v290, %v286
      %v335 = vpack.c.b16 %v295, %v291
      %v336 = vpack.c.b16 %v296, %v292
      %v337 = vpack.c.b16 %v297, %v293
      %v338 = vpack.c.b16 %v298, %v294
      %v339 = vpack.c.b16 %v303, %v299
      %v340 = vpack.c.b16 %v304, %v300
      %v341 = vpack.c.b16 %v305, %v301
      %v342 = vpack.c.b16 %v306, %v302
      %v343 = vpack.c.b16 %v311, %v307
      %v344 = vpack.c.b16 %v312, %v308
      %v345 = vpack.c.b16 %v313, %v309
      %v346 = vpack.c.b16 %v314, %v310
      %379 = vmatprep.subr.bf16.mxu0 %v316
      %380 = vmatpush1.bf16.msra.mxu0 %v315
      %381 = vmatprep.subr.bf16.mxu0 %v320
      %382 = vmatpush1.bf16.msra.mxu0 %v319
      %383 = vmatprep.subr.bf16.mxu0 %v324
      %384 = vmatpush1.bf16.msra.mxu0 %v323
      %385 = vmatprep.subr.bf16.mxu0 %v328
      %386 = vmatpush1.bf16.msra.mxu0 %v327
      %387 = vmatprep.subr.bf16.mxu0 %v332
      %388 = vmatpush1.bf16.msra.mxu0 %v331
      %389 = vmatprep.subr.bf16.mxu0 %v336
      %390 = vmatpush1.bf16.msra.mxu0 %v335
      %391 = vmatprep.subr.bf16.mxu0 %v340
      %392 = vmatpush1.bf16.msra.mxu0 %v339
      %393 = vmatprep.subr.bf16.mxu0 %v344
      %394 = vmatpush1.bf16.msra.mxu0 %v343
      %395 = vmatprep.subr.bf16.mxu0 0
      %396 = vmatpush1.bf16.msra.mxu0 0
      %397 = vmatprep.subr.bf16.mxu0 0
      %398 = vmatpush1.bf16.msra.mxu0 0
      %399 = vmatprep.subr.bf16.mxu0 0
      %400 = vmatpush1.bf16.msra.mxu0 0
      %401 = vmatprep.subr.bf16.mxu0 0
      %402 = vmatpush1.bf16.msra.mxu0 0
      %403 = vmatprep.subr.bf16.mxu0 0
      %404 = vmatpush1.bf16.msra.mxu0 0
      %405 = vmatprep.subr.bf16.mxu0 0
      %406 = vmatpush1.bf16.msra.mxu0 0
      %407 = vmatprep.subr.bf16.mxu0 0
      %408 = vmatpush1.bf16.msra.mxu0 0
      %409 = vmatprep.subr.bf16.mxu0 0
      %410 = vmatpush1.bf16.msra.mxu0 0
      %411 = vmatprep.mubr.bf16.mxu0 0
      %412 = vmatmul.mubr.bf16.gmra.mrb[0].mxu0 %v203
      %v413 = vpop.f32.mrb[0].mxu0
      %v414 = vadd.f32 %v154, %v413
      %v415 = vpop.f32.mrb[0].mxu0
      %v416 = vadd.f32 %v158, %v415
      %v417 = vpop.f32.mrb[0].mxu0
      %v418 = vadd.f32 %v154, %v417
      %v419 = vpop.f32.mrb[0].mxu0
      %v420 = vadd.f32 %v158, %v419
      %421 = vmatprep.mubr.bf16.mxu0 0
      %422 = vmatmul.mubr.bf16.gmra.mrb[0].mxu0 %v204
      %v423 = vpop.f32.mrb[0].mxu0
      %v424 = vadd.f32 %v154, %v423
      %v425 = vpop.f32.mrb[0].mxu0
      %v426 = vadd.f32 %v158, %v425
      %v427 = vpop.f32.mrb[0].mxu0
      %v428 = vadd.f32 %v154, %v427
      %v429 = vpop.f32.mrb[0].mxu0
      %v430 = vadd.f32 %v158, %v429
      %431 = vmatprep.mubr.bf16.mxu0 0
      %432 = vmatmul.mubr.bf16.gmra.mrb[0].mxu0 %v205
      %v433 = vpop.f32.mrb[0].mxu0
      %v434 = vadd.f32 %v154, %v433
      %v435 = vpop.f32.mrb[0].mxu0
      %v436 = vadd.f32 %v158, %v435
      %v437 = vpop.f32.mrb[0].mxu0
      %v438 = vadd.f32 %v154, %v437
      %v439 = vpop.f32.mrb[0].mxu0
      %v440 = vadd.f32 %v158, %v439
      %441 = vmatprep.mubr.bf16.mxu0 0
      %442 = vmatmul.mubr.bf16.gmra.mrb[0].mxu0 %v206
      %v443 = vpop.f32.mrb[0].mxu0
      %v444 = vadd.f32 %v154, %v443
      %v445 = vpop.f32.mrb[0].mxu0
      %v446 = vadd.f32 %v158, %v445
      %v447 = vpop.f32.mrb[0].mxu0
      %v448 = vadd.f32 %v154, %v447
      %v449 = vpop.f32.mrb[0].mxu0
      %v450 = vadd.f32 %v158, %v449
      %451 = vmatprep.mubr.bf16.mxu0 0
      %452 = vmatmul.mubr.bf16.gmra.mrb[0].mxu0 %v207
      %v453 = vpop.f32.mrb[0].mxu0
      %v454 = vadd.f32 %v154, %v453
      %v455 = vpop.f32.mrb[0].mxu0
      %v456 = vadd.f32 %v158, %v455
      %v457 = vpop.f32.mrb[0].mxu0
      %v458 = vadd.f32 %v154, %v457
      %v459 = vpop.f32.mrb[0].mxu0
      %v460 = vadd.f32 %v158, %v459
      %461 = vmatprep.mubr.bf16.mxu0 0
      %462 = vmatmul.mubr.bf16.gmra.mrb[0].mxu0 %v208
      %v463 = vpop.f32.mrb[0].mxu0
      %v464 = vadd.f32 %v154, %v463
      %v465 = vpop.f32.mrb[0].mxu0
      %v466 = vadd.f32 %v158, %v465
      %v467 = vpop.f32.mrb[0].mxu0
      %v468 = vadd.f32 %v154, %v467
      %v469 = vpop.f32.mrb[0].mxu0
      %v470 = vadd.f32 %v158, %v469
      %471 = vmatprep.mubr.bf16.mxu0 0
      %472 = vmatmul.mubr.bf16.gmra.mrb[0].mxu0 %v209
      %v473 = vpop.f32.mrb[0].mxu0
      %v474 = vadd.f32 %v154, %v473
      %v475 = vpop.f32.mrb[0].mxu0
      %v476 = vadd.f32 %v158, %v475
      %v477 = vpop.f32.mrb[0].mxu0
      %v478 = vadd.f32 %v154, %v477
      %v479 = vpop.f32.mrb[0].mxu0
      %v480 = vadd.f32 %v158, %v479
      %481 = vmatprep.mubr.bf16.mxu0 0
      %482 = vmatmul.mubr.bf16.gmra.mrb[0].mxu0 %v210
      %v483 = vpop.f32.mrb[0].mxu0
      %v484 = vadd.f32 %v154, %v483
      %v485 = vpop.f32.mrb[0].mxu0
      %v486 = vadd.f32 %v158, %v485
      %v487 = vpop.f32.mrb[0].mxu0
      %v488 = vadd.f32 %v154, %v487
      %v489 = vpop.f32.mrb[0].mxu0
      %v490 = vadd.f32 %v158, %v489
      %491 = vdwg.mxu0
      %492 = vmatprep.subr.bf16.mxu0 %v318
      %493 = vmatpush1.bf16.msra.mxu0 %v317
      %494 = vmatprep.subr.bf16.mxu0 %v322
      %495 = vmatpush1.bf16.msra.mxu0 %v321
      %496 = vmatprep.subr.bf16.mxu0 %v326
      %497 = vmatpush1.bf16.msra.mxu0 %v325
      %498 = vmatprep.subr.bf16.mxu0 %v330
      %499 = vmatpush1.bf16.msra.mxu0 %v329
      %500 = vmatprep.subr.bf16.mxu0 %v334
      %501 = vmatpush1.bf16.msra.mxu0 %v333
      %502 = vmatprep.subr.bf16.mxu0 %v338
      %503 = vmatpush1.bf16.msra.mxu0 %v337
      %504 = vmatprep.subr.bf16.mxu0 %v342
      %505 = vmatpush1.bf16.msra.mxu0 %v341
      %506 = vmatprep.subr.bf16.mxu0 %v346
      %507 = vmatpush1.bf16.msra.mxu0 %v345
      %508 = vmatprep.subr.bf16.mxu0 0
      %509 = vmatpush1.bf16.msra.mxu0 0
      %510 = vmatprep.subr.bf16.mxu0 0
      %511 = vmatpush1.bf16.msra.mxu0 0
      %512 = vmatprep.subr.bf16.mxu0 0
      %513 = vmatpush1.bf16.msra.mxu0 0
      %514 = vmatprep.subr.bf16.mxu0 0
      %515 = vmatpush1.bf16.msra.mxu0 0
      %516 = vmatprep.subr.bf16.mxu0 0
      %517 = vmatpush1.bf16.msra.mxu0 0
      %518 = vmatprep.subr.bf16.mxu0 0
      %519 = vmatpush1.bf16.msra.mxu0 0
      %520 = vmatprep.subr.bf16.mxu0 0
      %521 = vmatpush1.bf16.msra.mxu0 0
      %522 = vmatprep.subr.bf16.mxu0 0
      %523 = vmatpush1.bf16.msra.mxu0 0
      %524 = vmatprep.mubr.bf16.mxu0 0
      %525 = vmatmul.mubr.bf16.gmra.mrb[0].mxu0 %v203
      %v526 = vpop.f32.mrb[0].mxu0
      %v527 = vadd.f32 %v162, %v526
      %v528 = vpop.f32.mrb[0].mxu0
      %v529 = vadd.f32 %v166, %v528
      %v530 = vpop.f32.mrb[0].mxu0
      %v531 = vadd.f32 %v162, %v530
      %v532 = vpop.f32.mrb[0].mxu0
      %v533 = vadd.f32 %v166, %v532
      %534 = vmatprep.mubr.bf16.mxu0 0
      %535 = vmatmul.mubr.bf16.gmra.mrb[0].mxu0 %v204
      %v536 = vpop.f32.mrb[0].mxu0
      %v537 = vadd.f32 %v162, %v536
      %v538 = vpop.f32.mrb[0].mxu0
      %v539 = vadd.f32 %v166, %v538
      %v540 = vpop.f32.mrb[0].mxu0
      %v541 = vadd.f32 %v162, %v540
      %v542 = vpop.f32.mrb[0].mxu0
      %v543 = vadd.f32 %v166, %v542
      %544 = vmatprep.mubr.bf16.mxu0 0
      %545 = vmatmul.mubr.bf16.gmra.mrb[0].mxu0 %v205
      %v546 = vpop.f32.mrb[0].mxu0
      %v547 = vadd.f32 %v162, %v546
      %v548 = vpop.f32.mrb[0].mxu0
      %v549 = vadd.f32 %v166, %v548
      %v550 = vpop.f32.mrb[0].mxu0
      %v551 = vadd.f32 %v162, %v550
      %v552 = vpop.f32.mrb[0].mxu0
      %v553 = vadd.f32 %v166, %v552
      %554 = vmatprep.mubr.bf16.mxu0 0
      %555 = vmatmul.mubr.bf16.gmra.mrb[0].mxu0 %v206
      %v556 = vpop.f32.mrb[0].mxu0
      %v557 = vadd.f32 %v162, %v556
      %v558 = vpop.f32.mrb[0].mxu0
      %v559 = vadd.f32 %v166, %v558
      %v560 = vpop.f32.mrb[0].mxu0
      %v561 = vadd.f32 %v162, %v560
      %v562 = vpop.f32.mrb[0].mxu0
      %v563 = vadd.f32 %v166, %v562
      %564 = vmatprep.mubr.bf16.mxu0 0
      %565 = vmatmul.mubr.bf16.gmra.mrb[0].mxu0 %v207
      %v566 = vpop.f32.mrb[0].mxu0
      %v567 = vadd.f32 %v162, %v566
      %v568 = vpop.f32.mrb[0].mxu0
      %v569 = vadd.f32 %v166, %v568
      %v570 = vpop.f32.mrb[0].mxu0
      %v571 = vadd.f32 %v162, %v570
      %v572 = vpop.f32.mrb[0].mxu0
      %v573 = vadd.f32 %v166, %v572
      %574 = vmatprep.mubr.bf16.mxu0 0
      %575 = vmatmul.mubr.bf16.gmra.mrb[0].mxu0 %v208
      %v576 = vpop.f32.mrb[0].mxu0
      %v577 = vadd.f32 %v162, %v576
      %v578 = vpop.f32.mrb[0].mxu0
      %v579 = vadd.f32 %v166, %v578
      %v580 = vpop.f32.mrb[0].mxu0
      %v581 = vadd.f32 %v162, %v580
      %v582 = vpop.f32.mrb[0].mxu0
      %v583 = vadd.f32 %v166, %v582
      %584 = vmatprep.mubr.bf16.mxu0 0
      %585 = vmatmul.mubr.bf16.gmra.mrb[0].mxu0 %v209
      %v586 = vpop.f32.mrb[0].mxu0
      %v587 = vadd.f32 %v162, %v586
      %v588 = vpop.f32.mrb[0].mxu0
      %v589 = vadd.f32 %v166, %v588
      %v590 = vpop.f32.mrb[0].mxu0
      %v591 = vadd.f32 %v162, %v590
      %v592 = vpop.f32.mrb[0].mxu0
      %v593 = vadd.f32 %v166, %v592
      %594 = vmatprep.mubr.bf16.mxu0 0
      %595 = vmatmul.mubr.bf16.gmra.mrb[0].mxu0 %v210
      %v596 = vpop.f32.mrb[0].mxu0
      %v597 = vadd.f32 %v162, %v596
      %v598 = vpop.f32.mrb[0].mxu0
      %v599 = vadd.f32 %v166, %v598
      %v600 = vpop.f32.mrb[0].mxu0
      %v601 = vadd.f32 %v162, %v600
      %v602 = vpop.f32.mrb[0].mxu0
      %v603 = vadd.f32 %v166, %v602
      %604 = vdwg.mxu0
      %605 = vst [vmem:[#allocation2] sm:$0xff] %v414
      %606 = vst [vmem:[#allocation2 + $0x8] sm:$0xff] %v416
      %607 = vst [vmem:[#allocation2 + $0x10] sm:$0xff] %v527
      %608 = vst [vmem:[#allocation2 + $0x18] sm:$0xff] %v529
      %609 = vst [vmem:[#allocation2 + $0x20] sm:$0xff] %v418
      %610 = vst [vmem:[#allocation2 + $0x28] sm:$0xff] %v420
      %611 = vst [vmem:[#allocation2 + $0x30] sm:$0xff] %v531
      %612 = vst [vmem:[#allocation2 + $0x38] sm:$0xff] %v533
      %613 = vst [vmem:[#allocation2 + $0x40] sm:$0xff] %v424
      %614 = vst [vmem:[#allocation2 + $0x48] sm:$0xff] %v426
      %615 = vst [vmem:[#allocation2 + $0x50] sm:$0xff] %v537
      %616 = vst [vmem:[#allocation2 + $0x58] sm:$0xff] %v539
      %617 = vst [vmem:[#allocation2 + $0x60] sm:$0xff] %v428
      %618 = vst [vmem:[#allocation2 + $0x68] sm:$0xff] %v430
      %619 = vst [vmem:[#allocation2 + $0x70] sm:$0xff] %v541
      %620 = vst [vmem:[#allocation2 + $0x78] sm:$0xff] %v543
      %621 = vst [vmem:[#allocation2 + $0x80] sm:$0xff] %v434
      %622 = vst [vmem:[#allocation2 + $0x88] sm:$0xff] %v436
      %623 = vst [vmem:[#allocation2 + $0x90] sm:$0xff] %v547
      %624 = vst [vmem:[#allocation2 + $0x98] sm:$0xff] %v549
      %625 = vst [vmem:[#allocation2 + $0xa0] sm:$0xff] %v438
      %626 = vst [vmem:[#allocation2 + $0xa8] sm:$0xff] %v440
      %627 = vst [vmem:[#allocation2 + $0xb0] sm:$0xff] %v551
      %628 = vst [vmem:[#allocation2 + $0xb8] sm:$0xff] %v553
      %629 = vst [vmem:[#allocation2 + $0xc0] sm:$0xff] %v444
      %630 = vst [vmem:[#allocation2 + $0xc8] sm:$0xff] %v446
      %631 = vst [vmem:[#allocation2 + $0xd0] sm:$0xff] %v557
      %632 = vst [vmem:[#allocation2 + $0xd8] sm:$0xff] %v559
      %633 = vst [vmem:[#allocation2 + $0xe0] sm:$0xff] %v448
      %634 = vst [vmem:[#allocation2 + $0xe8] sm:$0xff] %v450
      %635 = vst [vmem:[#allocation2 + $0xf0] sm:$0xff] %v561
      %636 = vst [vmem:[#allocation2 + $0xf8] sm:$0xff] %v563
      %637 = vst [vmem:[#allocation2 + $0x100] sm:$0xff] %v454
      %638 = vst [vmem:[#allocation2 + $0x108] sm:$0xff] %v456
      %639 = vst [vmem:[#allocation2 + $0x110] sm:$0xff] %v567
      %640 = vst [vmem:[#allocation2 + $0x118] sm:$0xff] %v569
      %641 = vst [vmem:[#allocation2 + $0x120] sm:$0xff] %v458
      %642 = vst [vmem:[#allocation2 + $0x128] sm:$0xff] %v460
      %643 = vst [vmem:[#allocation2 + $0x130] sm:$0xff] %v571
      %644 = vst [vmem:[#allocation2 + $0x138] sm:$0xff] %v573
      %645 = vst [vmem:[#allocation2 + $0x140] sm:$0xff] %v464
      %646 = vst [vmem:[#allocation2 + $0x148] sm:$0xff] %v466
      %647 = vst [vmem:[#allocation2 + $0x150] sm:$0xff] %v577
      %648 = vst [vmem:[#allocation2 + $0x158] sm:$0xff] %v579
      %649 = vst [vmem:[#allocation2 + $0x160] sm:$0xff] %v468
      %650 = vst [vmem:[#allocation2 + $0x168] sm:$0xff] %v470
      %651 = vst [vmem:[#allocation2 + $0x170] sm:$0xff] %v581
      %652 = vst [vmem:[#allocation2 + $0x178] sm:$0xff] %v583
      %653 = vst [vmem:[#allocation2 + $0x180] sm:$0xff] %v474
      %654 = vst [vmem:[#allocation2 + $0x188] sm:$0xff] %v476
      %655 = vst [vmem:[#allocation2 + $0x190] sm:$0xff] %v587
      %656 = vst [vmem:[#allocation2 + $0x198] sm:$0xff] %v589
      %657 = vst [vmem:[#allocation2 + $0x1a0] sm:$0xff] %v478
      %658 = vst [vmem:[#allocation2 + $0x1a8] sm:$0xff] %v480
      %659 = vst [vmem:[#allocation2 + $0x1b0] sm:$0xff] %v591
      %660 = vst [vmem:[#allocation2 + $0x1b8] sm:$0xff] %v593
      %661 = vst [vmem:[#allocation2 + $0x1c0] sm:$0xff] %v484
      %662 = vst [vmem:[#allocation2 + $0x1c8] sm:$0xff] %v486
      %663 = vst [vmem:[#allocation2 + $0x1d0] sm:$0xff] %v597
      %664 = vst [vmem:[#allocation2 + $0x1d8] sm:$0xff] %v599
      %665 = vst [vmem:[#allocation2 + $0x1e0] sm:$0xff] %v488
      %666 = vst [vmem:[#allocation2 + $0x1e8] sm:$0xff] %v490
      %667 = vst [vmem:[#allocation2 + $0x1f0] sm:$0xff] %v601
      %668 = vst [vmem:[#allocation2 + $0x1f8] sm:$0xff] %v603
      %v669 = vld [vmem:[#allocation3] sm:$0xff]
      %v670 = vld [vmem:[#allocation3 + $0x8] sm:$0xff]
      %v671 = vld [vmem:[#allocation4] sm:$0xff]
      %v672 = vld [vmem:[#allocation4 + $0x8] sm:$0xff]
      %s673 = smul.u32 0, 4
      %s674 = smul.addr %s673, 8
      %s675 = scalar_lea.vmem [#allocation2], %s674
      %v676 = vld [vmem:[%s675] sm:$0xff]
      %v677 = vld [vmem:[%s675 + $0x8] sm:$0xff]
      %v678 = vld [vmem:[%s675 + $0x10] sm:$0xff]
      %v679 = vld [vmem:[%s675 + $0x18] sm:$0xff]
      %v680 = vld [vmem:[%s675 + $0x20] sm:$0xff]
      %v681 = vld [vmem:[%s675 + $0x28] sm:$0xff]
      %v682 = vld [vmem:[%s675 + $0x30] sm:$0xff]
      %v683 = vld [vmem:[%s675 + $0x38] sm:$0xff]
      %v684 = vpack.c.bf16 %v670, %v669
      %v685 = vld [vmem:[#allocation12] sm:$0xff]
      %v686 = vld [vmem:[#allocation12 + $0x8] sm:$0xff]
      %v687 = vld [vmem:[#allocation12 + $0x10] sm:$0xff]
      %v688 = vld [vmem:[#allocation12 + $0x18] sm:$0xff]
      %v689 = vld [vmem:[#allocation12 + $0x20] sm:$0xff]
      %v690 = vld [vmem:[#allocation12 + $0x28] sm:$0xff]
      %v691 = vld [vmem:[#allocation12 + $0x30] sm:$0xff]
      %v692 = vld [vmem:[#allocation12 + $0x38] sm:$0xff]
      %v693 = vld [vmem:[#allocation12 + $0x40] sm:$0xff]
      %v694 = vld [vmem:[#allocation12 + $0x48] sm:$0xff]
      %v695 = vld [vmem:[#allocation12 + $0x50] sm:$0xff]
      %v696 = vld [vmem:[#allocation12 + $0x58] sm:$0xff]
      %v697 = vld [vmem:[#allocation12 + $0x60] sm:$0xff]
      %v698 = vld [vmem:[#allocation12 + $0x68] sm:$0xff]
      %v699 = vld [vmem:[#allocation12 + $0x70] sm:$0xff]
      %v700 = vld [vmem:[#allocation12 + $0x78] sm:$0xff]
      %v701 = vld [vmem:[#allocation12 + $0x80] sm:$0xff]
      %v702 = vld [vmem:[#allocation12 + $0x88] sm:$0xff]
      %v703 = vld [vmem:[#allocation12 + $0x90] sm:$0xff]
      %v704 = vld [vmem:[#allocation12 + $0x98] sm:$0xff]
      %v705 = vld [vmem:[#allocation12 + $0xa0] sm:$0xff]
      %v706 = vld [vmem:[#allocation12 + $0xa8] sm:$0xff]
      %v707 = vld [vmem:[#allocation12 + $0xb0] sm:$0xff]
      %v708 = vld [vmem:[#allocation12 + $0xb8] sm:$0xff]
      %v709 = vld [vmem:[#allocation12 + $0xc0] sm:$0xff]
      %v710 = vld [vmem:[#allocation12 + $0xc8] sm:$0xff]
      %v711 = vld [vmem:[#allocation12 + $0xd0] sm:$0xff]
      %v712 = vld [vmem:[#allocation12 + $0xd8] sm:$0xff]
      %v713 = vld [vmem:[#allocation12 + $0xe0] sm:$0xff]
      %v714 = vld [vmem:[#allocation12 + $0xe8] sm:$0xff]
      %v715 = vld [vmem:[#allocation12 + $0xf0] sm:$0xff]
      %v716 = vld [vmem:[#allocation12 + $0xf8] sm:$0xff]
      %v749 = vunpack.c.l.b16 %v685
      %v750 = vunpack.c.h.b16 %v685
      %v751 = vunpack.c.l.b16 %v686
      %v752 = vunpack.c.h.b16 %v686
      %v753 = vunpack.c.l.b16 %v687
      %v754 = vunpack.c.h.b16 %v687
      %v755 = vunpack.c.l.b16 %v688
      %v756 = vunpack.c.h.b16 %v688
      %v757 = vunpack.c.l.b16 %v689
      %v758 = vunpack.c.h.b16 %v689
      %v759 = vunpack.c.l.b16 %v690
      %v760 = vunpack.c.h.b16 %v690
      %v761 = vunpack.c.l.b16 %v691
      %v762 = vunpack.c.h.b16 %v691
      %v763 = vunpack.c.l.b16 %v692
      %v764 = vunpack.c.h.b16 %v692
      %v765 = vunpack.c.l.b16 %v693
      %v766 = vunpack.c.h.b16 %v693
      %v767 = vunpack.c.l.b16 %v694
      %v768 = vunpack.c.h.b16 %v694
      %v769 = vunpack.c.l.b16 %v695
      %v770 = vunpack.c.h.b16 %v695
      %v771 = vunpack.c.l.b16 %v696
      %v772 = vunpack.c.h.b16 %v696
      %v773 = vunpack.c.l.b16 %v697
      %v774 = vunpack.c.h.b16 %v697
      %v775 = vunpack.c.l.b16 %v698
      %v776 = vunpack.c.h.b16 %v698
      %v777 = vunpack.c.l.b16 %v699
      %v778 = vunpack.c.h.b16 %v699
      %v779 = vunpack.c.l.b16 %v700
      %v780 = vunpack.c.h.b16 %v700
      %v781 = vunpack.c.l.b16 %v701
      %v782 = vunpack.c.h.b16 %v701
      %v783 = vunpack.c.l.b16 %v702
      %v784 = vunpack.c.h.b16 %v702
      %v785 = vunpack.c.l.b16 %v703
      %v786 = vunpack.c.h.b16 %v703
      %v787 = vunpack.c.l.b16 %v704
      %v788 = vunpack.c.h.b16 %v704
      %v789 = vunpack.c.l.b16 %v705
      %v790 = vunpack.c.h.b16 %v705
      %v791 = vunpack.c.l.b16 %v706
      %v792 = vunpack.c.h.b16 %v706
      %v793 = vunpack.c.l.b16 %v707
      %v794 = vunpack.c.h.b16 %v707
      %v795 = vunpack.c.l.b16 %v708
      %v796 = vunpack.c.h.b16 %v708
      %v797 = vunpack.c.l.b16 %v709
      %v798 = vunpack.c.h.b16 %v709
      %v799 = vunpack.c.l.b16 %v710
      %v800 = vunpack.c.h.b16 %v710
      %v801 = vunpack.c.l.b16 %v711
      %v802 = vunpack.c.h.b16 %v711
      %v803 = vunpack.c.l.b16 %v712
      %v804 = vunpack.c.h.b16 %v712
      %v805 = vunpack.c.l.b16 %v713
      %v806 = vunpack.c.h.b16 %v713
      %v807 = vunpack.c.l.b16 %v714
      %v808 = vunpack.c.h.b16 %v714
      %v809 = vunpack.c.l.b16 %v715
      %v810 = vunpack.c.h.b16 %v715
      %v811 = vunpack.c.l.b16 %v716
      %v812 = vunpack.c.h.b16 %v716
      %v813 = vpack.c.b16 %v753, %v749
      %v814 = vpack.c.b16 %v754, %v750
      %v815 = vpack.c.b16 %v755, %v751
      %v816 = vpack.c.b16 %v756, %v752
      %v817 = vpack.c.b16 %v761, %v757
      %v818 = vpack.c.b16 %v762, %v758
      %v819 = vpack.c.b16 %v763, %v759
      %v820 = vpack.c.b16 %v764, %v760
      %v821 = vpack.c.b16 %v769, %v765
      %v822 = vpack.c.b16 %v770, %v766
      %v823 = vpack.c.b16 %v771, %v767
      %v824 = vpack.c.b16 %v772, %v768
      %v825 = vpack.c.b16 %v777, %v773
      %v826 = vpack.c.b16 %v778, %v774
      %v827 = vpack.c.b16 %v779, %v775
      %v828 = vpack.c.b16 %v780, %v776
      %v829 = vpack.c.b16 %v785, %v781
      %v830 = vpack.c.b16 %v786, %v782
      %v831 = vpack.c.b16 %v787, %v783
      %v832 = vpack.c.b16 %v788, %v784
      %v833 = vpack.c.b16 %v793, %v789
      %v834 = vpack.c.b16 %v794, %v790
      %v835 = vpack.c.b16 %v795, %v791
      %v836 = vpack.c.b16 %v796, %v792
      %v837 = vpack.c.b16 %v801, %v797
      %v838 = vpack.c.b16 %v802, %v798
      %v839 = vpack.c.b16 %v803, %v799
      %v840 = vpack.c.b16 %v804, %v800
      %v841 = vpack.c.b16 %v809, %v805
      %v842 = vpack.c.b16 %v810, %v806
      %v843 = vpack.c.b16 %v811, %v807
      %v844 = vpack.c.b16 %v812, %v808
      %877 = vmatprep.subr.bf16.mxu0 %v814
      %878 = vmatpush1.bf16.msra.mxu0 %v813
      %879 = vmatprep.subr.bf16.mxu0 %v818
      %880 = vmatpush1.bf16.msra.mxu0 %v817
      %881 = vmatprep.subr.bf16.mxu0 %v822
      %882 = vmatpush1.bf16.msra.mxu0 %v821
      %883 = vmatprep.subr.bf16.mxu0 %v826
      %884 = vmatpush1.bf16.msra.mxu0 %v825
      %885 = vmatprep.subr.bf16.mxu0 %v830
      %886 = vmatpush1.bf16.msra.mxu0 %v829
      %887 = vmatprep.subr.bf16.mxu0 %v834
      %888 = vmatpush1.bf16.msra.mxu0 %v833
      %889 = vmatprep.subr.bf16.mxu0 %v838
      %890 = vmatpush1.bf16.msra.mxu0 %v837
      %891 = vmatprep.subr.bf16.mxu0 %v842
      %892 = vmatpush1.bf16.msra.mxu0 %v841
      %893 = vmatprep.subr.bf16.mxu0 0
      %894 = vmatpush1.bf16.msra.mxu0 0
      %895 = vmatprep.subr.bf16.mxu0 0
      %896 = vmatpush1.bf16.msra.mxu0 0
      %897 = vmatprep.subr.bf16.mxu0 0
      %898 = vmatpush1.bf16.msra.mxu0 0
      %899 = vmatprep.subr.bf16.mxu0 0
      %900 = vmatpush1.bf16.msra.mxu0 0
      %901 = vmatprep.subr.bf16.mxu0 0
      %902 = vmatpush1.bf16.msra.mxu0 0
      %903 = vmatprep.subr.bf16.mxu0 0
      %904 = vmatpush1.bf16.msra.mxu0 0
      %905 = vmatprep.subr.bf16.mxu0 0
      %906 = vmatpush1.bf16.msra.mxu0 0
      %907 = vmatprep.subr.bf16.mxu0 0
      %908 = vmatpush1.bf16.msra.mxu0 0
      %909 = vmatprep.mubr.bf16.mxu0 0
      %910 = vmatmul.mubr.bf16.gmra.mrb[0].mxu0 %v684
      %v911 = vpop.f32.mrb[0].mxu0
      %v912 = vadd.f32 0.0, %v911
      %v913 = vpop.f32.mrb[0].mxu0
      %v914 = vadd.f32 0.0, %v913
      %v915 = vpop.f32.mrb[0].mxu0
      %v916 = vadd.f32 0.0, %v915
      %v917 = vpop.f32.mrb[0].mxu0
      %v918 = vadd.f32 0.0, %v917
      %919 = vdwg.mxu0
      %920 = vmatprep.subr.bf16.mxu0 %v816
      %921 = vmatpush1.bf16.msra.mxu0 %v815
      %922 = vmatprep.subr.bf16.mxu0 %v820
      %923 = vmatpush1.bf16.msra.mxu0 %v819
      %924 = vmatprep.subr.bf16.mxu0 %v824
      %925 = vmatpush1.bf16.msra.mxu0 %v823
      %926 = vmatprep.subr.bf16.mxu0 %v828
      %927 = vmatpush1.bf16.msra.mxu0 %v827
      %928 = vmatprep.subr.bf16.mxu0 %v832
      %929 = vmatpush1.bf16.msra.mxu0 %v831
      %930 = vmatprep.subr.bf16.mxu0 %v836
      %931 = vmatpush1.bf16.msra.mxu0 %v835
      %932 = vmatprep.subr.bf16.mxu0 %v840
      %933 = vmatpush1.bf16.msra.mxu0 %v839
      %934 = vmatprep.subr.bf16.mxu0 %v844
      %935 = vmatpush1.bf16.msra.mxu0 %v843
      %936 = vmatprep.subr.bf16.mxu0 0
      %937 = vmatpush1.bf16.msra.mxu0 0
      %938 = vmatprep.subr.bf16.mxu0 0
      %939 = vmatpush1.bf16.msra.mxu0 0
      %940 = vmatprep.subr.bf16.mxu0 0
      %941 = vmatpush1.bf16.msra.mxu0 0
      %942 = vmatprep.subr.bf16.mxu0 0
      %943 = vmatpush1.bf16.msra.mxu0 0
      %944 = vmatprep.subr.bf16.mxu0 0
      %945 = vmatpush1.bf16.msra.mxu0 0
      %946 = vmatprep.subr.bf16.mxu0 0
      %947 = vmatpush1.bf16.msra.mxu0 0
      %948 = vmatprep.subr.bf16.mxu0 0
      %949 = vmatpush1.bf16.msra.mxu0 0
      %950 = vmatprep.subr.bf16.mxu0 0
      %951 = vmatpush1.bf16.msra.mxu0 0
      %952 = vmatprep.mubr.bf16.mxu0 0
      %953 = vmatmul.mubr.bf16.gmra.mrb[0].mxu0 %v684
      %v954 = vpop.f32.mrb[0].mxu0
      %v955 = vadd.f32 0.0, %v954
      %v956 = vpop.f32.mrb[0].mxu0
      %v957 = vadd.f32 0.0, %v956
      %v958 = vpop.f32.mrb[0].mxu0
      %v959 = vadd.f32 0.0, %v958
      %v960 = vpop.f32.mrb[0].mxu0
      %v961 = vadd.f32 0.0, %v960
      %962 = vdwg.mxu0
      %v963 = vadd.f32 %v676, %v912
      %v964 = vadd.f32 %v677, %v914
      %v965 = vadd.f32 %v678, %v955
      %v966 = vadd.f32 %v679, %v957
      %v967 = vadd.f32 %v680, %v916
      %v968 = vadd.f32 %v681, %v918
      %v969 = vadd.f32 %v682, %v959
      %v970 = vadd.f32 %v683, %v961
      %v971 = vxor.u32 %v963, 2147483648
      %v972 = vxor.u32 %v967, 2147483648
      %v973 = vmul.f32 %v971, 1.442695
      %v974 = vpow.pop %v973
      %v975 = vmul.f32 %v972, 1.442695
      %v976 = vpow.pop %v975
      %v977 = vadd.f32 %v974, 1.0
      %v978 = vadd.f32 %v976, 1.0
      %v979 = vrcp.pop %v977
      %v980 = vmul.f32 1.0, %v979
      %v981 = vrcp.pop %v978
      %v982 = vmul.f32 1.0, %v981
      %v983 = vxor.u32 %v964, 2147483648
      %v984 = vxor.u32 %v968, 2147483648
      %v985 = vmul.f32 %v983, 1.442695
      %v986 = vpow.pop %v985
      %v987 = vmul.f32 %v984, 1.442695
      %v988 = vpow.pop %v987
      %v989 = vadd.f32 %v986, 1.0
      %v990 = vadd.f32 %v988, 1.0
      %v991 = vrcp.pop %v989
      %v992 = vmul.f32 1.0, %v991
      %v993 = vrcp.pop %v990
      %v994 = vmul.f32 1.0, %v993
      %v995 = vtanh.pop %v965
      %v996 = vtanh.pop %v969
      %v997 = vxor.u32 %v966, 2147483648
      %v998 = vxor.u32 %v970, 2147483648
      %v999 = vmul.f32 %v997, 1.442695
      %v1000 = vpow.pop %v999
      %v1001 = vmul.f32 %v998, 1.442695
      %v1002 = vpow.pop %v1001
      %v1003 = vadd.f32 %v1000, 1.0
      %v1004 = vadd.f32 %v1002, 1.0
      %v1005 = vrcp.pop %v1003
      %v1006 = vmul.f32 1.0, %v1005
      %v1007 = vrcp.pop %v1004
      %v1008 = vmul.f32 1.0, %v1007
      %v1009 = vmul.f32 %v992, %v671
      %v1010 = vmul.f32 %v994, %v672
      %v1011 = vmul.f32 %v980, %v995
      %v1012 = vmul.f32 %v982, %v996
      %v1013 = vadd.f32 %v1009, %v1011
      %v1014 = vadd.f32 %v1010, %v1012
      %v1015 = vtanh.pop %v1013
      %v1016 = vtanh.pop %v1014
      %v1017 = vmul.f32 %v1006, %v1015
      %v1018 = vmul.f32 %v1008, %v1016
      %v1019 = vstv %s65
      %vm1020 = vcmp.gt.s32.totalorder %v67, %v1019
      %vm1021 = vcmp.gt.s32.totalorder %v68, %v1019
      %v1022 = vsel %vm1020, 1, 0
      %v1023 = vsel %vm1021, 1, 0
      %1024 = vset.pattern.permute.xlu0 0
      %1025 = vperm.xlu0 %1024, %v1022
      %v1026 = vpop.permute.xlu0 %1025
      %1027 = vset.pattern.permute.xlu0 0
      %1028 = vperm.xlu0 %1027, %v1023
      %v1029 = vpop.permute.xlu0 %1028
      %vm1030 = vcmp.eq.s32.totalorder %v1026, 1
      %vm1031 = vcmp.eq.s32.totalorder %v1029, 1
      %v1032 = vsel %vm1030, %v1017, %v669
      %v1033 = vsel %vm1031, %v1018, %v670
      %1034 = vst [vmem:[#allocation3] sm:$0xff] %v1032
      %1035 = vst [vmem:[#allocation3 + $0x8] sm:$0xff] %v1033
      %v1036 = vsel %vm1030, %v1013, %v671
      %v1037 = vsel %vm1031, %v1014, %v672
      %1038 = vst [vmem:[#allocation4] sm:$0xff] %v1036
      %1039 = vst [vmem:[#allocation4 + $0x8] sm:$0xff] %v1037
      %v1040 = vsel %vm1030, %v1017, 0.0
      %v1041 = vsel %vm1031, %v1018, 0.0
      %v1042 = vpack.c.bf16 %v1041, %v1040
      %v1044 = vunpack.c.l.b16 %v1042
      %v1045 = vunpack.c.h.b16 %v1042
      %v1046 = vpack.c.b16 %v1044, %v1044
      %v1047 = vpack.c.b16 %v1045, %v1045
      %1050 = vst [vmem:[#allocation13] sm:$0xf] %v1046
      %1051 = vst [vmem:[#allocation13 + $0x4] sm:$0xf] %v1047
      %v1052 = vld [vmem:[#allocation3] sm:$0xff]
      %v1053 = vld [vmem:[#allocation3 + $0x8] sm:$0xff]
      %v1054 = vld [vmem:[#allocation4] sm:$0xff]
      %v1055 = vld [vmem:[#allocation4 + $0x8] sm:$0xff]
      %s1056 = smul.u32 2, 4
      %s1057 = smul.addr %s1056, 8
      %s1058 = scalar_lea.vmem [#allocation2], %s1057
      %v1059 = vld [vmem:[%s1058] sm:$0xff]
      %v1060 = vld [vmem:[%s1058 + $0x8] sm:$0xff]
      %v1061 = vld [vmem:[%s1058 + $0x10] sm:$0xff]
      %v1062 = vld [vmem:[%s1058 + $0x18] sm:$0xff]
      %v1063 = vld [vmem:[%s1058 + $0x20] sm:$0xff]
      %v1064 = vld [vmem:[%s1058 + $0x28] sm:$0xff]
      %v1065 = vld [vmem:[%s1058 + $0x30] sm:$0xff]
      %v1066 = vld [vmem:[%s1058 + $0x38] sm:$0xff]
      %v1067 = vpack.c.bf16 %v1053, %v1052
      %v1068 = vld [vmem:[#allocation12] sm:$0xff]
      %v1069 = vld [vmem:[#allocation12 + $0x8] sm:$0xff]
      %v1070 = vld [vmem:[#allocation12 + $0x10] sm:$0xff]
      %v1071 = vld [vmem:[#allocation12 + $0x18] sm:$0xff]
      %v1072 = vld [vmem:[#allocation12 + $0x20] sm:$0xff]
      %v1073 = vld [vmem:[#allocation12 + $0x28] sm:$0xff]
      %v1074 = vld [vmem:[#allocation12 + $0x30] sm:$0xff]
      %v1075 = vld [vmem:[#allocation12 + $0x38] sm:$0xff]
      %v1076 = vld [vmem:[#allocation12 + $0x40] sm:$0xff]
      %v1077 = vld [vmem:[#allocation12 + $0x48] sm:$0xff]
      %v1078 = vld [vmem:[#allocation12 + $0x50] sm:$0xff]
      %v1079 = vld [vmem:[#allocation12 + $0x58] sm:$0xff]
      %v1080 = vld [vmem:[#allocation12 + $0x60] sm:$0xff]
      %v1081 = vld [vmem:[#allocation12 + $0x68] sm:$0xff]
      %v1082 = vld [vmem:[#allocation12 + $0x70] sm:$0xff]
      %v1083 = vld [vmem:[#allocation12 + $0x78] sm:$0xff]
      %v1084 = vld [vmem:[#allocation12 + $0x80] sm:$0xff]
      %v1085 = vld [vmem:[#allocation12 + $0x88] sm:$0xff]
      %v1086 = vld [vmem:[#allocation12 + $0x90] sm:$0xff]
      %v1087 = vld [vmem:[#allocation12 + $0x98] sm:$0xff]
      %v1088 = vld [vmem:[#allocation12 + $0xa0] sm:$0xff]
      %v1089 = vld [vmem:[#allocation12 + $0xa8] sm:$0xff]
      %v1090 = vld [vmem:[#allocation12 + $0xb0] sm:$0xff]
      %v1091 = vld [vmem:[#allocation12 + $0xb8] sm:$0xff]
      %v1092 = vld [vmem:[#allocation12 + $0xc0] sm:$0xff]
      %v1093 = vld [vmem:[#allocation12 + $0xc8] sm:$0xff]
      %v1094 = vld [vmem:[#allocation12 + $0xd0] sm:$0xff]
      %v1095 = vld [vmem:[#allocation12 + $0xd8] sm:$0xff]
      %v1096 = vld [vmem:[#allocation12 + $0xe0] sm:$0xff]
      %v1097 = vld [vmem:[#allocation12 + $0xe8] sm:$0xff]
      %v1098 = vld [vmem:[#allocation12 + $0xf0] sm:$0xff]
      %v1099 = vld [vmem:[#allocation12 + $0xf8] sm:$0xff]
      %v1132 = vunpack.c.l.b16 %v1068
      %v1133 = vunpack.c.h.b16 %v1068
      %v1134 = vunpack.c.l.b16 %v1069
      %v1135 = vunpack.c.h.b16 %v1069
      %v1136 = vunpack.c.l.b16 %v1070
      %v1137 = vunpack.c.h.b16 %v1070
      %v1138 = vunpack.c.l.b16 %v1071
      %v1139 = vunpack.c.h.b16 %v1071
      %v1140 = vunpack.c.l.b16 %v1072
      %v1141 = vunpack.c.h.b16 %v1072
      %v1142 = vunpack.c.l.b16 %v1073
      %v1143 = vunpack.c.h.b16 %v1073
      %v1144 = vunpack.c.l.b16 %v1074
      %v1145 = vunpack.c.h.b16 %v1074
      %v1146 = vunpack.c.l.b16 %v1075
      %v1147 = vunpack.c.h.b16 %v1075
      %v1148 = vunpack.c.l.b16 %v1076
      %v1149 = vunpack.c.h.b16 %v1076
      %v1150 = vunpack.c.l.b16 %v1077
      %v1151 = vunpack.c.h.b16 %v1077
      %v1152 = vunpack.c.l.b16 %v1078
      %v1153 = vunpack.c.h.b16 %v1078
      %v1154 = vunpack.c.l.b16 %v1079
      %v1155 = vunpack.c.h.b16 %v1079
      %v1156 = vunpack.c.l.b16 %v1080
      %v1157 = vunpack.c.h.b16 %v1080
      %v1158 = vunpack.c.l.b16 %v1081
      %v1159 = vunpack.c.h.b16 %v1081
      %v1160 = vunpack.c.l.b16 %v1082
      %v1161 = vunpack.c.h.b16 %v1082
      %v1162 = vunpack.c.l.b16 %v1083
      %v1163 = vunpack.c.h.b16 %v1083
      %v1164 = vunpack.c.l.b16 %v1084
      %v1165 = vunpack.c.h.b16 %v1084
      %v1166 = vunpack.c.l.b16 %v1085
      %v1167 = vunpack.c.h.b16 %v1085
      %v1168 = vunpack.c.l.b16 %v1086
      %v1169 = vunpack.c.h.b16 %v1086
      %v1170 = vunpack.c.l.b16 %v1087
      %v1171 = vunpack.c.h.b16 %v1087
      %v1172 = vunpack.c.l.b16 %v1088
      %v1173 = vunpack.c.h.b16 %v1088
      %v1174 = vunpack.c.l.b16 %v1089
      %v1175 = vunpack.c.h.b16 %v1089
      %v1176 = vunpack.c.l.b16 %v1090
      %v1177 = vunpack.c.h.b16 %v1090
      %v1178 = vunpack.c.l.b16 %v1091
      %v1179 = vunpack.c.h.b16 %v1091
      %v1180 = vunpack.c.l.b16 %v1092
      %v1181 = vunpack.c.h.b16 %v1092
      %v1182 = vunpack.c.l.b16 %v1093
      %v1183 = vunpack.c.h.b16 %v1093
      %v1184 = vunpack.c.l.b16 %v1094
      %v1185 = vunpack.c.h.b16 %v1094
      %v1186 = vunpack.c.l.b16 %v1095
      %v1187 = vunpack.c.h.b16 %v1095
      %v1188 = vunpack.c.l.b16 %v1096
      %v1189 = vunpack.c.h.b16 %v1096
      %v1190 = vunpack.c.l.b16 %v1097
      %v1191 = vunpack.c.h.b16 %v1097
      %v1192 = vunpack.c.l.b16 %v1098
      %v1193 = vunpack.c.h.b16 %v1098
      %v1194 = vunpack.c.l.b16 %v1099
      %v1195 = vunpack.c.h.b16 %v1099
      %v1196 = vpack.c.b16 %v1136, %v1132
      %v1197 = vpack.c.b16 %v1137, %v1133
      %v1198 = vpack.c.b16 %v1138, %v1134
      %v1199 = vpack.c.b16 %v1139, %v1135
      %v1200 = vpack.c.b16 %v1144, %v1140
      %v1201 = vpack.c.b16 %v1145, %v1141
      %v1202 = vpack.c.b16 %v1146, %v1142
      %v1203 = vpack.c.b16 %v1147, %v1143
      %v1204 = vpack.c.b16 %v1152, %v1148
      %v1205 = vpack.c.b16 %v1153, %v1149
      %v1206 = vpack.c.b16 %v1154, %v1150
      %v1207 = vpack.c.b16 %v1155, %v1151
      %v1208 = vpack.c.b16 %v1160, %v1156
      %v1209 = vpack.c.b16 %v1161, %v1157
      %v1210 = vpack.c.b16 %v1162, %v1158
      %v1211 = vpack.c.b16 %v1163, %v1159
      %v1212 = vpack.c.b16 %v1168, %v1164
      %v1213 = vpack.c.b16 %v1169, %v1165
      %v1214 = vpack.c.b16 %v1170, %v1166
      %v1215 = vpack.c.b16 %v1171, %v1167
      %v1216 = vpack.c.b16 %v1176, %v1172
      %v1217 = vpack.c.b16 %v1177, %v1173
      %v1218 = vpack.c.b16 %v1178, %v1174
      %v1219 = vpack.c.b16 %v1179, %v1175
      %v1220 = vpack.c.b16 %v1184, %v1180
      %v1221 = vpack.c.b16 %v1185, %v1181
      %v1222 = vpack.c.b16 %v1186, %v1182
      %v1223 = vpack.c.b16 %v1187, %v1183
      %v1224 = vpack.c.b16 %v1192, %v1188
      %v1225 = vpack.c.b16 %v1193, %v1189
      %v1226 = vpack.c.b16 %v1194, %v1190
      %v1227 = vpack.c.b16 %v1195, %v1191
      %1260 = vmatprep.subr.bf16.mxu0 %v1197
      %1261 = vmatpush1.bf16.msra.mxu0 %v1196
      %1262 = vmatprep.subr.bf16.mxu0 %v1201
      %1263 = vmatpush1.bf16.msra.mxu0 %v1200
      %1264 = vmatprep.subr.bf16.mxu0 %v1205
      %1265 = vmatpush1.bf16.msra.mxu0 %v1204
      %1266 = vmatprep.subr.bf16.mxu0 %v1209
      %1267 = vmatpush1.bf16.msra.mxu0 %v1208
      %1268 = vmatprep.subr.bf16.mxu0 %v1213
      %1269 = vmatpush1.bf16.msra.mxu0 %v1212
      %1270 = vmatprep.subr.bf16.mxu0 %v1217
      %1271 = vmatpush1.bf16.msra.mxu0 %v1216
      %1272 = vmatprep.subr.bf16.mxu0 %v1221
      %1273 = vmatpush1.bf16.msra.mxu0 %v1220
      %1274 = vmatprep.subr.bf16.mxu0 %v1225
      %1275 = vmatpush1.bf16.msra.mxu0 %v1224
      %1276 = vmatprep.subr.bf16.mxu0 0
      %1277 = vmatpush1.bf16.msra.mxu0 0
      %1278 = vmatprep.subr.bf16.mxu0 0
      %1279 = vmatpush1.bf16.msra.mxu0 0
      %1280 = vmatprep.subr.bf16.mxu0 0
      %1281 = vmatpush1.bf16.msra.mxu0 0
      %1282 = vmatprep.subr.bf16.mxu0 0
      %1283 = vmatpush1.bf16.msra.mxu0 0
      %1284 = vmatprep.subr.bf16.mxu0 0
      %1285 = vmatpush1.bf16.msra.mxu0 0
      %1286 = vmatprep.subr.bf16.mxu0 0
      %1287 = vmatpush1.bf16.msra.mxu0 0
      %1288 = vmatprep.subr.bf16.mxu0 0
      %1289 = vmatpush1.bf16.msra.mxu0 0
      %1290 = vmatprep.subr.bf16.mxu0 0
      %1291 = vmatpush1.bf16.msra.mxu0 0
      %1292 = vmatprep.mubr.bf16.mxu0 0
      %1293 = vmatmul.mubr.bf16.gmra.mrb[0].mxu0 %v1067
      %v1294 = vpop.f32.mrb[0].mxu0
      %v1295 = vadd.f32 0.0, %v1294
      %v1296 = vpop.f32.mrb[0].mxu0
      %v1297 = vadd.f32 0.0, %v1296
      %v1298 = vpop.f32.mrb[0].mxu0
      %v1299 = vadd.f32 0.0, %v1298
      %v1300 = vpop.f32.mrb[0].mxu0
      %v1301 = vadd.f32 0.0, %v1300
      %1302 = vdwg.mxu0
      %1303 = vmatprep.subr.bf16.mxu0 %v1199
      %1304 = vmatpush1.bf16.msra.mxu0 %v1198
      %1305 = vmatprep.subr.bf16.mxu0 %v1203
      %1306 = vmatpush1.bf16.msra.mxu0 %v1202
      %1307 = vmatprep.subr.bf16.mxu0 %v1207
      %1308 = vmatpush1.bf16.msra.mxu0 %v1206
      %1309 = vmatprep.subr.bf16.mxu0 %v1211
      %1310 = vmatpush1.bf16.msra.mxu0 %v1210
      %1311 = vmatprep.subr.bf16.mxu0 %v1215
      %1312 = vmatpush1.bf16.msra.mxu0 %v1214
      %1313 = vmatprep.subr.bf16.mxu0 %v1219
      %1314 = vmatpush1.bf16.msra.mxu0 %v1218
      %1315 = vmatprep.subr.bf16.mxu0 %v1223
      %1316 = vmatpush1.bf16.msra.mxu0 %v1222
      %1317 = vmatprep.subr.bf16.mxu0 %v1227
      %1318 = vmatpush1.bf16.msra.mxu0 %v1226
      %1319 = vmatprep.subr.bf16.mxu0 0
      %1320 = vmatpush1.bf16.msra.mxu0 0
      %1321 = vmatprep.subr.bf16.mxu0 0
      %1322 = vmatpush1.bf16.msra.mxu0 0
      %1323 = vmatprep.subr.bf16.mxu0 0
      %1324 = vmatpush1.bf16.msra.mxu0 0
      %1325 = vmatprep.subr.bf16.mxu0 0
      %1326 = vmatpush1.bf16.msra.mxu0 0
      %1327 = vmatprep.subr.bf16.mxu0 0
      %1328 = vmatpush1.bf16.msra.mxu0 0
      %1329 = vmatprep.subr.bf16.mxu0 0
      %1330 = vmatpush1.bf16.msra.mxu0 0
      %1331 = vmatprep.subr.bf16.mxu0 0
      %1332 = vmatpush1.bf16.msra.mxu0 0
      %1333 = vmatprep.subr.bf16.mxu0 0
      %1334 = vmatpush1.bf16.msra.mxu0 0
      %1335 = vmatprep.mubr.bf16.mxu0 0
      %1336 = vmatmul.mubr.bf16.gmra.mrb[0].mxu0 %v1067
      %v1337 = vpop.f32.mrb[0].mxu0
      %v1338 = vadd.f32 0.0, %v1337
      %v1339 = vpop.f32.mrb[0].mxu0
      %v1340 = vadd.f32 0.0, %v1339
      %v1341 = vpop.f32.mrb[0].mxu0
      %v1342 = vadd.f32 0.0, %v1341
      %v1343 = vpop.f32.mrb[0].mxu0
      %v1344 = vadd.f32 0.0, %v1343
      %1345 = vdwg.mxu0
      %v1346 = vadd.f32 %v1059, %v1295
      %v1347 = vadd.f32 %v1060, %v1297
      %v1348 = vadd.f32 %v1061, %v1338
      %v1349 = vadd.f32 %v1062, %v1340
      %v1350 = vadd.f32 %v1063, %v1299
      %v1351 = vadd.f32 %v1064, %v1301
      %v1352 = vadd.f32 %v1065, %v1342
      %v1353 = vadd.f32 %v1066, %v1344
      %v1354 = vxor.u32 %v1346, 2147483648
      %v1355 = vxor.u32 %v1350, 2147483648
      %v1356 = vmul.f32 %v1354, 1.442695
      %v1357 = vpow.pop %v1356
      %v1358 = vmul.f32 %v1355, 1.442695
      %v1359 = vpow.pop %v1358
      %v1360 = vadd.f32 %v1357, 1.0
      %v1361 = vadd.f32 %v1359, 1.0
      %v1362 = vrcp.pop %v1360
      %v1363 = vmul.f32 1.0, %v1362
      %v1364 = vrcp.pop %v1361
      %v1365 = vmul.f32 1.0, %v1364
      %v1366 = vxor.u32 %v1347, 2147483648
      %v1367 = vxor.u32 %v1351, 2147483648
      %v1368 = vmul.f32 %v1366, 1.442695
      %v1369 = vpow.pop %v1368
      %v1370 = vmul.f32 %v1367, 1.442695
      %v1371 = vpow.pop %v1370
      %v1372 = vadd.f32 %v1369, 1.0
      %v1373 = vadd.f32 %v1371, 1.0
      %v1374 = vrcp.pop %v1372
      %v1375 = vmul.f32 1.0, %v1374
      %v1376 = vrcp.pop %v1373
      %v1377 = vmul.f32 1.0, %v1376
      %v1378 = vtanh.pop %v1348
      %v1379 = vtanh.pop %v1352
      %v1380 = vxor.u32 %v1349, 2147483648
      %v1381 = vxor.u32 %v1353, 2147483648
      %v1382 = vmul.f32 %v1380, 1.442695
      %v1383 = vpow.pop %v1382
      %v1384 = vmul.f32 %v1381, 1.442695
      %v1385 = vpow.pop %v1384
      %v1386 = vadd.f32 %v1383, 1.0
      %v1387 = vadd.f32 %v1385, 1.0
      %v1388 = vrcp.pop %v1386
      %v1389 = vmul.f32 1.0, %v1388
      %v1390 = vrcp.pop %v1387
      %v1391 = vmul.f32 1.0, %v1390
      %v1392 = vmul.f32 %v1375, %v1054
      %v1393 = vmul.f32 %v1377, %v1055
      %v1394 = vmul.f32 %v1363, %v1378
      %v1395 = vmul.f32 %v1365, %v1379
      %v1396 = vadd.f32 %v1392, %v1394
      %v1397 = vadd.f32 %v1393, %v1395
      %v1398 = vtanh.pop %v1396
      %v1399 = vtanh.pop %v1397
      %v1400 = vmul.f32 %v1389, %v1398
      %v1401 = vmul.f32 %v1391, %v1399
      %s1402 = sadd.s32 %s65, 1
      %v1403 = vstv %s1402
      %vm1404 = vcmp.gt.s32.totalorder %v67, %v1403
      %vm1405 = vcmp.gt.s32.totalorder %v68, %v1403
      %v1406 = vsel %vm1404, 1, 0
      %v1407 = vsel %vm1405, 1, 0
      %1408 = vset.pattern.permute.xlu0 0
      %1409 = vperm.xlu0 %1408, %v1406
      %v1410 = vpop.permute.xlu0 %1409
      %1411 = vset.pattern.permute.xlu0 0
      %1412 = vperm.xlu0 %1411, %v1407
      %v1413 = vpop.permute.xlu0 %1412
      %vm1414 = vcmp.eq.s32.totalorder %v1410, 1
      %vm1415 = vcmp.eq.s32.totalorder %v1413, 1
      %v1416 = vsel %vm1414, %v1400, %v1052
      %v1417 = vsel %vm1415, %v1401, %v1053
      %1418 = vst [vmem:[#allocation3] sm:$0xff] %v1416
      %1419 = vst [vmem:[#allocation3 + $0x8] sm:$0xff] %v1417
      %v1420 = vsel %vm1414, %v1396, %v1054
      %v1421 = vsel %vm1415, %v1397, %v1055
      %1422 = vst [vmem:[#allocation4] sm:$0xff] %v1420
      %1423 = vst [vmem:[#allocation4 + $0x8] sm:$0xff] %v1421
      %v1424 = vsel %vm1414, %v1400, 0.0
      %v1425 = vsel %vm1415, %v1401, 0.0
      %v1426 = vpack.c.bf16 %v1425, %v1424
      %v1428 = vunpack.c.l.b16 %v1426
      %v1429 = vunpack.c.h.b16 %v1426
      %v1430 = vpack.c.b16 %v1428, %v1428
      %v1431 = vpack.c.b16 %v1429, %v1429
      %s1434 = scalar_lea.vmem [#allocation13], 8
      %1435 = vst [vmem:[%s1434] sm:$0xf] %v1430
      %1436 = vst [vmem:[%s1434 + $0x4] sm:$0xf] %v1431
      %v1437 = vld [vmem:[#allocation3] sm:$0xff]
      %v1438 = vld [vmem:[#allocation3 + $0x8] sm:$0xff]
      %v1439 = vld [vmem:[#allocation4] sm:$0xff]
      %v1440 = vld [vmem:[#allocation4 + $0x8] sm:$0xff]
      %s1441 = smul.u32 4, 4
      %s1442 = smul.addr %s1441, 8
      %s1443 = scalar_lea.vmem [#allocation2], %s1442
      %v1444 = vld [vmem:[%s1443] sm:$0xff]
      %v1445 = vld [vmem:[%s1443 + $0x8] sm:$0xff]
      %v1446 = vld [vmem:[%s1443 + $0x10] sm:$0xff]
      %v1447 = vld [vmem:[%s1443 + $0x18] sm:$0xff]
      %v1448 = vld [vmem:[%s1443 + $0x20] sm:$0xff]
      %v1449 = vld [vmem:[%s1443 + $0x28] sm:$0xff]
      %v1450 = vld [vmem:[%s1443 + $0x30] sm:$0xff]
      %v1451 = vld [vmem:[%s1443 + $0x38] sm:$0xff]
      %v1452 = vpack.c.bf16 %v1438, %v1437
      %v1453 = vld [vmem:[#allocation12] sm:$0xff]
      %v1454 = vld [vmem:[#allocation12 + $0x8] sm:$0xff]
      %v1455 = vld [vmem:[#allocation12 + $0x10] sm:$0xff]
      %v1456 = vld [vmem:[#allocation12 + $0x18] sm:$0xff]
      %v1457 = vld [vmem:[#allocation12 + $0x20] sm:$0xff]
      %v1458 = vld [vmem:[#allocation12 + $0x28] sm:$0xff]
      %v1459 = vld [vmem:[#allocation12 + $0x30] sm:$0xff]
      %v1460 = vld [vmem:[#allocation12 + $0x38] sm:$0xff]
      %v1461 = vld [vmem:[#allocation12 + $0x40] sm:$0xff]
      %v1462 = vld [vmem:[#allocation12 + $0x48] sm:$0xff]
      %v1463 = vld [vmem:[#allocation12 + $0x50] sm:$0xff]
      %v1464 = vld [vmem:[#allocation12 + $0x58] sm:$0xff]
      %v1465 = vld [vmem:[#allocation12 + $0x60] sm:$0xff]
      %v1466 = vld [vmem:[#allocation12 + $0x68] sm:$0xff]
      %v1467 = vld [vmem:[#allocation12 + $0x70] sm:$0xff]
      %v1468 = vld [vmem:[#allocation12 + $0x78] sm:$0xff]
      %v1469 = vld [vmem:[#allocation12 + $0x80] sm:$0xff]
      %v1470 = vld [vmem:[#allocation12 + $0x88] sm:$0xff]
      %v1471 = vld [vmem:[#allocation12 + $0x90] sm:$0xff]
      %v1472 = vld [vmem:[#allocation12 + $0x98] sm:$0xff]
      %v1473 = vld [vmem:[#allocation12 + $0xa0] sm:$0xff]
      %v1474 = vld [vmem:[#allocation12 + $0xa8] sm:$0xff]
      %v1475 = vld [vmem:[#allocation12 + $0xb0] sm:$0xff]
      %v1476 = vld [vmem:[#allocation12 + $0xb8] sm:$0xff]
      %v1477 = vld [vmem:[#allocation12 + $0xc0] sm:$0xff]
      %v1478 = vld [vmem:[#allocation12 + $0xc8] sm:$0xff]
      %v1479 = vld [vmem:[#allocation12 + $0xd0] sm:$0xff]
      %v1480 = vld [vmem:[#allocation12 + $0xd8] sm:$0xff]
      %v1481 = vld [vmem:[#allocation12 + $0xe0] sm:$0xff]
      %v1482 = vld [vmem:[#allocation12 + $0xe8] sm:$0xff]
      %v1483 = vld [vmem:[#allocation12 + $0xf0] sm:$0xff]
      %v1484 = vld [vmem:[#allocation12 + $0xf8] sm:$0xff]
      %v1517 = vunpack.c.l.b16 %v1453
      %v1518 = vunpack.c.h.b16 %v1453
      %v1519 = vunpack.c.l.b16 %v1454
      %v1520 = vunpack.c.h.b16 %v1454
      %v1521 = vunpack.c.l.b16 %v1455
      %v1522 = vunpack.c.h.b16 %v1455
      %v1523 = vunpack.c.l.b16 %v1456
      %v1524 = vunpack.c.h.b16 %v1456
      %v1525 = vunpack.c.l.b16 %v1457
      %v1526 = vunpack.c.h.b16 %v1457
      %v1527 = vunpack.c.l.b16 %v1458
      %v1528 = vunpack.c.h.b16 %v1458
      %v1529 = vunpack.c.l.b16 %v1459
      %v1530 = vunpack.c.h.b16 %v1459
      %v1531 = vunpack.c.l.b16 %v1460
      %v1532 = vunpack.c.h.b16 %v1460
      %v1533 = vunpack.c.l.b16 %v1461
      %v1534 = vunpack.c.h.b16 %v1461
      %v1535 = vunpack.c.l.b16 %v1462
      %v1536 = vunpack.c.h.b16 %v1462
      %v1537 = vunpack.c.l.b16 %v1463
      %v1538 = vunpack.c.h.b16 %v1463
      %v1539 = vunpack.c.l.b16 %v1464
      %v1540 = vunpack.c.h.b16 %v1464
      %v1541 = vunpack.c.l.b16 %v1465
      %v1542 = vunpack.c.h.b16 %v1465
      %v1543 = vunpack.c.l.b16 %v1466
      %v1544 = vunpack.c.h.b16 %v1466
      %v1545 = vunpack.c.l.b16 %v1467
      %v1546 = vunpack.c.h.b16 %v1467
      %v1547 = vunpack.c.l.b16 %v1468
      %v1548 = vunpack.c.h.b16 %v1468
      %v1549 = vunpack.c.l.b16 %v1469
      %v1550 = vunpack.c.h.b16 %v1469
      %v1551 = vunpack.c.l.b16 %v1470
      %v1552 = vunpack.c.h.b16 %v1470
      %v1553 = vunpack.c.l.b16 %v1471
      %v1554 = vunpack.c.h.b16 %v1471
      %v1555 = vunpack.c.l.b16 %v1472
      %v1556 = vunpack.c.h.b16 %v1472
      %v1557 = vunpack.c.l.b16 %v1473
      %v1558 = vunpack.c.h.b16 %v1473
      %v1559 = vunpack.c.l.b16 %v1474
      %v1560 = vunpack.c.h.b16 %v1474
      %v1561 = vunpack.c.l.b16 %v1475
      %v1562 = vunpack.c.h.b16 %v1475
      %v1563 = vunpack.c.l.b16 %v1476
      %v1564 = vunpack.c.h.b16 %v1476
      %v1565 = vunpack.c.l.b16 %v1477
      %v1566 = vunpack.c.h.b16 %v1477
      %v1567 = vunpack.c.l.b16 %v1478
      %v1568 = vunpack.c.h.b16 %v1478
      %v1569 = vunpack.c.l.b16 %v1479
      %v1570 = vunpack.c.h.b16 %v1479
      %v1571 = vunpack.c.l.b16 %v1480
      %v1572 = vunpack.c.h.b16 %v1480
      %v1573 = vunpack.c.l.b16 %v1481
      %v1574 = vunpack.c.h.b16 %v1481
      %v1575 = vunpack.c.l.b16 %v1482
      %v1576 = vunpack.c.h.b16 %v1482
      %v1577 = vunpack.c.l.b16 %v1483
      %v1578 = vunpack.c.h.b16 %v1483
      %v1579 = vunpack.c.l.b16 %v1484
      %v1580 = vunpack.c.h.b16 %v1484
      %v1581 = vpack.c.b16 %v1521, %v1517
      %v1582 = vpack.c.b16 %v1522, %v1518
      %v1583 = vpack.c.b16 %v1523, %v1519
      %v1584 = vpack.c.b16 %v1524, %v1520
      %v1585 = vpack.c.b16 %v1529, %v1525
      %v1586 = vpack.c.b16 %v1530, %v1526
      %v1587 = vpack.c.b16 %v1531, %v1527
      %v1588 = vpack.c.b16 %v1532, %v1528
      %v1589 = vpack.c.b16 %v1537, %v1533
      %v1590 = vpack.c.b16 %v1538, %v1534
      %v1591 = vpack.c.b16 %v1539, %v1535
      %v1592 = vpack.c.b16 %v1540, %v1536
      %v1593 = vpack.c.b16 %v1545, %v1541
      %v1594 = vpack.c.b16 %v1546, %v1542
      %v1595 = vpack.c.b16 %v1547, %v1543
      %v1596 = vpack.c.b16 %v1548, %v1544
      %v1597 = vpack.c.b16 %v1553, %v1549
      %v1598 = vpack.c.b16 %v1554, %v1550
      %v1599 = vpack.c.b16 %v1555, %v1551
      %v1600 = vpack.c.b16 %v1556, %v1552
      %v1601 = vpack.c.b16 %v1561, %v1557
      %v1602 = vpack.c.b16 %v1562, %v1558
      %v1603 = vpack.c.b16 %v1563, %v1559
      %v1604 = vpack.c.b16 %v1564, %v1560
      %v1605 = vpack.c.b16 %v1569, %v1565
      %v1606 = vpack.c.b16 %v1570, %v1566
      %v1607 = vpack.c.b16 %v1571, %v1567
      %v1608 = vpack.c.b16 %v1572, %v1568
      %v1609 = vpack.c.b16 %v1577, %v1573
      %v1610 = vpack.c.b16 %v1578, %v1574
      %v1611 = vpack.c.b16 %v1579, %v1575
      %v1612 = vpack.c.b16 %v1580, %v1576
      %1645 = vmatprep.subr.bf16.mxu0 %v1582
      %1646 = vmatpush1.bf16.msra.mxu0 %v1581
      %1647 = vmatprep.subr.bf16.mxu0 %v1586
      %1648 = vmatpush1.bf16.msra.mxu0 %v1585
      %1649 = vmatprep.subr.bf16.mxu0 %v1590
      %1650 = vmatpush1.bf16.msra.mxu0 %v1589
      %1651 = vmatprep.subr.bf16.mxu0 %v1594
      %1652 = vmatpush1.bf16.msra.mxu0 %v1593
      %1653 = vmatprep.subr.bf16.mxu0 %v1598
      %1654 = vmatpush1.bf16.msra.mxu0 %v1597
      %1655 = vmatprep.subr.bf16.mxu0 %v1602
      %1656 = vmatpush1.bf16.msra.mxu0 %v1601
      %1657 = vmatprep.subr.bf16.mxu0 %v1606
      %1658 = vmatpush1.bf16.msra.mxu0 %v1605
      %1659 = vmatprep.subr.bf16.mxu0 %v1610
      %1660 = vmatpush1.bf16.msra.mxu0 %v1609
      %1661 = vmatprep.subr.bf16.mxu0 0
      %1662 = vmatpush1.bf16.msra.mxu0 0
      %1663 = vmatprep.subr.bf16.mxu0 0
      %1664 = vmatpush1.bf16.msra.mxu0 0
      %1665 = vmatprep.subr.bf16.mxu0 0
      %1666 = vmatpush1.bf16.msra.mxu0 0
      %1667 = vmatprep.subr.bf16.mxu0 0
      %1668 = vmatpush1.bf16.msra.mxu0 0
      %1669 = vmatprep.subr.bf16.mxu0 0
      %1670 = vmatpush1.bf16.msra.mxu0 0
      %1671 = vmatprep.subr.bf16.mxu0 0
      %1672 = vmatpush1.bf16.msra.mxu0 0
      %1673 = vmatprep.subr.bf16.mxu0 0
      %1674 = vmatpush1.bf16.msra.mxu0 0
      %1675 = vmatprep.subr.bf16.mxu0 0
      %1676 = vmatpush1.bf16.msra.mxu0 0
      %1677 = vmatprep.mubr.bf16.mxu0 0
      %1678 = vmatmul.mubr.bf16.gmra.mrb[0].mxu0 %v1452
      %v1679 = vpop.f32.mrb[0].mxu0
      %v1680 = vadd.f32 0.0, %v1679
      %v1681 = vpop.f32.mrb[0].mxu0
      %v1682 = vadd.f32 0.0, %v1681
      %v1683 = vpop.f32.mrb[0].mxu0
      %v1684 = vadd.f32 0.0, %v1683
      %v1685 = vpop.f32.mrb[0].mxu0
      %v1686 = vadd.f32 0.0, %v1685
      %1687 = vdwg.mxu0
      %1688 = vmatprep.subr.bf16.mxu0 %v1584
      %1689 = vmatpush1.bf16.msra.mxu0 %v1583
      %1690 = vmatprep.subr.bf16.mxu0 %v1588
      %1691 = vmatpush1.bf16.msra.mxu0 %v1587
      %1692 = vmatprep.subr.bf16.mxu0 %v1592
      %1693 = vmatpush1.bf16.msra.mxu0 %v1591
      %1694 = vmatprep.subr.bf16.mxu0 %v1596
      %1695 = vmatpush1.bf16.msra.mxu0 %v1595
      %1696 = vmatprep.subr.bf16.mxu0 %v1600
      %1697 = vmatpush1.bf16.msra.mxu0 %v1599
      %1698 = vmatprep.subr.bf16.mxu0 %v1604
      %1699 = vmatpush1.bf16.msra.mxu0 %v1603
      %1700 = vmatprep.subr.bf16.mxu0 %v1608
      %1701 = vmatpush1.bf16.msra.mxu0 %v1607
      %1702 = vmatprep.subr.bf16.mxu0 %v1612
      %1703 = vmatpush1.bf16.msra.mxu0 %v1611
      %1704 = vmatprep.subr.bf16.mxu0 0
      %1705 = vmatpush1.bf16.msra.mxu0 0
      %1706 = vmatprep.subr.bf16.mxu0 0
      %1707 = vmatpush1.bf16.msra.mxu0 0
      %1708 = vmatprep.subr.bf16.mxu0 0
      %1709 = vmatpush1.bf16.msra.mxu0 0
      %1710 = vmatprep.subr.bf16.mxu0 0
      %1711 = vmatpush1.bf16.msra.mxu0 0
      %1712 = vmatprep.subr.bf16.mxu0 0
      %1713 = vmatpush1.bf16.msra.mxu0 0
      %1714 = vmatprep.subr.bf16.mxu0 0
      %1715 = vmatpush1.bf16.msra.mxu0 0
      %1716 = vmatprep.subr.bf16.mxu0 0
      %1717 = vmatpush1.bf16.msra.mxu0 0
      %1718 = vmatprep.subr.bf16.mxu0 0
      %1719 = vmatpush1.bf16.msra.mxu0 0
      %1720 = vmatprep.mubr.bf16.mxu0 0
      %1721 = vmatmul.mubr.bf16.gmra.mrb[0].mxu0 %v1452
      %v1722 = vpop.f32.mrb[0].mxu0
      %v1723 = vadd.f32 0.0, %v1722
      %v1724 = vpop.f32.mrb[0].mxu0
      %v1725 = vadd.f32 0.0, %v1724
      %v1726 = vpop.f32.mrb[0].mxu0
      %v1727 = vadd.f32 0.0, %v1726
      %v1728 = vpop.f32.mrb[0].mxu0
      %v1729 = vadd.f32 0.0, %v1728
      %1730 = vdwg.mxu0
      %v1731 = vadd.f32 %v1444, %v1680
      %v1732 = vadd.f32 %v1445, %v1682
      %v1733 = vadd.f32 %v1446, %v1723
      %v1734 = vadd.f32 %v1447, %v1725
      %v1735 = vadd.f32 %v1448, %v1684
      %v1736 = vadd.f32 %v1449, %v1686
      %v1737 = vadd.f32 %v1450, %v1727
      %v1738 = vadd.f32 %v1451, %v1729
      %v1739 = vxor.u32 %v1731, 2147483648
      %v1740 = vxor.u32 %v1735, 2147483648
      %v1741 = vmul.f32 %v1739, 1.442695
      %v1742 = vpow.pop %v1741
      %v1743 = vmul.f32 %v1740, 1.442695
      %v1744 = vpow.pop %v1743
      %v1745 = vadd.f32 %v1742, 1.0
      %v1746 = vadd.f32 %v1744, 1.0
      %v1747 = vrcp.pop %v1745
      %v1748 = vmul.f32 1.0, %v1747
      %v1749 = vrcp.pop %v1746
      %v1750 = vmul.f32 1.0, %v1749
      %v1751 = vxor.u32 %v1732, 2147483648
      %v1752 = vxor.u32 %v1736, 2147483648
      %v1753 = vmul.f32 %v1751, 1.442695
      %v1754 = vpow.pop %v1753
      %v1755 = vmul.f32 %v1752, 1.442695
      %v1756 = vpow.pop %v1755
      %v1757 = vadd.f32 %v1754, 1.0
      %v1758 = vadd.f32 %v1756, 1.0
      %v1759 = vrcp.pop %v1757
      %v1760 = vmul.f32 1.0, %v1759
      %v1761 = vrcp.pop %v1758
      %v1762 = vmul.f32 1.0, %v1761
      %v1763 = vtanh.pop %v1733
      %v1764 = vtanh.pop %v1737
      %v1765 = vxor.u32 %v1734, 2147483648
      %v1766 = vxor.u32 %v1738, 2147483648
      %v1767 = vmul.f32 %v1765, 1.442695
      %v1768 = vpow.pop %v1767
      %v1769 = vmul.f32 %v1766, 1.442695
      %v1770 = vpow.pop %v1769
      %v1771 = vadd.f32 %v1768, 1.0
      %v1772 = vadd.f32 %v1770, 1.0
      %v1773 = vrcp.pop %v1771
      %v1774 = vmul.f32 1.0, %v1773
      %v1775 = vrcp.pop %v1772
      %v1776 = vmul.f32 1.0, %v1775
      %v1777 = vmul.f32 %v1760, %v1439
      %v1778 = vmul.f32 %v1762, %v1440
      %v1779 = vmul.f32 %v1748, %v1763
      %v1780 = vmul.f32 %v1750, %v1764
      %v1781 = vadd.f32 %v1777, %v1779
      %v1782 = vadd.f32 %v1778, %v1780
      %v1783 = vtanh.pop %v1781
      %v1784 = vtanh.pop %v1782
      %v1785 = vmul.f32 %v1774, %v1783
      %v1786 = vmul.f32 %v1776, %v1784
      %s1787 = sadd.s32 %s65, 2
      %v1788 = vstv %s1787
      %vm1789 = vcmp.gt.s32.totalorder %v67, %v1788
      %vm1790 = vcmp.gt.s32.totalorder %v68, %v1788
      %v1791 = vsel %vm1789, 1, 0
      %v1792 = vsel %vm1790, 1, 0
      %1793 = vset.pattern.permute.xlu0 0
      %1794 = vperm.xlu0 %1793, %v1791
      %v1795 = vpop.permute.xlu0 %1794
      %1796 = vset.pattern.permute.xlu0 0
      %1797 = vperm.xlu0 %1796, %v1792
      %v1798 = vpop.permute.xlu0 %1797
      %vm1799 = vcmp.eq.s32.totalorder %v1795, 1
      %vm1800 = vcmp.eq.s32.totalorder %v1798, 1
      %v1801 = vsel %vm1799, %v1785, %v1437
      %v1802 = vsel %vm1800, %v1786, %v1438
      %1803 = vst [vmem:[#allocation3] sm:$0xff] %v1801
      %1804 = vst [vmem:[#allocation3 + $0x8] sm:$0xff] %v1802
      %v1805 = vsel %vm1799, %v1781, %v1439
      %v1806 = vsel %vm1800, %v1782, %v1440
      %1807 = vst [vmem:[#allocation4] sm:$0xff] %v1805
      %1808 = vst [vmem:[#allocation4 + $0x8] sm:$0xff] %v1806
      %v1809 = vsel %vm1799, %v1785, 0.0
      %v1810 = vsel %vm1800, %v1786, 0.0
      %v1811 = vpack.c.bf16 %v1810, %v1809
      %v1813 = vunpack.c.l.b16 %v1811
      %v1814 = vunpack.c.h.b16 %v1811
      %v1815 = vpack.c.b16 %v1813, %v1813
      %v1816 = vpack.c.b16 %v1814, %v1814
      %s1819 = scalar_lea.vmem [#allocation13], 16
      %1820 = vst [vmem:[%s1819] sm:$0xf] %v1815
      %1821 = vst [vmem:[%s1819 + $0x4] sm:$0xf] %v1816
      %v1822 = vld [vmem:[#allocation3] sm:$0xff]
      %v1823 = vld [vmem:[#allocation3 + $0x8] sm:$0xff]
      %v1824 = vld [vmem:[#allocation4] sm:$0xff]
      %v1825 = vld [vmem:[#allocation4 + $0x8] sm:$0xff]
      %s1826 = smul.u32 6, 4
      %s1827 = smul.addr %s1826, 8
      %s1828 = scalar_lea.vmem [#allocation2], %s1827
      %v1829 = vld [vmem:[%s1828] sm:$0xff]
      %v1830 = vld [vmem:[%s1828 + $0x8] sm:$0xff]
      %v1831 = vld [vmem:[%s1828 + $0x10] sm:$0xff]
      %v1832 = vld [vmem:[%s1828 + $0x18] sm:$0xff]
      %v1833 = vld [vmem:[%s1828 + $0x20] sm:$0xff]
      %v1834 = vld [vmem:[%s1828 + $0x28] sm:$0xff]
      %v1835 = vld [vmem:[%s1828 + $0x30] sm:$0xff]
      %v1836 = vld [vmem:[%s1828 + $0x38] sm:$0xff]
      %v1837 = vpack.c.bf16 %v1823, %v1822
      %v1838 = vld [vmem:[#allocation12] sm:$0xff]
      %v1839 = vld [vmem:[#allocation12 + $0x8] sm:$0xff]
      %v1840 = vld [vmem:[#allocation12 + $0x10] sm:$0xff]
      %v1841 = vld [vmem:[#allocation12 + $0x18] sm:$0xff]
      %v1842 = vld [vmem:[#allocation12 + $0x20] sm:$0xff]
      %v1843 = vld [vmem:[#allocation12 + $0x28] sm:$0xff]
      %v1844 = vld [vmem:[#allocation12 + $0x30] sm:$0xff]
      %v1845 = vld [vmem:[#allocation12 + $0x38] sm:$0xff]
      %v1846 = vld [vmem:[#allocation12 + $0x40] sm:$0xff]
      %v1847 = vld [vmem:[#allocation12 + $0x48] sm:$0xff]
      %v1848 = vld [vmem:[#allocation12 + $0x50] sm:$0xff]
      %v1849 = vld [vmem:[#allocation12 + $0x58] sm:$0xff]
      %v1850 = vld [vmem:[#allocation12 + $0x60] sm:$0xff]
      %v1851 = vld [vmem:[#allocation12 + $0x68] sm:$0xff]
      %v1852 = vld [vmem:[#allocation12 + $0x70] sm:$0xff]
      %v1853 = vld [vmem:[#allocation12 + $0x78] sm:$0xff]
      %v1854 = vld [vmem:[#allocation12 + $0x80] sm:$0xff]
      %v1855 = vld [vmem:[#allocation12 + $0x88] sm:$0xff]
      %v1856 = vld [vmem:[#allocation12 + $0x90] sm:$0xff]
      %v1857 = vld [vmem:[#allocation12 + $0x98] sm:$0xff]
      %v1858 = vld [vmem:[#allocation12 + $0xa0] sm:$0xff]
      %v1859 = vld [vmem:[#allocation12 + $0xa8] sm:$0xff]
      %v1860 = vld [vmem:[#allocation12 + $0xb0] sm:$0xff]
      %v1861 = vld [vmem:[#allocation12 + $0xb8] sm:$0xff]
      %v1862 = vld [vmem:[#allocation12 + $0xc0] sm:$0xff]
      %v1863 = vld [vmem:[#allocation12 + $0xc8] sm:$0xff]
      %v1864 = vld [vmem:[#allocation12 + $0xd0] sm:$0xff]
      %v1865 = vld [vmem:[#allocation12 + $0xd8] sm:$0xff]
      %v1866 = vld [vmem:[#allocation12 + $0xe0] sm:$0xff]
      %v1867 = vld [vmem:[#allocation12 + $0xe8] sm:$0xff]
      %v1868 = vld [vmem:[#allocation12 + $0xf0] sm:$0xff]
      %v1869 = vld [vmem:[#allocation12 + $0xf8] sm:$0xff]
      %v1902 = vunpack.c.l.b16 %v1838
      %v1903 = vunpack.c.h.b16 %v1838
      %v1904 = vunpack.c.l.b16 %v1839
      %v1905 = vunpack.c.h.b16 %v1839
      %v1906 = vunpack.c.l.b16 %v1840
      %v1907 = vunpack.c.h.b16 %v1840
      %v1908 = vunpack.c.l.b16 %v1841
      %v1909 = vunpack.c.h.b16 %v1841
      %v1910 = vunpack.c.l.b16 %v1842
      %v1911 = vunpack.c.h.b16 %v1842
      %v1912 = vunpack.c.l.b16 %v1843
      %v1913 = vunpack.c.h.b16 %v1843
      %v1914 = vunpack.c.l.b16 %v1844
      %v1915 = vunpack.c.h.b16 %v1844
      %v1916 = vunpack.c.l.b16 %v1845
      %v1917 = vunpack.c.h.b16 %v1845
      %v1918 = vunpack.c.l.b16 %v1846
      %v1919 = vunpack.c.h.b16 %v1846
      %v1920 = vunpack.c.l.b16 %v1847
      %v1921 = vunpack.c.h.b16 %v1847
      %v1922 = vunpack.c.l.b16 %v1848
      %v1923 = vunpack.c.h.b16 %v1848
      %v1924 = vunpack.c.l.b16 %v1849
      %v1925 = vunpack.c.h.b16 %v1849
      %v1926 = vunpack.c.l.b16 %v1850
      %v1927 = vunpack.c.h.b16 %v1850
      %v1928 = vunpack.c.l.b16 %v1851
      %v1929 = vunpack.c.h.b16 %v1851
      %v1930 = vunpack.c.l.b16 %v1852
      %v1931 = vunpack.c.h.b16 %v1852
      %v1932 = vunpack.c.l.b16 %v1853
      %v1933 = vunpack.c.h.b16 %v1853
      %v1934 = vunpack.c.l.b16 %v1854
      %v1935 = vunpack.c.h.b16 %v1854
      %v1936 = vunpack.c.l.b16 %v1855
      %v1937 = vunpack.c.h.b16 %v1855
      %v1938 = vunpack.c.l.b16 %v1856
      %v1939 = vunpack.c.h.b16 %v1856
      %v1940 = vunpack.c.l.b16 %v1857
      %v1941 = vunpack.c.h.b16 %v1857
      %v1942 = vunpack.c.l.b16 %v1858
      %v1943 = vunpack.c.h.b16 %v1858
      %v1944 = vunpack.c.l.b16 %v1859
      %v1945 = vunpack.c.h.b16 %v1859
      %v1946 = vunpack.c.l.b16 %v1860
      %v1947 = vunpack.c.h.b16 %v1860
      %v1948 = vunpack.c.l.b16 %v1861
      %v1949 = vunpack.c.h.b16 %v1861
      %v1950 = vunpack.c.l.b16 %v1862
      %v1951 = vunpack.c.h.b16 %v1862
      %v1952 = vunpack.c.l.b16 %v1863
      %v1953 = vunpack.c.h.b16 %v1863
      %v1954 = vunpack.c.l.b16 %v1864
      %v1955 = vunpack.c.h.b16 %v1864
      %v1956 = vunpack.c.l.b16 %v1865
      %v1957 = vunpack.c.h.b16 %v1865
      %v1958 = vunpack.c.l.b16 %v1866
      %v1959 = vunpack.c.h.b16 %v1866
      %v1960 = vunpack.c.l.b16 %v1867
      %v1961 = vunpack.c.h.b16 %v1867
      %v1962 = vunpack.c.l.b16 %v1868
      %v1963 = vunpack.c.h.b16 %v1868
      %v1964 = vunpack.c.l.b16 %v1869
      %v1965 = vunpack.c.h.b16 %v1869
      %v1966 = vpack.c.b16 %v1906, %v1902
      %v1967 = vpack.c.b16 %v1907, %v1903
      %v1968 = vpack.c.b16 %v1908, %v1904
      %v1969 = vpack.c.b16 %v1909, %v1905
      %v1970 = vpack.c.b16 %v1914, %v1910
      %v1971 = vpack.c.b16 %v1915, %v1911
      %v1972 = vpack.c.b16 %v1916, %v1912
      %v1973 = vpack.c.b16 %v1917, %v1913
      %v1974 = vpack.c.b16 %v1922, %v1918
      %v1975 = vpack.c.b16 %v1923, %v1919
      %v1976 = vpack.c.b16 %v1924, %v1920
      %v1977 = vpack.c.b16 %v1925, %v1921
      %v1978 = vpack.c.b16 %v1930, %v1926
      %v1979 = vpack.c.b16 %v1931, %v1927
      %v1980 = vpack.c.b16 %v1932, %v1928
      %v1981 = vpack.c.b16 %v1933, %v1929
      %v1982 = vpack.c.b16 %v1938, %v1934
      %v1983 = vpack.c.b16 %v1939, %v1935
      %v1984 = vpack.c.b16 %v1940, %v1936
      %v1985 = vpack.c.b16 %v1941, %v1937
      %v1986 = vpack.c.b16 %v1946, %v1942
      %v1987 = vpack.c.b16 %v1947, %v1943
      %v1988 = vpack.c.b16 %v1948, %v1944
      %v1989 = vpack.c.b16 %v1949, %v1945
      %v1990 = vpack.c.b16 %v1954, %v1950
      %v1991 = vpack.c.b16 %v1955, %v1951
      %v1992 = vpack.c.b16 %v1956, %v1952
      %v1993 = vpack.c.b16 %v1957, %v1953
      %v1994 = vpack.c.b16 %v1962, %v1958
      %v1995 = vpack.c.b16 %v1963, %v1959
      %v1996 = vpack.c.b16 %v1964, %v1960
      %v1997 = vpack.c.b16 %v1965, %v1961
      %2030 = vmatprep.subr.bf16.mxu0 %v1967
      %2031 = vmatpush1.bf16.msra.mxu0 %v1966
      %2032 = vmatprep.subr.bf16.mxu0 %v1971
      %2033 = vmatpush1.bf16.msra.mxu0 %v1970
      %2034 = vmatprep.subr.bf16.mxu0 %v1975
      %2035 = vmatpush1.bf16.msra.mxu0 %v1974
      %2036 = vmatprep.subr.bf16.mxu0 %v1979
      %2037 = vmatpush1.bf16.msra.mxu0 %v1978
      %2038 = vmatprep.subr.bf16.mxu0 %v1983
      %2039 = vmatpush1.bf16.msra.mxu0 %v1982
      %2040 = vmatprep.subr.bf16.mxu0 %v1987
      %2041 = vmatpush1.bf16.msra.mxu0 %v1986
      %2042 = vmatprep.subr.bf16.mxu0 %v1991
      %2043 = vmatpush1.bf16.msra.mxu0 %v1990
      %2044 = vmatprep.subr.bf16.mxu0 %v1995
      %2045 = vmatpush1.bf16.msra.mxu0 %v1994
      %2046 = vmatprep.subr.bf16.mxu0 0
      %2047 = vmatpush1.bf16.msra.mxu0 0
      %2048 = vmatprep.subr.bf16.mxu0 0
      %2049 = vmatpush1.bf16.msra.mxu0 0
      %2050 = vmatprep.subr.bf16.mxu0 0
      %2051 = vmatpush1.bf16.msra.mxu0 0
      %2052 = vmatprep.subr.bf16.mxu0 0
      %2053 = vmatpush1.bf16.msra.mxu0 0
      %2054 = vmatprep.subr.bf16.mxu0 0
      %2055 = vmatpush1.bf16.msra.mxu0 0
      %2056 = vmatprep.subr.bf16.mxu0 0
      %2057 = vmatpush1.bf16.msra.mxu0 0
      %2058 = vmatprep.subr.bf16.mxu0 0
      %2059 = vmatpush1.bf16.msra.mxu0 0
      %2060 = vmatprep.subr.bf16.mxu0 0
      %2061 = vmatpush1.bf16.msra.mxu0 0
      %2062 = vmatprep.mubr.bf16.mxu0 0
      %2063 = vmatmul.mubr.bf16.gmra.mrb[0].mxu0 %v1837
      %v2064 = vpop.f32.mrb[0].mxu0
      %v2065 = vadd.f32 0.0, %v2064
      %v2066 = vpop.f32.mrb[0].mxu0
      %v2067 = vadd.f32 0.0, %v2066
      %v2068 = vpop.f32.mrb[0].mxu0
      %v2069 = vadd.f32 0.0, %v2068
      %v2070 = vpop.f32.mrb[0].mxu0
      %v2071 = vadd.f32 0.0, %v2070
      %2072 = vdwg.mxu0
      %2073 = vmatprep.subr.bf16.mxu0 %v1969
      %2074 = vmatpush1.bf16.msra.mxu0 %v1968
      %2075 = vmatprep.subr.bf16.mxu0 %v1973
      %2076 = vmatpush1.bf16.msra.mxu0 %v1972
      %2077 = vmatprep.subr.bf16.mxu0 %v1977
      %2078 = vmatpush1.bf16.msra.mxu0 %v1976
      %2079 = vmatprep.subr.bf16.mxu0 %v1981
      %2080 = vmatpush1.bf16.msra.mxu0 %v1980
      %2081 = vmatprep.subr.bf16.mxu0 %v1985
      %2082 = vmatpush1.bf16.msra.mxu0 %v1984
      %2083 = vmatprep.subr.bf16.mxu0 %v1989
      %2084 = vmatpush1.bf16.msra.mxu0 %v1988
      %2085 = vmatprep.subr.bf16.mxu0 %v1993
      %2086 = vmatpush1.bf16.msra.mxu0 %v1992
      %2087 = vmatprep.subr.bf16.mxu0 %v1997
      %2088 = vmatpush1.bf16.msra.mxu0 %v1996
      %2089 = vmatprep.subr.bf16.mxu0 0
      %2090 = vmatpush1.bf16.msra.mxu0 0
      %2091 = vmatprep.subr.bf16.mxu0 0
      %2092 = vmatpush1.bf16.msra.mxu0 0
      %2093 = vmatprep.subr.bf16.mxu0 0
      %2094 = vmatpush1.bf16.msra.mxu0 0
      %2095 = vmatprep.subr.bf16.mxu0 0
      %2096 = vmatpush1.bf16.msra.mxu0 0
      %2097 = vmatprep.subr.bf16.mxu0 0
      %2098 = vmatpush1.bf16.msra.mxu0 0
      %2099 = vmatprep.subr.bf16.mxu0 0
      %2100 = vmatpush1.bf16.msra.mxu0 0
      %2101 = vmatprep.subr.bf16.mxu0 0
      %2102 = vmatpush1.bf16.msra.mxu0 0
      %2103 = vmatprep.subr.bf16.mxu0 0
      %2104 = vmatpush1.bf16.msra.mxu0 0
      %2105 = vmatprep.mubr.bf16.mxu0 0
      %2106 = vmatmul.mubr.bf16.gmra.mrb[0].mxu0 %v1837
      %v2107 = vpop.f32.mrb[0].mxu0
      %v2108 = vadd.f32 0.0, %v2107
      %v2109 = vpop.f32.mrb[0].mxu0
      %v2110 = vadd.f32 0.0, %v2109
      %v2111 = vpop.f32.mrb[0].mxu0
      %v2112 = vadd.f32 0.0, %v2111
      %v2113 = vpop.f32.mrb[0].mxu0
      %v2114 = vadd.f32 0.0, %v2113
      %2115 = vdwg.mxu0
      %v2116 = vadd.f32 %v1829, %v2065
      %v2117 = vadd.f32 %v1830, %v2067
      %v2118 = vadd.f32 %v1831, %v2108
      %v2119 = vadd.f32 %v1832, %v2110
      %v2120 = vadd.f32 %v1833, %v2069
      %v2121 = vadd.f32 %v1834, %v2071
      %v2122 = vadd.f32 %v1835, %v2112
      %v2123 = vadd.f32 %v1836, %v2114
      %v2124 = vxor.u32 %v2116, 2147483648
      %v2125 = vxor.u32 %v2120, 2147483648
      %v2126 = vmul.f32 %v2124, 1.442695
      %v2127 = vpow.pop %v2126
      %v2128 = vmul.f32 %v2125, 1.442695
      %v2129 = vpow.pop %v2128
      %v2130 = vadd.f32 %v2127, 1.0
      %v2131 = vadd.f32 %v2129, 1.0
      %v2132 = vrcp.pop %v2130
      %v2133 = vmul.f32 1.0, %v2132
      %v2134 = vrcp.pop %v2131
      %v2135 = vmul.f32 1.0, %v2134
      %v2136 = vxor.u32 %v2117, 2147483648
      %v2137 = vxor.u32 %v2121, 2147483648
      %v2138 = vmul.f32 %v2136, 1.442695
      %v2139 = vpow.pop %v2138
      %v2140 = vmul.f32 %v2137, 1.442695
      %v2141 = vpow.pop %v2140
      %v2142 = vadd.f32 %v2139, 1.0
      %v2143 = vadd.f32 %v2141, 1.0
      %v2144 = vrcp.pop %v2142
      %v2145 = vmul.f32 1.0, %v2144
      %v2146 = vrcp.pop %v2143
      %v2147 = vmul.f32 1.0, %v2146
      %v2148 = vtanh.pop %v2118
      %v2149 = vtanh.pop %v2122
      %v2150 = vxor.u32 %v2119, 2147483648
      %v2151 = vxor.u32 %v2123, 2147483648
      %v2152 = vmul.f32 %v2150, 1.442695
      %v2153 = vpow.pop %v2152
      %v2154 = vmul.f32 %v2151, 1.442695
      %v2155 = vpow.pop %v2154
      %v2156 = vadd.f32 %v2153, 1.0
      %v2157 = vadd.f32 %v2155, 1.0
      %v2158 = vrcp.pop %v2156
      %v2159 = vmul.f32 1.0, %v2158
      %v2160 = vrcp.pop %v2157
      %v2161 = vmul.f32 1.0, %v2160
      %v2162 = vmul.f32 %v2145, %v1824
      %v2163 = vmul.f32 %v2147, %v1825
      %v2164 = vmul.f32 %v2133, %v2148
      %v2165 = vmul.f32 %v2135, %v2149
      %v2166 = vadd.f32 %v2162, %v2164
      %v2167 = vadd.f32 %v2163, %v2165
      %v2168 = vtanh.pop %v2166
      %v2169 = vtanh.pop %v2167
      %v2170 = vmul.f32 %v2159, %v2168
      %v2171 = vmul.f32 %v2161, %v2169
      %s2172 = sadd.s32 %s65, 3
      %v2173 = vstv %s2172
      %vm2174 = vcmp.gt.s32.totalorder %v67, %v2173
      %vm2175 = vcmp.gt.s32.totalorder %v68, %v2173
      %v2176 = vsel %vm2174, 1, 0
      %v2177 = vsel %vm2175, 1, 0
      %2178 = vset.pattern.permute.xlu0 0
      %2179 = vperm.xlu0 %2178, %v2176
      %v2180 = vpop.permute.xlu0 %2179
      %2181 = vset.pattern.permute.xlu0 0
      %2182 = vperm.xlu0 %2181, %v2177
      %v2183 = vpop.permute.xlu0 %2182
      %vm2184 = vcmp.eq.s32.totalorder %v2180, 1
      %vm2185 = vcmp.eq.s32.totalorder %v2183, 1
      %v2186 = vsel %vm2184, %v2170, %v1822
      %v2187 = vsel %vm2185, %v2171, %v1823
      %2188 = vst [vmem:[#allocation3] sm:$0xff] %v2186
      %2189 = vst [vmem:[#allocation3 + $0x8] sm:$0xff] %v2187
      %v2190 = vsel %vm2184, %v2166, %v1824
      %v2191 = vsel %vm2185, %v2167, %v1825
      %2192 = vst [vmem:[#allocation4] sm:$0xff] %v2190
      %2193 = vst [vmem:[#allocation4 + $0x8] sm:$0xff] %v2191
      %v2194 = vsel %vm2184, %v2170, 0.0
      %v2195 = vsel %vm2185, %v2171, 0.0
      %v2196 = vpack.c.bf16 %v2195, %v2194
      %v2198 = vunpack.c.l.b16 %v2196
      %v2199 = vunpack.c.h.b16 %v2196
      %v2200 = vpack.c.b16 %v2198, %v2198
      %v2201 = vpack.c.b16 %v2199, %v2199
      %s2204 = scalar_lea.vmem [#allocation13], 24
      %2205 = vst [vmem:[%s2204] sm:$0xf] %v2200
      %2206 = vst [vmem:[%s2204 + $0x4] sm:$0xf] %v2201
      %v2207 = vld [vmem:[#allocation3] sm:$0xff]
      %v2208 = vld [vmem:[#allocation3 + $0x8] sm:$0xff]
      %v2209 = vld [vmem:[#allocation4] sm:$0xff]
      %v2210 = vld [vmem:[#allocation4 + $0x8] sm:$0xff]
      %s2211 = smul.u32 8, 4
      %s2212 = smul.addr %s2211, 8
      %s2213 = scalar_lea.vmem [#allocation2], %s2212
      %v2214 = vld [vmem:[%s2213] sm:$0xff]
      %v2215 = vld [vmem:[%s2213 + $0x8] sm:$0xff]
      %v2216 = vld [vmem:[%s2213 + $0x10] sm:$0xff]
      %v2217 = vld [vmem:[%s2213 + $0x18] sm:$0xff]
      %v2218 = vld [vmem:[%s2213 + $0x20] sm:$0xff]
      %v2219 = vld [vmem:[%s2213 + $0x28] sm:$0xff]
      %v2220 = vld [vmem:[%s2213 + $0x30] sm:$0xff]
      %v2221 = vld [vmem:[%s2213 + $0x38] sm:$0xff]
      %v2222 = vpack.c.bf16 %v2208, %v2207
      %v2223 = vld [vmem:[#allocation12] sm:$0xff]
      %v2224 = vld [vmem:[#allocation12 + $0x8] sm:$0xff]
      %v2225 = vld [vmem:[#allocation12 + $0x10] sm:$0xff]
      %v2226 = vld [vmem:[#allocation12 + $0x18] sm:$0xff]
      %v2227 = vld [vmem:[#allocation12 + $0x20] sm:$0xff]
      %v2228 = vld [vmem:[#allocation12 + $0x28] sm:$0xff]
      %v2229 = vld [vmem:[#allocation12 + $0x30] sm:$0xff]
      %v2230 = vld [vmem:[#allocation12 + $0x38] sm:$0xff]
      %v2231 = vld [vmem:[#allocation12 + $0x40] sm:$0xff]
      %v2232 = vld [vmem:[#allocation12 + $0x48] sm:$0xff]
      %v2233 = vld [vmem:[#allocation12 + $0x50] sm:$0xff]
      %v2234 = vld [vmem:[#allocation12 + $0x58] sm:$0xff]
      %v2235 = vld [vmem:[#allocation12 + $0x60] sm:$0xff]
      %v2236 = vld [vmem:[#allocation12 + $0x68] sm:$0xff]
      %v2237 = vld [vmem:[#allocation12 + $0x70] sm:$0xff]
      %v2238 = vld [vmem:[#allocation12 + $0x78] sm:$0xff]
      %v2239 = vld [vmem:[#allocation12 + $0x80] sm:$0xff]
      %v2240 = vld [vmem:[#allocation12 + $0x88] sm:$0xff]
      %v2241 = vld [vmem:[#allocation12 + $0x90] sm:$0xff]
      %v2242 = vld [vmem:[#allocation12 + $0x98] sm:$0xff]
      %v2243 = vld [vmem:[#allocation12 + $0xa0] sm:$0xff]
      %v2244 = vld [vmem:[#allocation12 + $0xa8] sm:$0xff]
      %v2245 = vld [vmem:[#allocation12 + $0xb0] sm:$0xff]
      %v2246 = vld [vmem:[#allocation12 + $0xb8] sm:$0xff]
      %v2247 = vld [vmem:[#allocation12 + $0xc0] sm:$0xff]
      %v2248 = vld [vmem:[#allocation12 + $0xc8] sm:$0xff]
      %v2249 = vld [vmem:[#allocation12 + $0xd0] sm:$0xff]
      %v2250 = vld [vmem:[#allocation12 + $0xd8] sm:$0xff]
      %v2251 = vld [vmem:[#allocation12 + $0xe0] sm:$0xff]
      %v2252 = vld [vmem:[#allocation12 + $0xe8] sm:$0xff]
      %v2253 = vld [vmem:[#allocation12 + $0xf0] sm:$0xff]
      %v2254 = vld [vmem:[#allocation12 + $0xf8] sm:$0xff]
      %v2287 = vunpack.c.l.b16 %v2223
      %v2288 = vunpack.c.h.b16 %v2223
      %v2289 = vunpack.c.l.b16 %v2224
      %v2290 = vunpack.c.h.b16 %v2224
      %v2291 = vunpack.c.l.b16 %v2225
      %v2292 = vunpack.c.h.b16 %v2225
      %v2293 = vunpack.c.l.b16 %v2226
      %v2294 = vunpack.c.h.b16 %v2226
      %v2295 = vunpack.c.l.b16 %v2227
      %v2296 = vunpack.c.h.b16 %v2227
      %v2297 = vunpack.c.l.b16 %v2228
      %v2298 = vunpack.c.h.b16 %v2228
      %v2299 = vunpack.c.l.b16 %v2229
      %v2300 = vunpack.c.h.b16 %v2229
      %v2301 = vunpack.c.l.b16 %v2230
      %v2302 = vunpack.c.h.b16 %v2230
      %v2303 = vunpack.c.l.b16 %v2231
      %v2304 = vunpack.c.h.b16 %v2231
      %v2305 = vunpack.c.l.b16 %v2232
      %v2306 = vunpack.c.h.b16 %v2232
      %v2307 = vunpack.c.l.b16 %v2233
      %v2308 = vunpack.c.h.b16 %v2233
      %v2309 = vunpack.c.l.b16 %v2234
      %v2310 = vunpack.c.h.b16 %v2234
      %v2311 = vunpack.c.l.b16 %v2235
      %v2312 = vunpack.c.h.b16 %v2235
      %v2313 = vunpack.c.l.b16 %v2236
      %v2314 = vunpack.c.h.b16 %v2236
      %v2315 = vunpack.c.l.b16 %v2237
      %v2316 = vunpack.c.h.b16 %v2237
      %v2317 = vunpack.c.l.b16 %v2238
      %v2318 = vunpack.c.h.b16 %v2238
      %v2319 = vunpack.c.l.b16 %v2239
      %v2320 = vunpack.c.h.b16 %v2239
      %v2321 = vunpack.c.l.b16 %v2240
      %v2322 = vunpack.c.h.b16 %v2240
      %v2323 = vunpack.c.l.b16 %v2241
      %v2324 = vunpack.c.h.b16 %v2241
      %v2325 = vunpack.c.l.b16 %v2242
      %v2326 = vunpack.c.h.b16 %v2242
      %v2327 = vunpack.c.l.b16 %v2243
      %v2328 = vunpack.c.h.b16 %v2243
      %v2329 = vunpack.c.l.b16 %v2244
      %v2330 = vunpack.c.h.b16 %v2244
      %v2331 = vunpack.c.l.b16 %v2245
      %v2332 = vunpack.c.h.b16 %v2245
      %v2333 = vunpack.c.l.b16 %v2246
      %v2334 = vunpack.c.h.b16 %v2246
      %v2335 = vunpack.c.l.b16 %v2247
      %v2336 = vunpack.c.h.b16 %v2247
      %v2337 = vunpack.c.l.b16 %v2248
      %v2338 = vunpack.c.h.b16 %v2248
      %v2339 = vunpack.c.l.b16 %v2249
      %v2340 = vunpack.c.h.b16 %v2249
      %v2341 = vunpack.c.l.b16 %v2250
      %v2342 = vunpack.c.h.b16 %v2250
      %v2343 = vunpack.c.l.b16 %v2251
      %v2344 = vunpack.c.h.b16 %v2251
      %v2345 = vunpack.c.l.b16 %v2252
      %v2346 = vunpack.c.h.b16 %v2252
      %v2347 = vunpack.c.l.b16 %v2253
      %v2348 = vunpack.c.h.b16 %v2253
      %v2349 = vunpack.c.l.b16 %v2254
      %v2350 = vunpack.c.h.b16 %v2254
      %v2351 = vpack.c.b16 %v2291, %v2287
      %v2352 = vpack.c.b16 %v2292, %v2288
      %v2353 = vpack.c.b16 %v2293, %v2289
      %v2354 = vpack.c.b16 %v2294, %v2290
      %v2355 = vpack.c.b16 %v2299, %v2295
      %v2356 = vpack.c.b16 %v2300, %v2296
      %v2357 = vpack.c.b16 %v2301, %v2297
      %v2358 = vpack.c.b16 %v2302, %v2298
      %v2359 = vpack.c.b16 %v2307, %v2303
      %v2360 = vpack.c.b16 %v2308, %v2304
      %v2361 = vpack.c.b16 %v2309, %v2305
      %v2362 = vpack.c.b16 %v2310, %v2306
      %v2363 = vpack.c.b16 %v2315, %v2311
      %v2364 = vpack.c.b16 %v2316, %v2312
      %v2365 = vpack.c.b16 %v2317, %v2313
      %v2366 = vpack.c.b16 %v2318, %v2314
      %v2367 = vpack.c.b16 %v2323, %v2319
      %v2368 = vpack.c.b16 %v2324, %v2320
      %v2369 = vpack.c.b16 %v2325, %v2321
      %v2370 = vpack.c.b16 %v2326, %v2322
      %v2371 = vpack.c.b16 %v2331, %v2327
      %v2372 = vpack.c.b16 %v2332, %v2328
      %v2373 = vpack.c.b16 %v2333, %v2329
      %v2374 = vpack.c.b16 %v2334, %v2330
      %v2375 = vpack.c.b16 %v2339, %v2335
      %v2376 = vpack.c.b16 %v2340, %v2336
      %v2377 = vpack.c.b16 %v2341, %v2337
      %v2378 = vpack.c.b16 %v2342, %v2338
      %v2379 = vpack.c.b16 %v2347, %v2343
      %v2380 = vpack.c.b16 %v2348, %v2344
      %v2381 = vpack.c.b16 %v2349, %v2345
      %v2382 = vpack.c.b16 %v2350, %v2346
      %2415 = vmatprep.subr.bf16.mxu0 %v2352
      %2416 = vmatpush1.bf16.msra.mxu0 %v2351
      %2417 = vmatprep.subr.bf16.mxu0 %v2356
      %2418 = vmatpush1.bf16.msra.mxu0 %v2355
      %2419 = vmatprep.subr.bf16.mxu0 %v2360
      %2420 = vmatpush1.bf16.msra.mxu0 %v2359
      %2421 = vmatprep.subr.bf16.mxu0 %v2364
      %2422 = vmatpush1.bf16.msra.mxu0 %v2363
      %2423 = vmatprep.subr.bf16.mxu0 %v2368
      %2424 = vmatpush1.bf16.msra.mxu0 %v2367
      %2425 = vmatprep.subr.bf16.mxu0 %v2372
      %2426 = vmatpush1.bf16.msra.mxu0 %v2371
      %2427 = vmatprep.subr.bf16.mxu0 %v2376
      %2428 = vmatpush1.bf16.msra.mxu0 %v2375
      %2429 = vmatprep.subr.bf16.mxu0 %v2380
      %2430 = vmatpush1.bf16.msra.mxu0 %v2379
      %2431 = vmatprep.subr.bf16.mxu0 0
      %2432 = vmatpush1.bf16.msra.mxu0 0
      %2433 = vmatprep.subr.bf16.mxu0 0
      %2434 = vmatpush1.bf16.msra.mxu0 0
      %2435 = vmatprep.subr.bf16.mxu0 0
      %2436 = vmatpush1.bf16.msra.mxu0 0
      %2437 = vmatprep.subr.bf16.mxu0 0
      %2438 = vmatpush1.bf16.msra.mxu0 0
      %2439 = vmatprep.subr.bf16.mxu0 0
      %2440 = vmatpush1.bf16.msra.mxu0 0
      %2441 = vmatprep.subr.bf16.mxu0 0
      %2442 = vmatpush1.bf16.msra.mxu0 0
      %2443 = vmatprep.subr.bf16.mxu0 0
      %2444 = vmatpush1.bf16.msra.mxu0 0
      %2445 = vmatprep.subr.bf16.mxu0 0
      %2446 = vmatpush1.bf16.msra.mxu0 0
      %2447 = vmatprep.mubr.bf16.mxu0 0
      %2448 = vmatmul.mubr.bf16.gmra.mrb[0].mxu0 %v2222
      %v2449 = vpop.f32.mrb[0].mxu0
      %v2450 = vadd.f32 0.0, %v2449
      %v2451 = vpop.f32.mrb[0].mxu0
      %v2452 = vadd.f32 0.0, %v2451
      %v2453 = vpop.f32.mrb[0].mxu0
      %v2454 = vadd.f32 0.0, %v2453
      %v2455 = vpop.f32.mrb[0].mxu0
      %v2456 = vadd.f32 0.0, %v2455
      %2457 = vdwg.mxu0
      %2458 = vmatprep.subr.bf16.mxu0 %v2354
      %2459 = vmatpush1.bf16.msra.mxu0 %v2353
      %2460 = vmatprep.subr.bf16.mxu0 %v2358
      %2461 = vmatpush1.bf16.msra.mxu0 %v2357
      %2462 = vmatprep.subr.bf16.mxu0 %v2362
      %2463 = vmatpush1.bf16.msra.mxu0 %v2361
      %2464 = vmatprep.subr.bf16.mxu0 %v2366
      %2465 = vmatpush1.bf16.msra.mxu0 %v2365
      %2466 = vmatprep.subr.bf16.mxu0 %v2370
      %2467 = vmatpush1.bf16.msra.mxu0 %v2369
      %2468 = vmatprep.subr.bf16.mxu0 %v2374
      %2469 = vmatpush1.bf16.msra.mxu0 %v2373
      %2470 = vmatprep.subr.bf16.mxu0 %v2378
      %2471 = vmatpush1.bf16.msra.mxu0 %v2377
      %2472 = vmatprep.subr.bf16.mxu0 %v2382
      %2473 = vmatpush1.bf16.msra.mxu0 %v2381
      %2474 = vmatprep.subr.bf16.mxu0 0
      %2475 = vmatpush1.bf16.msra.mxu0 0
      %2476 = vmatprep.subr.bf16.mxu0 0
      %2477 = vmatpush1.bf16.msra.mxu0 0
      %2478 = vmatprep.subr.bf16.mxu0 0
      %2479 = vmatpush1.bf16.msra.mxu0 0
      %2480 = vmatprep.subr.bf16.mxu0 0
      %2481 = vmatpush1.bf16.msra.mxu0 0
      %2482 = vmatprep.subr.bf16.mxu0 0
      %2483 = vmatpush1.bf16.msra.mxu0 0
      %2484 = vmatprep.subr.bf16.mxu0 0
      %2485 = vmatpush1.bf16.msra.mxu0 0
      %2486 = vmatprep.subr.bf16.mxu0 0
      %2487 = vmatpush1.bf16.msra.mxu0 0
      %2488 = vmatprep.subr.bf16.mxu0 0
      %2489 = vmatpush1.bf16.msra.mxu0 0
      %2490 = vmatprep.mubr.bf16.mxu0 0
      %2491 = vmatmul.mubr.bf16.gmra.mrb[0].mxu0 %v2222
      %v2492 = vpop.f32.mrb[0].mxu0
      %v2493 = vadd.f32 0.0, %v2492
      %v2494 = vpop.f32.mrb[0].mxu0
      %v2495 = vadd.f32 0.0, %v2494
      %v2496 = vpop.f32.mrb[0].mxu0
      %v2497 = vadd.f32 0.0, %v2496
      %v2498 = vpop.f32.mrb[0].mxu0
      %v2499 = vadd.f32 0.0, %v2498
      %2500 = vdwg.mxu0
      %v2501 = vadd.f32 %v2214, %v2450
      %v2502 = vadd.f32 %v2215, %v2452
      %v2503 = vadd.f32 %v2216, %v2493
      %v2504 = vadd.f32 %v2217, %v2495
      %v2505 = vadd.f32 %v2218, %v2454
      %v2506 = vadd.f32 %v2219, %v2456
      %v2507 = vadd.f32 %v2220, %v2497
      %v2508 = vadd.f32 %v2221, %v2499
      %v2509 = vxor.u32 %v2501, 2147483648
      %v2510 = vxor.u32 %v2505, 2147483648
      %v2511 = vmul.f32 %v2509, 1.442695
      %v2512 = vpow.pop %v2511
      %v2513 = vmul.f32 %v2510, 1.442695
      %v2514 = vpow.pop %v2513
      %v2515 = vadd.f32 %v2512, 1.0
      %v2516 = vadd.f32 %v2514, 1.0
      %v2517 = vrcp.pop %v2515
      %v2518 = vmul.f32 1.0, %v2517
      %v2519 = vrcp.pop %v2516
      %v2520 = vmul.f32 1.0, %v2519
      %v2521 = vxor.u32 %v2502, 2147483648
      %v2522 = vxor.u32 %v2506, 2147483648
      %v2523 = vmul.f32 %v2521, 1.442695
      %v2524 = vpow.pop %v2523
      %v2525 = vmul.f32 %v2522, 1.442695
      %v2526 = vpow.pop %v2525
      %v2527 = vadd.f32 %v2524, 1.0
      %v2528 = vadd.f32 %v2526, 1.0
      %v2529 = vrcp.pop %v2527
      %v2530 = vmul.f32 1.0, %v2529
      %v2531 = vrcp.pop %v2528
      %v2532 = vmul.f32 1.0, %v2531
      %v2533 = vtanh.pop %v2503
      %v2534 = vtanh.pop %v2507
      %v2535 = vxor.u32 %v2504, 2147483648
      %v2536 = vxor.u32 %v2508, 2147483648
      %v2537 = vmul.f32 %v2535, 1.442695
      %v2538 = vpow.pop %v2537
      %v2539 = vmul.f32 %v2536, 1.442695
      %v2540 = vpow.pop %v2539
      %v2541 = vadd.f32 %v2538, 1.0
      %v2542 = vadd.f32 %v2540, 1.0
      %v2543 = vrcp.pop %v2541
      %v2544 = vmul.f32 1.0, %v2543
      %v2545 = vrcp.pop %v2542
      %v2546 = vmul.f32 1.0, %v2545
      %v2547 = vmul.f32 %v2530, %v2209
      %v2548 = vmul.f32 %v2532, %v2210
      %v2549 = vmul.f32 %v2518, %v2533
      %v2550 = vmul.f32 %v2520, %v2534
      %v2551 = vadd.f32 %v2547, %v2549
      %v2552 = vadd.f32 %v2548, %v2550
      %v2553 = vtanh.pop %v2551
      %v2554 = vtanh.pop %v2552
      %v2555 = vmul.f32 %v2544, %v2553
      %v2556 = vmul.f32 %v2546, %v2554
      %s2557 = sadd.s32 %s65, 4
      %v2558 = vstv %s2557
      %vm2559 = vcmp.gt.s32.totalorder %v67, %v2558
      %vm2560 = vcmp.gt.s32.totalorder %v68, %v2558
      %v2561 = vsel %vm2559, 1, 0
      %v2562 = vsel %vm2560, 1, 0
      %2563 = vset.pattern.permute.xlu0 0
      %2564 = vperm.xlu0 %2563, %v2561
      %v2565 = vpop.permute.xlu0 %2564
      %2566 = vset.pattern.permute.xlu0 0
      %2567 = vperm.xlu0 %2566, %v2562
      %v2568 = vpop.permute.xlu0 %2567
      %vm2569 = vcmp.eq.s32.totalorder %v2565, 1
      %vm2570 = vcmp.eq.s32.totalorder %v2568, 1
      %v2571 = vsel %vm2569, %v2555, %v2207
      %v2572 = vsel %vm2570, %v2556, %v2208
      %2573 = vst [vmem:[#allocation3] sm:$0xff] %v2571
      %2574 = vst [vmem:[#allocation3 + $0x8] sm:$0xff] %v2572
      %v2575 = vsel %vm2569, %v2551, %v2209
      %v2576 = vsel %vm2570, %v2552, %v2210
      %2577 = vst [vmem:[#allocation4] sm:$0xff] %v2575
      %2578 = vst [vmem:[#allocation4 + $0x8] sm:$0xff] %v2576
      %v2579 = vsel %vm2569, %v2555, 0.0
      %v2580 = vsel %vm2570, %v2556, 0.0
      %v2581 = vpack.c.bf16 %v2580, %v2579
      %v2583 = vunpack.c.l.b16 %v2581
      %v2584 = vunpack.c.h.b16 %v2581
      %v2585 = vpack.c.b16 %v2583, %v2583
      %v2586 = vpack.c.b16 %v2584, %v2584
      %s2589 = scalar_lea.vmem [#allocation13], 32
      %2590 = vst [vmem:[%s2589] sm:$0xf] %v2585
      %2591 = vst [vmem:[%s2589 + $0x4] sm:$0xf] %v2586
      %v2592 = vld [vmem:[#allocation3] sm:$0xff]
      %v2593 = vld [vmem:[#allocation3 + $0x8] sm:$0xff]
      %v2594 = vld [vmem:[#allocation4] sm:$0xff]
      %v2595 = vld [vmem:[#allocation4 + $0x8] sm:$0xff]
      %s2596 = smul.u32 10, 4
      %s2597 = smul.addr %s2596, 8
      %s2598 = scalar_lea.vmem [#allocation2], %s2597
      %v2599 = vld [vmem:[%s2598] sm:$0xff]
      %v2600 = vld [vmem:[%s2598 + $0x8] sm:$0xff]
      %v2601 = vld [vmem:[%s2598 + $0x10] sm:$0xff]
      %v2602 = vld [vmem:[%s2598 + $0x18] sm:$0xff]
      %v2603 = vld [vmem:[%s2598 + $0x20] sm:$0xff]
      %v2604 = vld [vmem:[%s2598 + $0x28] sm:$0xff]
      %v2605 = vld [vmem:[%s2598 + $0x30] sm:$0xff]
      %v2606 = vld [vmem:[%s2598 + $0x38] sm:$0xff]
      %v2607 = vpack.c.bf16 %v2593, %v2592
      %v2608 = vld [vmem:[#allocation12] sm:$0xff]
      %v2609 = vld [vmem:[#allocation12 + $0x8] sm:$0xff]
      %v2610 = vld [vmem:[#allocation12 + $0x10] sm:$0xff]
      %v2611 = vld [vmem:[#allocation12 + $0x18] sm:$0xff]
      %v2612 = vld [vmem:[#allocation12 + $0x20] sm:$0xff]
      %v2613 = vld [vmem:[#allocation12 + $0x28] sm:$0xff]
      %v2614 = vld [vmem:[#allocation12 + $0x30] sm:$0xff]
      %v2615 = vld [vmem:[#allocation12 + $0x38] sm:$0xff]
      %v2616 = vld [vmem:[#allocation12 + $0x40] sm:$0xff]
      %v2617 = vld [vmem:[#allocation12 + $0x48] sm:$0xff]
      %v2618 = vld [vmem:[#allocation12 + $0x50] sm:$0xff]
      %v2619 = vld [vmem:[#allocation12 + $0x58] sm:$0xff]
      %v2620 = vld [vmem:[#allocation12 + $0x60] sm:$0xff]
      %v2621 = vld [vmem:[#allocation12 + $0x68] sm:$0xff]
      %v2622 = vld [vmem:[#allocation12 + $0x70] sm:$0xff]
      %v2623 = vld [vmem:[#allocation12 + $0x78] sm:$0xff]
      %v2624 = vld [vmem:[#allocation12 + $0x80] sm:$0xff]
      %v2625 = vld [vmem:[#allocation12 + $0x88] sm:$0xff]
      %v2626 = vld [vmem:[#allocation12 + $0x90] sm:$0xff]
      %v2627 = vld [vmem:[#allocation12 + $0x98] sm:$0xff]
      %v2628 = vld [vmem:[#allocation12 + $0xa0] sm:$0xff]
      %v2629 = vld [vmem:[#allocation12 + $0xa8] sm:$0xff]
      %v2630 = vld [vmem:[#allocation12 + $0xb0] sm:$0xff]
      %v2631 = vld [vmem:[#allocation12 + $0xb8] sm:$0xff]
      %v2632 = vld [vmem:[#allocation12 + $0xc0] sm:$0xff]
      %v2633 = vld [vmem:[#allocation12 + $0xc8] sm:$0xff]
      %v2634 = vld [vmem:[#allocation12 + $0xd0] sm:$0xff]
      %v2635 = vld [vmem:[#allocation12 + $0xd8] sm:$0xff]
      %v2636 = vld [vmem:[#allocation12 + $0xe0] sm:$0xff]
      %v2637 = vld [vmem:[#allocation12 + $0xe8] sm:$0xff]
      %v2638 = vld [vmem:[#allocation12 + $0xf0] sm:$0xff]
      %v2639 = vld [vmem:[#allocation12 + $0xf8] sm:$0xff]
      %v2672 = vunpack.c.l.b16 %v2608
      %v2673 = vunpack.c.h.b16 %v2608
      %v2674 = vunpack.c.l.b16 %v2609
      %v2675 = vunpack.c.h.b16 %v2609
      %v2676 = vunpack.c.l.b16 %v2610
      %v2677 = vunpack.c.h.b16 %v2610
      %v2678 = vunpack.c.l.b16 %v2611
      %v2679 = vunpack.c.h.b16 %v2611
      %v2680 = vunpack.c.l.b16 %v2612
      %v2681 = vunpack.c.h.b16 %v2612
      %v2682 = vunpack.c.l.b16 %v2613
      %v2683 = vunpack.c.h.b16 %v2613
      %v2684 = vunpack.c.l.b16 %v2614
      %v2685 = vunpack.c.h.b16 %v2614
      %v2686 = vunpack.c.l.b16 %v2615
      %v2687 = vunpack.c.h.b16 %v2615
      %v2688 = vunpack.c.l.b16 %v2616
      %v2689 = vunpack.c.h.b16 %v2616
      %v2690 = vunpack.c.l.b16 %v2617
      %v2691 = vunpack.c.h.b16 %v2617
      %v2692 = vunpack.c.l.b16 %v2618
      %v2693 = vunpack.c.h.b16 %v2618
      %v2694 = vunpack.c.l.b16 %v2619
      %v2695 = vunpack.c.h.b16 %v2619
      %v2696 = vunpack.c.l.b16 %v2620
      %v2697 = vunpack.c.h.b16 %v2620
      %v2698 = vunpack.c.l.b16 %v2621
      %v2699 = vunpack.c.h.b16 %v2621
      %v2700 = vunpack.c.l.b16 %v2622
      %v2701 = vunpack.c.h.b16 %v2622
      %v2702 = vunpack.c.l.b16 %v2623
      %v2703 = vunpack.c.h.b16 %v2623
      %v2704 = vunpack.c.l.b16 %v2624
      %v2705 = vunpack.c.h.b16 %v2624
      %v2706 = vunpack.c.l.b16 %v2625
      %v2707 = vunpack.c.h.b16 %v2625
      %v2708 = vunpack.c.l.b16 %v2626
      %v2709 = vunpack.c.h.b16 %v2626
      %v2710 = vunpack.c.l.b16 %v2627
      %v2711 = vunpack.c.h.b16 %v2627
      %v2712 = vunpack.c.l.b16 %v2628
      %v2713 = vunpack.c.h.b16 %v2628
      %v2714 = vunpack.c.l.b16 %v2629
      %v2715 = vunpack.c.h.b16 %v2629
      %v2716 = vunpack.c.l.b16 %v2630
      %v2717 = vunpack.c.h.b16 %v2630
      %v2718 = vunpack.c.l.b16 %v2631
      %v2719 = vunpack.c.h.b16 %v2631
      %v2720 = vunpack.c.l.b16 %v2632
      %v2721 = vunpack.c.h.b16 %v2632
      %v2722 = vunpack.c.l.b16 %v2633
      %v2723 = vunpack.c.h.b16 %v2633
      %v2724 = vunpack.c.l.b16 %v2634
      %v2725 = vunpack.c.h.b16 %v2634
      %v2726 = vunpack.c.l.b16 %v2635
      %v2727 = vunpack.c.h.b16 %v2635
      %v2728 = vunpack.c.l.b16 %v2636
      %v2729 = vunpack.c.h.b16 %v2636
      %v2730 = vunpack.c.l.b16 %v2637
      %v2731 = vunpack.c.h.b16 %v2637
      %v2732 = vunpack.c.l.b16 %v2638
      %v2733 = vunpack.c.h.b16 %v2638
      %v2734 = vunpack.c.l.b16 %v2639
      %v2735 = vunpack.c.h.b16 %v2639
      %v2736 = vpack.c.b16 %v2676, %v2672
      %v2737 = vpack.c.b16 %v2677, %v2673
      %v2738 = vpack.c.b16 %v2678, %v2674
      %v2739 = vpack.c.b16 %v2679, %v2675
      %v2740 = vpack.c.b16 %v2684, %v2680
      %v2741 = vpack.c.b16 %v2685, %v2681
      %v2742 = vpack.c.b16 %v2686, %v2682
      %v2743 = vpack.c.b16 %v2687, %v2683
      %v2744 = vpack.c.b16 %v2692, %v2688
      %v2745 = vpack.c.b16 %v2693, %v2689
      %v2746 = vpack.c.b16 %v2694, %v2690
      %v2747 = vpack.c.b16 %v2695, %v2691
      %v2748 = vpack.c.b16 %v2700, %v2696
      %v2749 = vpack.c.b16 %v2701, %v2697
      %v2750 = vpack.c.b16 %v2702, %v2698
      %v2751 = vpack.c.b16 %v2703, %v2699
      %v2752 = vpack.c.b16 %v2708, %v2704
      %v2753 = vpack.c.b16 %v2709, %v2705
      %v2754 = vpack.c.b16 %v2710, %v2706
      %v2755 = vpack.c.b16 %v2711, %v2707
      %v2756 = vpack.c.b16 %v2716, %v2712
      %v2757 = vpack.c.b16 %v2717, %v2713
      %v2758 = vpack.c.b16 %v2718, %v2714
      %v2759 = vpack.c.b16 %v2719, %v2715
      %v2760 = vpack.c.b16 %v2724, %v2720
      %v2761 = vpack.c.b16 %v2725, %v2721
      %v2762 = vpack.c.b16 %v2726, %v2722
      %v2763 = vpack.c.b16 %v2727, %v2723
      %v2764 = vpack.c.b16 %v2732, %v2728
      %v2765 = vpack.c.b16 %v2733, %v2729
      %v2766 = vpack.c.b16 %v2734, %v2730
      %v2767 = vpack.c.b16 %v2735, %v2731
      %2800 = vmatprep.subr.bf16.mxu0 %v2737
      %2801 = vmatpush1.bf16.msra.mxu0 %v2736
      %2802 = vmatprep.subr.bf16.mxu0 %v2741
      %2803 = vmatpush1.bf16.msra.mxu0 %v2740
      %2804 = vmatprep.subr.bf16.mxu0 %v2745
      %2805 = vmatpush1.bf16.msra.mxu0 %v2744
      %2806 = vmatprep.subr.bf16.mxu0 %v2749
      %2807 = vmatpush1.bf16.msra.mxu0 %v2748
      %2808 = vmatprep.subr.bf16.mxu0 %v2753
      %2809 = vmatpush1.bf16.msra.mxu0 %v2752
      %2810 = vmatprep.subr.bf16.mxu0 %v2757
      %2811 = vmatpush1.bf16.msra.mxu0 %v2756
      %2812 = vmatprep.subr.bf16.mxu0 %v2761
      %2813 = vmatpush1.bf16.msra.mxu0 %v2760
      %2814 = vmatprep.subr.bf16.mxu0 %v2765
      %2815 = vmatpush1.bf16.msra.mxu0 %v2764
      %2816 = vmatprep.subr.bf16.mxu0 0
      %2817 = vmatpush1.bf16.msra.mxu0 0
      %2818 = vmatprep.subr.bf16.mxu0 0
      %2819 = vmatpush1.bf16.msra.mxu0 0
      %2820 = vmatprep.subr.bf16.mxu0 0
      %2821 = vmatpush1.bf16.msra.mxu0 0
      %2822 = vmatprep.subr.bf16.mxu0 0
      %2823 = vmatpush1.bf16.msra.mxu0 0
      %2824 = vmatprep.subr.bf16.mxu0 0
      %2825 = vmatpush1.bf16.msra.mxu0 0
      %2826 = vmatprep.subr.bf16.mxu0 0
      %2827 = vmatpush1.bf16.msra.mxu0 0
      %2828 = vmatprep.subr.bf16.mxu0 0
      %2829 = vmatpush1.bf16.msra.mxu0 0
      %2830 = vmatprep.subr.bf16.mxu0 0
      %2831 = vmatpush1.bf16.msra.mxu0 0
      %2832 = vmatprep.mubr.bf16.mxu0 0
      %2833 = vmatmul.mubr.bf16.gmra.mrb[0].mxu0 %v2607
      %v2834 = vpop.f32.mrb[0].mxu0
      %v2835 = vadd.f32 0.0, %v2834
      %v2836 = vpop.f32.mrb[0].mxu0
      %v2837 = vadd.f32 0.0, %v2836
      %v2838 = vpop.f32.mrb[0].mxu0
      %v2839 = vadd.f32 0.0, %v2838
      %v2840 = vpop.f32.mrb[0].mxu0
      %v2841 = vadd.f32 0.0, %v2840
      %2842 = vdwg.mxu0
      %2843 = vmatprep.subr.bf16.mxu0 %v2739
      %2844 = vmatpush1.bf16.msra.mxu0 %v2738
      %2845 = vmatprep.subr.bf16.mxu0 %v2743
      %2846 = vmatpush1.bf16.msra.mxu0 %v2742
      %2847 = vmatprep.subr.bf16.mxu0 %v2747
      %2848 = vmatpush1.bf16.msra.mxu0 %v2746
      %2849 = vmatprep.subr.bf16.mxu0 %v2751
      %2850 = vmatpush1.bf16.msra.mxu0 %v2750
      %2851 = vmatprep.subr.bf16.mxu0 %v2755
      %2852 = vmatpush1.bf16.msra.mxu0 %v2754
      %2853 = vmatprep.subr.bf16.mxu0 %v2759
      %2854 = vmatpush1.bf16.msra.mxu0 %v2758
      %2855 = vmatprep.subr.bf16.mxu0 %v2763
      %2856 = vmatpush1.bf16.msra.mxu0 %v2762
      %2857 = vmatprep.subr.bf16.mxu0 %v2767
      %2858 = vmatpush1.bf16.msra.mxu0 %v2766
      %2859 = vmatprep.subr.bf16.mxu0 0
      %2860 = vmatpush1.bf16.msra.mxu0 0
      %2861 = vmatprep.subr.bf16.mxu0 0
      %2862 = vmatpush1.bf16.msra.mxu0 0
      %2863 = vmatprep.subr.bf16.mxu0 0
      %2864 = vmatpush1.bf16.msra.mxu0 0
      %2865 = vmatprep.subr.bf16.mxu0 0
      %2866 = vmatpush1.bf16.msra.mxu0 0
      %2867 = vmatprep.subr.bf16.mxu0 0
      %2868 = vmatpush1.bf16.msra.mxu0 0
      %2869 = vmatprep.subr.bf16.mxu0 0
      %2870 = vmatpush1.bf16.msra.mxu0 0
      %2871 = vmatprep.subr.bf16.mxu0 0
      %2872 = vmatpush1.bf16.msra.mxu0 0
      %2873 = vmatprep.subr.bf16.mxu0 0
      %2874 = vmatpush1.bf16.msra.mxu0 0
      %2875 = vmatprep.mubr.bf16.mxu0 0
      %2876 = vmatmul.mubr.bf16.gmra.mrb[0].mxu0 %v2607
      %v2877 = vpop.f32.mrb[0].mxu0
      %v2878 = vadd.f32 0.0, %v2877
      %v2879 = vpop.f32.mrb[0].mxu0
      %v2880 = vadd.f32 0.0, %v2879
      %v2881 = vpop.f32.mrb[0].mxu0
      %v2882 = vadd.f32 0.0, %v2881
      %v2883 = vpop.f32.mrb[0].mxu0
      %v2884 = vadd.f32 0.0, %v2883
      %2885 = vdwg.mxu0
      %v2886 = vadd.f32 %v2599, %v2835
      %v2887 = vadd.f32 %v2600, %v2837
      %v2888 = vadd.f32 %v2601, %v2878
      %v2889 = vadd.f32 %v2602, %v2880
      %v2890 = vadd.f32 %v2603, %v2839
      %v2891 = vadd.f32 %v2604, %v2841
      %v2892 = vadd.f32 %v2605, %v2882
      %v2893 = vadd.f32 %v2606, %v2884
      %v2894 = vxor.u32 %v2886, 2147483648
      %v2895 = vxor.u32 %v2890, 2147483648
      %v2896 = vmul.f32 %v2894, 1.442695
      %v2897 = vpow.pop %v2896
      %v2898 = vmul.f32 %v2895, 1.442695
      %v2899 = vpow.pop %v2898
      %v2900 = vadd.f32 %v2897, 1.0
      %v2901 = vadd.f32 %v2899, 1.0
      %v2902 = vrcp.pop %v2900
      %v2903 = vmul.f32 1.0, %v2902
      %v2904 = vrcp.pop %v2901
      %v2905 = vmul.f32 1.0, %v2904
      %v2906 = vxor.u32 %v2887, 2147483648
      %v2907 = vxor.u32 %v2891, 2147483648
      %v2908 = vmul.f32 %v2906, 1.442695
      %v2909 = vpow.pop %v2908
      %v2910 = vmul.f32 %v2907, 1.442695
      %v2911 = vpow.pop %v2910
      %v2912 = vadd.f32 %v2909, 1.0
      %v2913 = vadd.f32 %v2911, 1.0
      %v2914 = vrcp.pop %v2912
      %v2915 = vmul.f32 1.0, %v2914
      %v2916 = vrcp.pop %v2913
      %v2917 = vmul.f32 1.0, %v2916
      %v2918 = vtanh.pop %v2888
      %v2919 = vtanh.pop %v2892
      %v2920 = vxor.u32 %v2889, 2147483648
      %v2921 = vxor.u32 %v2893, 2147483648
      %v2922 = vmul.f32 %v2920, 1.442695
      %v2923 = vpow.pop %v2922
      %v2924 = vmul.f32 %v2921, 1.442695
      %v2925 = vpow.pop %v2924
      %v2926 = vadd.f32 %v2923, 1.0
      %v2927 = vadd.f32 %v2925, 1.0
      %v2928 = vrcp.pop %v2926
      %v2929 = vmul.f32 1.0, %v2928
      %v2930 = vrcp.pop %v2927
      %v2931 = vmul.f32 1.0, %v2930
      %v2932 = vmul.f32 %v2915, %v2594
      %v2933 = vmul.f32 %v2917, %v2595
      %v2934 = vmul.f32 %v2903, %v2918
      %v2935 = vmul.f32 %v2905, %v2919
      %v2936 = vadd.f32 %v2932, %v2934
      %v2937 = vadd.f32 %v2933, %v2935
      %v2938 = vtanh.pop %v2936
      %v2939 = vtanh.pop %v2937
      %v2940 = vmul.f32 %v2929, %v2938
      %v2941 = vmul.f32 %v2931, %v2939
      %s2942 = sadd.s32 %s65, 5
      %v2943 = vstv %s2942
      %vm2944 = vcmp.gt.s32.totalorder %v67, %v2943
      %vm2945 = vcmp.gt.s32.totalorder %v68, %v2943
      %v2946 = vsel %vm2944, 1, 0
      %v2947 = vsel %vm2945, 1, 0
      %2948 = vset.pattern.permute.xlu0 0
      %2949 = vperm.xlu0 %2948, %v2946
      %v2950 = vpop.permute.xlu0 %2949
      %2951 = vset.pattern.permute.xlu0 0
      %2952 = vperm.xlu0 %2951, %v2947
      %v2953 = vpop.permute.xlu0 %2952
      %vm2954 = vcmp.eq.s32.totalorder %v2950, 1
      %vm2955 = vcmp.eq.s32.totalorder %v2953, 1
      %v2956 = vsel %vm2954, %v2940, %v2592
      %v2957 = vsel %vm2955, %v2941, %v2593
      %2958 = vst [vmem:[#allocation3] sm:$0xff] %v2956
      %2959 = vst [vmem:[#allocation3 + $0x8] sm:$0xff] %v2957
      %v2960 = vsel %vm2954, %v2936, %v2594
      %v2961 = vsel %vm2955, %v2937, %v2595
      %2962 = vst [vmem:[#allocation4] sm:$0xff] %v2960
      %2963 = vst [vmem:[#allocation4 + $0x8] sm:$0xff] %v2961
      %v2964 = vsel %vm2954, %v2940, 0.0
      %v2965 = vsel %vm2955, %v2941, 0.0
      %v2966 = vpack.c.bf16 %v2965, %v2964
      %v2968 = vunpack.c.l.b16 %v2966
      %v2969 = vunpack.c.h.b16 %v2966
      %v2970 = vpack.c.b16 %v2968, %v2968
      %v2971 = vpack.c.b16 %v2969, %v2969
      %s2974 = scalar_lea.vmem [#allocation13], 40
      %2975 = vst [vmem:[%s2974] sm:$0xf] %v2970
      %2976 = vst [vmem:[%s2974 + $0x4] sm:$0xf] %v2971
      %v2977 = vld [vmem:[#allocation3] sm:$0xff]
      %v2978 = vld [vmem:[#allocation3 + $0x8] sm:$0xff]
      %v2979 = vld [vmem:[#allocation4] sm:$0xff]
      %v2980 = vld [vmem:[#allocation4 + $0x8] sm:$0xff]
      %s2981 = smul.u32 12, 4
      %s2982 = smul.addr %s2981, 8
      %s2983 = scalar_lea.vmem [#allocation2], %s2982
      %v2984 = vld [vmem:[%s2983] sm:$0xff]
      %v2985 = vld [vmem:[%s2983 + $0x8] sm:$0xff]
      %v2986 = vld [vmem:[%s2983 + $0x10] sm:$0xff]
      %v2987 = vld [vmem:[%s2983 + $0x18] sm:$0xff]
      %v2988 = vld [vmem:[%s2983 + $0x20] sm:$0xff]
      %v2989 = vld [vmem:[%s2983 + $0x28] sm:$0xff]
      %v2990 = vld [vmem:[%s2983 + $0x30] sm:$0xff]
      %v2991 = vld [vmem:[%s2983 + $0x38] sm:$0xff]
      %v2992 = vpack.c.bf16 %v2978, %v2977
      %v2993 = vld [vmem:[#allocation12] sm:$0xff]
      %v2994 = vld [vmem:[#allocation12 + $0x8] sm:$0xff]
      %v2995 = vld [vmem:[#allocation12 + $0x10] sm:$0xff]
      %v2996 = vld [vmem:[#allocation12 + $0x18] sm:$0xff]
      %v2997 = vld [vmem:[#allocation12 + $0x20] sm:$0xff]
      %v2998 = vld [vmem:[#allocation12 + $0x28] sm:$0xff]
      %v2999 = vld [vmem:[#allocation12 + $0x30] sm:$0xff]
      %v3000 = vld [vmem:[#allocation12 + $0x38] sm:$0xff]
      %v3001 = vld [vmem:[#allocation12 + $0x40] sm:$0xff]
      %v3002 = vld [vmem:[#allocation12 + $0x48] sm:$0xff]
      %v3003 = vld [vmem:[#allocation12 + $0x50] sm:$0xff]
      %v3004 = vld [vmem:[#allocation12 + $0x58] sm:$0xff]
      %v3005 = vld [vmem:[#allocation12 + $0x60] sm:$0xff]
      %v3006 = vld [vmem:[#allocation12 + $0x68] sm:$0xff]
      %v3007 = vld [vmem:[#allocation12 + $0x70] sm:$0xff]
      %v3008 = vld [vmem:[#allocation12 + $0x78] sm:$0xff]
      %v3009 = vld [vmem:[#allocation12 + $0x80] sm:$0xff]
      %v3010 = vld [vmem:[#allocation12 + $0x88] sm:$0xff]
      %v3011 = vld [vmem:[#allocation12 + $0x90] sm:$0xff]
      %v3012 = vld [vmem:[#allocation12 + $0x98] sm:$0xff]
      %v3013 = vld [vmem:[#allocation12 + $0xa0] sm:$0xff]
      %v3014 = vld [vmem:[#allocation12 + $0xa8] sm:$0xff]
      %v3015 = vld [vmem:[#allocation12 + $0xb0] sm:$0xff]
      %v3016 = vld [vmem:[#allocation12 + $0xb8] sm:$0xff]
      %v3017 = vld [vmem:[#allocation12 + $0xc0] sm:$0xff]
      %v3018 = vld [vmem:[#allocation12 + $0xc8] sm:$0xff]
      %v3019 = vld [vmem:[#allocation12 + $0xd0] sm:$0xff]
      %v3020 = vld [vmem:[#allocation12 + $0xd8] sm:$0xff]
      %v3021 = vld [vmem:[#allocation12 + $0xe0] sm:$0xff]
      %v3022 = vld [vmem:[#allocation12 + $0xe8] sm:$0xff]
      %v3023 = vld [vmem:[#allocation12 + $0xf0] sm:$0xff]
      %v3024 = vld [vmem:[#allocation12 + $0xf8] sm:$0xff]
      %v3057 = vunpack.c.l.b16 %v2993
      %v3058 = vunpack.c.h.b16 %v2993
      %v3059 = vunpack.c.l.b16 %v2994
      %v3060 = vunpack.c.h.b16 %v2994
      %v3061 = vunpack.c.l.b16 %v2995
      %v3062 = vunpack.c.h.b16 %v2995
      %v3063 = vunpack.c.l.b16 %v2996
      %v3064 = vunpack.c.h.b16 %v2996
      %v3065 = vunpack.c.l.b16 %v2997
      %v3066 = vunpack.c.h.b16 %v2997
      %v3067 = vunpack.c.l.b16 %v2998
      %v3068 = vunpack.c.h.b16 %v2998
      %v3069 = vunpack.c.l.b16 %v2999
      %v3070 = vunpack.c.h.b16 %v2999
      %v3071 = vunpack.c.l.b16 %v3000
      %v3072 = vunpack.c.h.b16 %v3000
      %v3073 = vunpack.c.l.b16 %v3001
      %v3074 = vunpack.c.h.b16 %v3001
      %v3075 = vunpack.c.l.b16 %v3002
      %v3076 = vunpack.c.h.b16 %v3002
      %v3077 = vunpack.c.l.b16 %v3003
      %v3078 = vunpack.c.h.b16 %v3003
      %v3079 = vunpack.c.l.b16 %v3004
      %v3080 = vunpack.c.h.b16 %v3004
      %v3081 = vunpack.c.l.b16 %v3005
      %v3082 = vunpack.c.h.b16 %v3005
      %v3083 = vunpack.c.l.b16 %v3006
      %v3084 = vunpack.c.h.b16 %v3006
      %v3085 = vunpack.c.l.b16 %v3007
      %v3086 = vunpack.c.h.b16 %v3007
      %v3087 = vunpack.c.l.b16 %v3008
      %v3088 = vunpack.c.h.b16 %v3008
      %v3089 = vunpack.c.l.b16 %v3009
      %v3090 = vunpack.c.h.b16 %v3009
      %v3091 = vunpack.c.l.b16 %v3010
      %v3092 = vunpack.c.h.b16 %v3010
      %v3093 = vunpack.c.l.b16 %v3011
      %v3094 = vunpack.c.h.b16 %v3011
      %v3095 = vunpack.c.l.b16 %v3012
      %v3096 = vunpack.c.h.b16 %v3012
      %v3097 = vunpack.c.l.b16 %v3013
      %v3098 = vunpack.c.h.b16 %v3013
      %v3099 = vunpack.c.l.b16 %v3014
      %v3100 = vunpack.c.h.b16 %v3014
      %v3101 = vunpack.c.l.b16 %v3015
      %v3102 = vunpack.c.h.b16 %v3015
      %v3103 = vunpack.c.l.b16 %v3016
      %v3104 = vunpack.c.h.b16 %v3016
      %v3105 = vunpack.c.l.b16 %v3017
      %v3106 = vunpack.c.h.b16 %v3017
      %v3107 = vunpack.c.l.b16 %v3018
      %v3108 = vunpack.c.h.b16 %v3018
      %v3109 = vunpack.c.l.b16 %v3019
      %v3110 = vunpack.c.h.b16 %v3019
      %v3111 = vunpack.c.l.b16 %v3020
      %v3112 = vunpack.c.h.b16 %v3020
      %v3113 = vunpack.c.l.b16 %v3021
      %v3114 = vunpack.c.h.b16 %v3021
      %v3115 = vunpack.c.l.b16 %v3022
      %v3116 = vunpack.c.h.b16 %v3022
      %v3117 = vunpack.c.l.b16 %v3023
      %v3118 = vunpack.c.h.b16 %v3023
      %v3119 = vunpack.c.l.b16 %v3024
      %v3120 = vunpack.c.h.b16 %v3024
      %v3121 = vpack.c.b16 %v3061, %v3057
      %v3122 = vpack.c.b16 %v3062, %v3058
      %v3123 = vpack.c.b16 %v3063, %v3059
      %v3124 = vpack.c.b16 %v3064, %v3060
      %v3125 = vpack.c.b16 %v3069, %v3065
      %v3126 = vpack.c.b16 %v3070, %v3066
      %v3127 = vpack.c.b16 %v3071, %v3067
      %v3128 = vpack.c.b16 %v3072, %v3068
      %v3129 = vpack.c.b16 %v3077, %v3073
      %v3130 = vpack.c.b16 %v3078, %v3074
      %v3131 = vpack.c.b16 %v3079, %v3075
      %v3132 = vpack.c.b16 %v3080, %v3076
      %v3133 = vpack.c.b16 %v3085, %v3081
      %v3134 = vpack.c.b16 %v3086, %v3082
      %v3135 = vpack.c.b16 %v3087, %v3083
      %v3136 = vpack.c.b16 %v3088, %v3084
      %v3137 = vpack.c.b16 %v3093, %v3089
      %v3138 = vpack.c.b16 %v3094, %v3090
      %v3139 = vpack.c.b16 %v3095, %v3091
      %v3140 = vpack.c.b16 %v3096, %v3092
      %v3141 = vpack.c.b16 %v3101, %v3097
      %v3142 = vpack.c.b16 %v3102, %v3098
      %v3143 = vpack.c.b16 %v3103, %v3099
      %v3144 = vpack.c.b16 %v3104, %v3100
      %v3145 = vpack.c.b16 %v3109, %v3105
      %v3146 = vpack.c.b16 %v3110, %v3106
      %v3147 = vpack.c.b16 %v3111, %v3107
      %v3148 = vpack.c.b16 %v3112, %v3108
      %v3149 = vpack.c.b16 %v3117, %v3113
      %v3150 = vpack.c.b16 %v3118, %v3114
      %v3151 = vpack.c.b16 %v3119, %v3115
      %v3152 = vpack.c.b16 %v3120, %v3116
      %3185 = vmatprep.subr.bf16.mxu0 %v3122
      %3186 = vmatpush1.bf16.msra.mxu0 %v3121
      %3187 = vmatprep.subr.bf16.mxu0 %v3126
      %3188 = vmatpush1.bf16.msra.mxu0 %v3125
      %3189 = vmatprep.subr.bf16.mxu0 %v3130
      %3190 = vmatpush1.bf16.msra.mxu0 %v3129
      %3191 = vmatprep.subr.bf16.mxu0 %v3134
      %3192 = vmatpush1.bf16.msra.mxu0 %v3133
      %3193 = vmatprep.subr.bf16.mxu0 %v3138
      %3194 = vmatpush1.bf16.msra.mxu0 %v3137
      %3195 = vmatprep.subr.bf16.mxu0 %v3142
      %3196 = vmatpush1.bf16.msra.mxu0 %v3141
      %3197 = vmatprep.subr.bf16.mxu0 %v3146
      %3198 = vmatpush1.bf16.msra.mxu0 %v3145
      %3199 = vmatprep.subr.bf16.mxu0 %v3150
      %3200 = vmatpush1.bf16.msra.mxu0 %v3149
      %3201 = vmatprep.subr.bf16.mxu0 0
      %3202 = vmatpush1.bf16.msra.mxu0 0
      %3203 = vmatprep.subr.bf16.mxu0 0
      %3204 = vmatpush1.bf16.msra.mxu0 0
      %3205 = vmatprep.subr.bf16.mxu0 0
      %3206 = vmatpush1.bf16.msra.mxu0 0
      %3207 = vmatprep.subr.bf16.mxu0 0
      %3208 = vmatpush1.bf16.msra.mxu0 0
      %3209 = vmatprep.subr.bf16.mxu0 0
      %3210 = vmatpush1.bf16.msra.mxu0 0
      %3211 = vmatprep.subr.bf16.mxu0 0
      %3212 = vmatpush1.bf16.msra.mxu0 0
      %3213 = vmatprep.subr.bf16.mxu0 0
      %3214 = vmatpush1.bf16.msra.mxu0 0
      %3215 = vmatprep.subr.bf16.mxu0 0
      %3216 = vmatpush1.bf16.msra.mxu0 0
      %3217 = vmatprep.mubr.bf16.mxu0 0
      %3218 = vmatmul.mubr.bf16.gmra.mrb[0].mxu0 %v2992
      %v3219 = vpop.f32.mrb[0].mxu0
      %v3220 = vadd.f32 0.0, %v3219
      %v3221 = vpop.f32.mrb[0].mxu0
      %v3222 = vadd.f32 0.0, %v3221
      %v3223 = vpop.f32.mrb[0].mxu0
      %v3224 = vadd.f32 0.0, %v3223
      %v3225 = vpop.f32.mrb[0].mxu0
      %v3226 = vadd.f32 0.0, %v3225
      %3227 = vdwg.mxu0
      %3228 = vmatprep.subr.bf16.mxu0 %v3124
      %3229 = vmatpush1.bf16.msra.mxu0 %v3123
      %3230 = vmatprep.subr.bf16.mxu0 %v3128
      %3231 = vmatpush1.bf16.msra.mxu0 %v3127
      %3232 = vmatprep.subr.bf16.mxu0 %v3132
      %3233 = vmatpush1.bf16.msra.mxu0 %v3131
      %3234 = vmatprep.subr.bf16.mxu0 %v3136
      %3235 = vmatpush1.bf16.msra.mxu0 %v3135
      %3236 = vmatprep.subr.bf16.mxu0 %v3140
      %3237 = vmatpush1.bf16.msra.mxu0 %v3139
      %3238 = vmatprep.subr.bf16.mxu0 %v3144
      %3239 = vmatpush1.bf16.msra.mxu0 %v3143
      %3240 = vmatprep.subr.bf16.mxu0 %v3148
      %3241 = vmatpush1.bf16.msra.mxu0 %v3147
      %3242 = vmatprep.subr.bf16.mxu0 %v3152
      %3243 = vmatpush1.bf16.msra.mxu0 %v3151
      %3244 = vmatprep.subr.bf16.mxu0 0
      %3245 = vmatpush1.bf16.msra.mxu0 0
      %3246 = vmatprep.subr.bf16.mxu0 0
      %3247 = vmatpush1.bf16.msra.mxu0 0
      %3248 = vmatprep.subr.bf16.mxu0 0
      %3249 = vmatpush1.bf16.msra.mxu0 0
      %3250 = vmatprep.subr.bf16.mxu0 0
      %3251 = vmatpush1.bf16.msra.mxu0 0
      %3252 = vmatprep.subr.bf16.mxu0 0
      %3253 = vmatpush1.bf16.msra.mxu0 0
      %3254 = vmatprep.subr.bf16.mxu0 0
      %3255 = vmatpush1.bf16.msra.mxu0 0
      %3256 = vmatprep.subr.bf16.mxu0 0
      %3257 = vmatpush1.bf16.msra.mxu0 0
      %3258 = vmatprep.subr.bf16.mxu0 0
      %3259 = vmatpush1.bf16.msra.mxu0 0
      %3260 = vmatprep.mubr.bf16.mxu0 0
      %3261 = vmatmul.mubr.bf16.gmra.mrb[0].mxu0 %v2992
      %v3262 = vpop.f32.mrb[0].mxu0
      %v3263 = vadd.f32 0.0, %v3262
      %v3264 = vpop.f32.mrb[0].mxu0
      %v3265 = vadd.f32 0.0, %v3264
      %v3266 = vpop.f32.mrb[0].mxu0
      %v3267 = vadd.f32 0.0, %v3266
      %v3268 = vpop.f32.mrb[0].mxu0
      %v3269 = vadd.f32 0.0, %v3268
      %3270 = vdwg.mxu0
      %v3271 = vadd.f32 %v2984, %v3220
      %v3272 = vadd.f32 %v2985, %v3222
      %v3273 = vadd.f32 %v2986, %v3263
      %v3274 = vadd.f32 %v2987, %v3265
      %v3275 = vadd.f32 %v2988, %v3224
      %v3276 = vadd.f32 %v2989, %v3226
      %v3277 = vadd.f32 %v2990, %v3267
      %v3278 = vadd.f32 %v2991, %v3269
      %v3279 = vxor.u32 %v3271, 2147483648
      %v3280 = vxor.u32 %v3275, 2147483648
      %v3281 = vmul.f32 %v3279, 1.442695
      %v3282 = vpow.pop %v3281
      %v3283 = vmul.f32 %v3280, 1.442695
      %v3284 = vpow.pop %v3283
      %v3285 = vadd.f32 %v3282, 1.0
      %v3286 = vadd.f32 %v3284, 1.0
      %v3287 = vrcp.pop %v3285
      %v3288 = vmul.f32 1.0, %v3287
      %v3289 = vrcp.pop %v3286
      %v3290 = vmul.f32 1.0, %v3289
      %v3291 = vxor.u32 %v3272, 2147483648
      %v3292 = vxor.u32 %v3276, 2147483648
      %v3293 = vmul.f32 %v3291, 1.442695
      %v3294 = vpow.pop %v3293
      %v3295 = vmul.f32 %v3292, 1.442695
      %v3296 = vpow.pop %v3295
      %v3297 = vadd.f32 %v3294, 1.0
      %v3298 = vadd.f32 %v3296, 1.0
      %v3299 = vrcp.pop %v3297
      %v3300 = vmul.f32 1.0, %v3299
      %v3301 = vrcp.pop %v3298
      %v3302 = vmul.f32 1.0, %v3301
      %v3303 = vtanh.pop %v3273
      %v3304 = vtanh.pop %v3277
      %v3305 = vxor.u32 %v3274, 2147483648
      %v3306 = vxor.u32 %v3278, 2147483648
      %v3307 = vmul.f32 %v3305, 1.442695
      %v3308 = vpow.pop %v3307
      %v3309 = vmul.f32 %v3306, 1.442695
      %v3310 = vpow.pop %v3309
      %v3311 = vadd.f32 %v3308, 1.0
      %v3312 = vadd.f32 %v3310, 1.0
      %v3313 = vrcp.pop %v3311
      %v3314 = vmul.f32 1.0, %v3313
      %v3315 = vrcp.pop %v3312
      %v3316 = vmul.f32 1.0, %v3315
      %v3317 = vmul.f32 %v3300, %v2979
      %v3318 = vmul.f32 %v3302, %v2980
      %v3319 = vmul.f32 %v3288, %v3303
      %v3320 = vmul.f32 %v3290, %v3304
      %v3321 = vadd.f32 %v3317, %v3319
      %v3322 = vadd.f32 %v3318, %v3320
      %v3323 = vtanh.pop %v3321
      %v3324 = vtanh.pop %v3322
      %v3325 = vmul.f32 %v3314, %v3323
      %v3326 = vmul.f32 %v3316, %v3324
      %s3327 = sadd.s32 %s65, 6
      %v3328 = vstv %s3327
      %vm3329 = vcmp.gt.s32.totalorder %v67, %v3328
      %vm3330 = vcmp.gt.s32.totalorder %v68, %v3328
      %v3331 = vsel %vm3329, 1, 0
      %v3332 = vsel %vm3330, 1, 0
      %3333 = vset.pattern.permute.xlu0 0
      %3334 = vperm.xlu0 %3333, %v3331
      %v3335 = vpop.permute.xlu0 %3334
      %3336 = vset.pattern.permute.xlu0 0
      %3337 = vperm.xlu0 %3336, %v3332
      %v3338 = vpop.permute.xlu0 %3337
      %vm3339 = vcmp.eq.s32.totalorder %v3335, 1
      %vm3340 = vcmp.eq.s32.totalorder %v3338, 1
      %v3341 = vsel %vm3339, %v3325, %v2977
      %v3342 = vsel %vm3340, %v3326, %v2978
      %3343 = vst [vmem:[#allocation3] sm:$0xff] %v3341
      %3344 = vst [vmem:[#allocation3 + $0x8] sm:$0xff] %v3342
      %v3345 = vsel %vm3339, %v3321, %v2979
      %v3346 = vsel %vm3340, %v3322, %v2980
      %3347 = vst [vmem:[#allocation4] sm:$0xff] %v3345
      %3348 = vst [vmem:[#allocation4 + $0x8] sm:$0xff] %v3346
      %v3349 = vsel %vm3339, %v3325, 0.0
      %v3350 = vsel %vm3340, %v3326, 0.0
      %v3351 = vpack.c.bf16 %v3350, %v3349
      %v3353 = vunpack.c.l.b16 %v3351
      %v3354 = vunpack.c.h.b16 %v3351
      %v3355 = vpack.c.b16 %v3353, %v3353
      %v3356 = vpack.c.b16 %v3354, %v3354
      %s3359 = scalar_lea.vmem [#allocation13], 48
      %3360 = vst [vmem:[%s3359] sm:$0xf] %v3355
      %3361 = vst [vmem:[%s3359 + $0x4] sm:$0xf] %v3356
      %v3362 = vld [vmem:[#allocation3] sm:$0xff]
      %v3363 = vld [vmem:[#allocation3 + $0x8] sm:$0xff]
      %v3364 = vld [vmem:[#allocation4] sm:$0xff]
      %v3365 = vld [vmem:[#allocation4 + $0x8] sm:$0xff]
      %s3366 = smul.u32 14, 4
      %s3367 = smul.addr %s3366, 8
      %s3368 = scalar_lea.vmem [#allocation2], %s3367
      %v3369 = vld [vmem:[%s3368] sm:$0xff]
      %v3370 = vld [vmem:[%s3368 + $0x8] sm:$0xff]
      %v3371 = vld [vmem:[%s3368 + $0x10] sm:$0xff]
      %v3372 = vld [vmem:[%s3368 + $0x18] sm:$0xff]
      %v3373 = vld [vmem:[%s3368 + $0x20] sm:$0xff]
      %v3374 = vld [vmem:[%s3368 + $0x28] sm:$0xff]
      %v3375 = vld [vmem:[%s3368 + $0x30] sm:$0xff]
      %v3376 = vld [vmem:[%s3368 + $0x38] sm:$0xff]
      %v3377 = vpack.c.bf16 %v3363, %v3362
      %v3378 = vld [vmem:[#allocation12] sm:$0xff]
      %v3379 = vld [vmem:[#allocation12 + $0x8] sm:$0xff]
      %v3380 = vld [vmem:[#allocation12 + $0x10] sm:$0xff]
      %v3381 = vld [vmem:[#allocation12 + $0x18] sm:$0xff]
      %v3382 = vld [vmem:[#allocation12 + $0x20] sm:$0xff]
      %v3383 = vld [vmem:[#allocation12 + $0x28] sm:$0xff]
      %v3384 = vld [vmem:[#allocation12 + $0x30] sm:$0xff]
      %v3385 = vld [vmem:[#allocation12 + $0x38] sm:$0xff]
      %v3386 = vld [vmem:[#allocation12 + $0x40] sm:$0xff]
      %v3387 = vld [vmem:[#allocation12 + $0x48] sm:$0xff]
      %v3388 = vld [vmem:[#allocation12 + $0x50] sm:$0xff]
      %v3389 = vld [vmem:[#allocation12 + $0x58] sm:$0xff]
      %v3390 = vld [vmem:[#allocation12 + $0x60] sm:$0xff]
      %v3391 = vld [vmem:[#allocation12 + $0x68] sm:$0xff]
      %v3392 = vld [vmem:[#allocation12 + $0x70] sm:$0xff]
      %v3393 = vld [vmem:[#allocation12 + $0x78] sm:$0xff]
      %v3394 = vld [vmem:[#allocation12 + $0x80] sm:$0xff]
      %v3395 = vld [vmem:[#allocation12 + $0x88] sm:$0xff]
      %v3396 = vld [vmem:[#allocation12 + $0x90] sm:$0xff]
      %v3397 = vld [vmem:[#allocation12 + $0x98] sm:$0xff]
      %v3398 = vld [vmem:[#allocation12 + $0xa0] sm:$0xff]
      %v3399 = vld [vmem:[#allocation12 + $0xa8] sm:$0xff]
      %v3400 = vld [vmem:[#allocation12 + $0xb0] sm:$0xff]
      %v3401 = vld [vmem:[#allocation12 + $0xb8] sm:$0xff]
      %v3402 = vld [vmem:[#allocation12 + $0xc0] sm:$0xff]
      %v3403 = vld [vmem:[#allocation12 + $0xc8] sm:$0xff]
      %v3404 = vld [vmem:[#allocation12 + $0xd0] sm:$0xff]
      %v3405 = vld [vmem:[#allocation12 + $0xd8] sm:$0xff]
      %v3406 = vld [vmem:[#allocation12 + $0xe0] sm:$0xff]
      %v3407 = vld [vmem:[#allocation12 + $0xe8] sm:$0xff]
      %v3408 = vld [vmem:[#allocation12 + $0xf0] sm:$0xff]
      %v3409 = vld [vmem:[#allocation12 + $0xf8] sm:$0xff]
      %v3442 = vunpack.c.l.b16 %v3378
      %v3443 = vunpack.c.h.b16 %v3378
      %v3444 = vunpack.c.l.b16 %v3379
      %v3445 = vunpack.c.h.b16 %v3379
      %v3446 = vunpack.c.l.b16 %v3380
      %v3447 = vunpack.c.h.b16 %v3380
      %v3448 = vunpack.c.l.b16 %v3381
      %v3449 = vunpack.c.h.b16 %v3381
      %v3450 = vunpack.c.l.b16 %v3382
      %v3451 = vunpack.c.h.b16 %v3382
      %v3452 = vunpack.c.l.b16 %v3383
      %v3453 = vunpack.c.h.b16 %v3383
      %v3454 = vunpack.c.l.b16 %v3384
      %v3455 = vunpack.c.h.b16 %v3384
      %v3456 = vunpack.c.l.b16 %v3385
      %v3457 = vunpack.c.h.b16 %v3385
      %v3458 = vunpack.c.l.b16 %v3386
      %v3459 = vunpack.c.h.b16 %v3386
      %v3460 = vunpack.c.l.b16 %v3387
      %v3461 = vunpack.c.h.b16 %v3387
      %v3462 = vunpack.c.l.b16 %v3388
      %v3463 = vunpack.c.h.b16 %v3388
      %v3464 = vunpack.c.l.b16 %v3389
      %v3465 = vunpack.c.h.b16 %v3389
      %v3466 = vunpack.c.l.b16 %v3390
      %v3467 = vunpack.c.h.b16 %v3390
      %v3468 = vunpack.c.l.b16 %v3391
      %v3469 = vunpack.c.h.b16 %v3391
      %v3470 = vunpack.c.l.b16 %v3392
      %v3471 = vunpack.c.h.b16 %v3392
      %v3472 = vunpack.c.l.b16 %v3393
      %v3473 = vunpack.c.h.b16 %v3393
      %v3474 = vunpack.c.l.b16 %v3394
      %v3475 = vunpack.c.h.b16 %v3394
      %v3476 = vunpack.c.l.b16 %v3395
      %v3477 = vunpack.c.h.b16 %v3395
      %v3478 = vunpack.c.l.b16 %v3396
      %v3479 = vunpack.c.h.b16 %v3396
      %v3480 = vunpack.c.l.b16 %v3397
      %v3481 = vunpack.c.h.b16 %v3397
      %v3482 = vunpack.c.l.b16 %v3398
      %v3483 = vunpack.c.h.b16 %v3398
      %v3484 = vunpack.c.l.b16 %v3399
      %v3485 = vunpack.c.h.b16 %v3399
      %v3486 = vunpack.c.l.b16 %v3400
      %v3487 = vunpack.c.h.b16 %v3400
      %v3488 = vunpack.c.l.b16 %v3401
      %v3489 = vunpack.c.h.b16 %v3401
      %v3490 = vunpack.c.l.b16 %v3402
      %v3491 = vunpack.c.h.b16 %v3402
      %v3492 = vunpack.c.l.b16 %v3403
      %v3493 = vunpack.c.h.b16 %v3403
      %v3494 = vunpack.c.l.b16 %v3404
      %v3495 = vunpack.c.h.b16 %v3404
      %v3496 = vunpack.c.l.b16 %v3405
      %v3497 = vunpack.c.h.b16 %v3405
      %v3498 = vunpack.c.l.b16 %v3406
      %v3499 = vunpack.c.h.b16 %v3406
      %v3500 = vunpack.c.l.b16 %v3407
      %v3501 = vunpack.c.h.b16 %v3407
      %v3502 = vunpack.c.l.b16 %v3408
      %v3503 = vunpack.c.h.b16 %v3408
      %v3504 = vunpack.c.l.b16 %v3409
      %v3505 = vunpack.c.h.b16 %v3409
      %v3506 = vpack.c.b16 %v3446, %v3442
      %v3507 = vpack.c.b16 %v3447, %v3443
      %v3508 = vpack.c.b16 %v3448, %v3444
      %v3509 = vpack.c.b16 %v3449, %v3445
      %v3510 = vpack.c.b16 %v3454, %v3450
      %v3511 = vpack.c.b16 %v3455, %v3451
      %v3512 = vpack.c.b16 %v3456, %v3452
      %v3513 = vpack.c.b16 %v3457, %v3453
      %v3514 = vpack.c.b16 %v3462, %v3458
      %v3515 = vpack.c.b16 %v3463, %v3459
      %v3516 = vpack.c.b16 %v3464, %v3460
      %v3517 = vpack.c.b16 %v3465, %v3461
      %v3518 = vpack.c.b16 %v3470, %v3466
      %v3519 = vpack.c.b16 %v3471, %v3467
      %v3520 = vpack.c.b16 %v3472, %v3468
      %v3521 = vpack.c.b16 %v3473, %v3469
      %v3522 = vpack.c.b16 %v3478, %v3474
      %v3523 = vpack.c.b16 %v3479, %v3475
      %v3524 = vpack.c.b16 %v3480, %v3476
      %v3525 = vpack.c.b16 %v3481, %v3477
      %v3526 = vpack.c.b16 %v3486, %v3482
      %v3527 = vpack.c.b16 %v3487, %v3483
      %v3528 = vpack.c.b16 %v3488, %v3484
      %v3529 = vpack.c.b16 %v3489, %v3485
      %v3530 = vpack.c.b16 %v3494, %v3490
      %v3531 = vpack.c.b16 %v3495, %v3491
      %v3532 = vpack.c.b16 %v3496, %v3492
      %v3533 = vpack.c.b16 %v3497, %v3493
      %v3534 = vpack.c.b16 %v3502, %v3498
      %v3535 = vpack.c.b16 %v3503, %v3499
      %v3536 = vpack.c.b16 %v3504, %v3500
      %v3537 = vpack.c.b16 %v3505, %v3501
      %3570 = vmatprep.subr.bf16.mxu0 %v3507
      %3571 = vmatpush1.bf16.msra.mxu0 %v3506
      %3572 = vmatprep.subr.bf16.mxu0 %v3511
      %3573 = vmatpush1.bf16.msra.mxu0 %v3510
      %3574 = vmatprep.subr.bf16.mxu0 %v3515
      %3575 = vmatpush1.bf16.msra.mxu0 %v3514
      %3576 = vmatprep.subr.bf16.mxu0 %v3519
      %3577 = vmatpush1.bf16.msra.mxu0 %v3518
      %3578 = vmatprep.subr.bf16.mxu0 %v3523
      %3579 = vmatpush1.bf16.msra.mxu0 %v3522
      %3580 = vmatprep.subr.bf16.mxu0 %v3527
      %3581 = vmatpush1.bf16.msra.mxu0 %v3526
      %3582 = vmatprep.subr.bf16.mxu0 %v3531
      %3583 = vmatpush1.bf16.msra.mxu0 %v3530
      %3584 = vmatprep.subr.bf16.mxu0 %v3535
      %3585 = vmatpush1.bf16.msra.mxu0 %v3534
      %3586 = vmatprep.subr.bf16.mxu0 0
      %3587 = vmatpush1.bf16.msra.mxu0 0
      %3588 = vmatprep.subr.bf16.mxu0 0
      %3589 = vmatpush1.bf16.msra.mxu0 0
      %3590 = vmatprep.subr.bf16.mxu0 0
      %3591 = vmatpush1.bf16.msra.mxu0 0
      %3592 = vmatprep.subr.bf16.mxu0 0
      %3593 = vmatpush1.bf16.msra.mxu0 0
      %3594 = vmatprep.subr.bf16.mxu0 0
      %3595 = vmatpush1.bf16.msra.mxu0 0
      %3596 = vmatprep.subr.bf16.mxu0 0
      %3597 = vmatpush1.bf16.msra.mxu0 0
      %3598 = vmatprep.subr.bf16.mxu0 0
      %3599 = vmatpush1.bf16.msra.mxu0 0
      %3600 = vmatprep.subr.bf16.mxu0 0
      %3601 = vmatpush1.bf16.msra.mxu0 0
      %3602 = vmatprep.mubr.bf16.mxu0 0
      %3603 = vmatmul.mubr.bf16.gmra.mrb[0].mxu0 %v3377
      %v3604 = vpop.f32.mrb[0].mxu0
      %v3605 = vadd.f32 0.0, %v3604
      %v3606 = vpop.f32.mrb[0].mxu0
      %v3607 = vadd.f32 0.0, %v3606
      %v3608 = vpop.f32.mrb[0].mxu0
      %v3609 = vadd.f32 0.0, %v3608
      %v3610 = vpop.f32.mrb[0].mxu0
      %v3611 = vadd.f32 0.0, %v3610
      %3612 = vdwg.mxu0
      %3613 = vmatprep.subr.bf16.mxu0 %v3509
      %3614 = vmatpush1.bf16.msra.mxu0 %v3508
      %3615 = vmatprep.subr.bf16.mxu0 %v3513
      %3616 = vmatpush1.bf16.msra.mxu0 %v3512
      %3617 = vmatprep.subr.bf16.mxu0 %v3517
      %3618 = vmatpush1.bf16.msra.mxu0 %v3516
      %3619 = vmatprep.subr.bf16.mxu0 %v3521
      %3620 = vmatpush1.bf16.msra.mxu0 %v3520
      %3621 = vmatprep.subr.bf16.mxu0 %v3525
      %3622 = vmatpush1.bf16.msra.mxu0 %v3524
      %3623 = vmatprep.subr.bf16.mxu0 %v3529
      %3624 = vmatpush1.bf16.msra.mxu0 %v3528
      %3625 = vmatprep.subr.bf16.mxu0 %v3533
      %3626 = vmatpush1.bf16.msra.mxu0 %v3532
      %3627 = vmatprep.subr.bf16.mxu0 %v3537
      %3628 = vmatpush1.bf16.msra.mxu0 %v3536
      %3629 = vmatprep.subr.bf16.mxu0 0
      %3630 = vmatpush1.bf16.msra.mxu0 0
      %3631 = vmatprep.subr.bf16.mxu0 0
      %3632 = vmatpush1.bf16.msra.mxu0 0
      %3633 = vmatprep.subr.bf16.mxu0 0
      %3634 = vmatpush1.bf16.msra.mxu0 0
      %3635 = vmatprep.subr.bf16.mxu0 0
      %3636 = vmatpush1.bf16.msra.mxu0 0
      %3637 = vmatprep.subr.bf16.mxu0 0
      %3638 = vmatpush1.bf16.msra.mxu0 0
      %3639 = vmatprep.subr.bf16.mxu0 0
      %3640 = vmatpush1.bf16.msra.mxu0 0
      %3641 = vmatprep.subr.bf16.mxu0 0
      %3642 = vmatpush1.bf16.msra.mxu0 0
      %3643 = vmatprep.subr.bf16.mxu0 0
      %3644 = vmatpush1.bf16.msra.mxu0 0
      %3645 = vmatprep.mubr.bf16.mxu0 0
      %3646 = vmatmul.mubr.bf16.gmra.mrb[0].mxu0 %v3377
      %v3647 = vpop.f32.mrb[0].mxu0
      %v3648 = vadd.f32 0.0, %v3647
      %v3649 = vpop.f32.mrb[0].mxu0
      %v3650 = vadd.f32 0.0, %v3649
      %v3651 = vpop.f32.mrb[0].mxu0
      %v3652 = vadd.f32 0.0, %v3651
      %v3653 = vpop.f32.mrb[0].mxu0
      %v3654 = vadd.f32 0.0, %v3653
      %3655 = vdwg.mxu0
      %v3656 = vadd.f32 %v3369, %v3605
      %v3657 = vadd.f32 %v3370, %v3607
      %v3658 = vadd.f32 %v3371, %v3648
      %v3659 = vadd.f32 %v3372, %v3650
      %v3660 = vadd.f32 %v3373, %v3609
      %v3661 = vadd.f32 %v3374, %v3611
      %v3662 = vadd.f32 %v3375, %v3652
      %v3663 = vadd.f32 %v3376, %v3654
      %v3664 = vxor.u32 %v3656, 2147483648
      %v3665 = vxor.u32 %v3660, 2147483648
      %v3666 = vmul.f32 %v3664, 1.442695
      %v3667 = vpow.pop %v3666
      %v3668 = vmul.f32 %v3665, 1.442695
      %v3669 = vpow.pop %v3668
      %v3670 = vadd.f32 %v3667, 1.0
      %v3671 = vadd.f32 %v3669, 1.0
      %v3672 = vrcp.pop %v3670
      %v3673 = vmul.f32 1.0, %v3672
      %v3674 = vrcp.pop %v3671
      %v3675 = vmul.f32 1.0, %v3674
      %v3676 = vxor.u32 %v3657, 2147483648
      %v3677 = vxor.u32 %v3661, 2147483648
      %v3678 = vmul.f32 %v3676, 1.442695
      %v3679 = vpow.pop %v3678
      %v3680 = vmul.f32 %v3677, 1.442695
      %v3681 = vpow.pop %v3680
      %v3682 = vadd.f32 %v3679, 1.0
      %v3683 = vadd.f32 %v3681, 1.0
      %v3684 = vrcp.pop %v3682
      %v3685 = vmul.f32 1.0, %v3684
      %v3686 = vrcp.pop %v3683
      %v3687 = vmul.f32 1.0, %v3686
      %v3688 = vtanh.pop %v3658
      %v3689 = vtanh.pop %v3662
      %v3690 = vxor.u32 %v3659, 2147483648
      %v3691 = vxor.u32 %v3663, 2147483648
      %v3692 = vmul.f32 %v3690, 1.442695
      %v3693 = vpow.pop %v3692
      %v3694 = vmul.f32 %v3691, 1.442695
      %v3695 = vpow.pop %v3694
      %v3696 = vadd.f32 %v3693, 1.0
      %v3697 = vadd.f32 %v3695, 1.0
      %v3698 = vrcp.pop %v3696
      %v3699 = vmul.f32 1.0, %v3698
      %v3700 = vrcp.pop %v3697
      %v3701 = vmul.f32 1.0, %v3700
      %v3702 = vmul.f32 %v3685, %v3364
      %v3703 = vmul.f32 %v3687, %v3365
      %v3704 = vmul.f32 %v3673, %v3688
      %v3705 = vmul.f32 %v3675, %v3689
      %v3706 = vadd.f32 %v3702, %v3704
      %v3707 = vadd.f32 %v3703, %v3705
      %v3708 = vtanh.pop %v3706
      %v3709 = vtanh.pop %v3707
      %v3710 = vmul.f32 %v3699, %v3708
      %v3711 = vmul.f32 %v3701, %v3709
      %s3712 = sadd.s32 %s65, 7
      %v3713 = vstv %s3712
      %vm3714 = vcmp.gt.s32.totalorder %v67, %v3713
      %vm3715 = vcmp.gt.s32.totalorder %v68, %v3713
      %v3716 = vsel %vm3714, 1, 0
      %v3717 = vsel %vm3715, 1, 0
      %3718 = vset.pattern.permute.xlu0 0
      %3719 = vperm.xlu0 %3718, %v3716
      %v3720 = vpop.permute.xlu0 %3719
      %3721 = vset.pattern.permute.xlu0 0
      %3722 = vperm.xlu0 %3721, %v3717
      %v3723 = vpop.permute.xlu0 %3722
      %vm3724 = vcmp.eq.s32.totalorder %v3720, 1
      %vm3725 = vcmp.eq.s32.totalorder %v3723, 1
      %v3726 = vsel %vm3724, %v3710, %v3362
      %v3727 = vsel %vm3725, %v3711, %v3363
      %3728 = vst [vmem:[#allocation3] sm:$0xff] %v3726
      %3729 = vst [vmem:[#allocation3 + $0x8] sm:$0xff] %v3727
      %v3730 = vsel %vm3724, %v3706, %v3364
      %v3731 = vsel %vm3725, %v3707, %v3365
      %3732 = vst [vmem:[#allocation4] sm:$0xff] %v3730
      %3733 = vst [vmem:[#allocation4 + $0x8] sm:$0xff] %v3731
      %v3734 = vsel %vm3724, %v3710, 0.0
      %v3735 = vsel %vm3725, %v3711, 0.0
      %v3736 = vpack.c.bf16 %v3735, %v3734
      %v3738 = vunpack.c.l.b16 %v3736
      %v3739 = vunpack.c.h.b16 %v3736
      %v3740 = vpack.c.b16 %v3738, %v3738
      %v3741 = vpack.c.b16 %v3739, %v3739
      %s3744 = scalar_lea.vmem [#allocation13], 56
      %3745 = vst [vmem:[%s3744] sm:$0xf] %v3740
      %3746 = vst [vmem:[%s3744 + $0x4] sm:$0xf] %v3741
    $region45: #{tpu_custom_call.1} parent=1 // pred_fallthru
      _
    // Predicated region
    $region46: #{tpu_custom_call.1} parent=1 // pred_check
      _
    $region47: #{tpu_custom_call.1} parent=1 // pred_check_branch
      %3748 = sbr.rel (0) target = $region49
    $region48: #{tpu_custom_call.1} parent=1 // pred_region
      %s3750 = ssub.s32 1024, 1024
      %3751 = vsyncadd [#allocation9], %s3750
      %s3752 = sshll.u32 [#allocation13], 4
      %s3753 = int_to_ptr.vmem [resolvable:$true] %s3752
      %3758 = dma.vmem_to_hbm [thread:$0]  %s3753, 1024, %s6, [#allocation9], 64, 64, 4
    $region49: #{tpu_custom_call.1} parent=1 // pred_fallthru
      _
    // Predicated region
    $region50: #{tpu_custom_call.1} parent=1 // pred_check
      _
    $region51: #{tpu_custom_call.1} parent=1 // pred_check_branch
      %3760 = sbr.rel (0) target = $region53
    $region52: #{tpu_custom_call.1} parent=1 // pred_region
      %3761 = dma.done [#allocation9], 1024
    $region53: #{tpu_custom_call.1} parent=1 // pred_fallthru
      _
    %3762 = vsyncpa [#allocation8], 1
    %3763 = vsyncpa [#allocation11], 1
    %3764 = vsyncpa [#allocation9], 1

</llo_original>
